<compile_context>
chip_gen: v7x
topology: tpu7x:2x2x1
jax: 0.10.0
libtpu: 0.0.40
codegen_flags: <defaults>
</compile_context>

<pallas_src>
import jax
import jax.numpy as jnp
from jax.experimental import pallas as pl
from jax.experimental.pallas import tpu as pltpu

_LANE = 128
_TILE_QUANTUM = 8 * _LANE   # 1024: keeps the lane-dense output block (8,128)-aligned
_MIN_GRID_STEPS = 4         # >= 2 pipelined steps per TensorCore on v7x megacore


def _vfn_kernel(x_ref, w1_ref, b1_ref, w2_ref, b2_ref, w3_ref, b3_ref, o_ref):
    # x: (TILE_B, D) streamed as f32; cast to the MXU dtype (bf16) in-kernel so
    # no separate cast/pad pass over `states` is materialized in HBM.
    x = x_ref[...].astype(w1_ref.dtype)

    # Layers 1/2: MXU matmuls with f32 accumulation; bias + tanh on VPU/EUP in f32.
    h1 = jnp.tanh(
        jnp.dot(x, w1_ref[...], preferred_element_type=jnp.float32) + b1_ref[...]
    )
    h2 = jnp.tanh(
        jnp.dot(h1.astype(w2_ref.dtype), w2_ref[...],
                preferred_element_type=jnp.float32)
        + b2_ref[...]
    )

    # Layer 3 (H x 1): VPU multiply + XLU lane reduction instead of a 1-column
    # MXU matmul.  Rows are regrouped (cheap leading-dim split) so the result
    # is a lane-dense (TILE_B/128, 128) slab -> unmasked stores.
    tile_b, hid = h2.shape
    h2r = h2.reshape(tile_b // _LANE, _LANE, hid)
    v = jnp.sum(h2r * w3_ref[...], axis=-1) + b3_ref[...]   # (TILE_B/128, 128) f32

    o_ref[...] = v.astype(o_ref.dtype)


def _vmem_plan():
    """Generation-aware VMEM plan -> (scoped vmem_limit_bytes, tile budget bytes).

    v5e/v6e (128 MiB physical): limit 64 MiB, budget 32 MiB.
    v7x (64 MiB physical):      limit 32 MiB, budget 16 MiB (>=2x headroom).
    Falls back to the conservative (v7x-like) numbers if the query fails.
    """
    cap = 64 * 1024 * 1024
    try:
        info = pltpu.get_tpu_info()
        cap = int(getattr(info, "vmem_capacity_bytes", cap) or cap)
    except Exception:
        pass
    limit = min(cap // 2, 64 * 1024 * 1024)
    budget = limit // 2
    return limit, budget


def _pick_tile_b(requested, batch, obs_dim, hidden, vmem_budget_bytes):
    """VMEM-budget the batch tile and keep >= _MIN_GRID_STEPS pipelined steps."""

    def footprint(t):
        inp = 2 * t * obs_dim * 4                 # double-buffered f32 input stream
        out = 2 * t * 4                           # double-buffered lane-dense f32 out
        act = 5 * t * hidden * 4                  # bf16 x / h1 / h2 / product temporaries
        wts = 2 * ((obs_dim + hidden) * hidden * 2 + (3 * hidden + 1) * 4)
        return inp + out + act + wts

    tile = max(_TILE_QUANTUM, (requested // _TILE_QUANTUM) * _TILE_QUANTUM)
    while tile > _TILE_QUANTUM and footprint(tile) > vmem_budget_bytes:
        tile -= _TILE_QUANTUM

    # Cap so the grid keeps >= _MIN_GRID_STEPS steps (when the batch allows),
    # preserving prefetch-next/compute-current overlap and a balanced megacore
    # split on v7x.  Stay a multiple of the (8,128)-aligned quantum.
    pipeline_cap = pl.cdiv(pl.cdiv(batch, _MIN_GRID_STEPS), _TILE_QUANTUM) * _TILE_QUANTUM
    return max(_TILE_QUANTUM, min(tile, pipeline_cap))


def net_vfn_forward(states, params, *, tile_b=8192):
    """Pallas implementation of NetVFn.forward == net(states). Returns (B, 1) f32."""
    w1, b1, w2, b2, w3_row, b3 = params
    B, D = states.shape
    H = w1.shape[1]   # lane-padded hidden width

    vmem_limit, vmem_budget = _vmem_plan()
    tile_b = _pick_tile_b(tile_b, B, D, H, vmem_budget)

    grid_b = pl.cdiv(B, tile_b)
    b_pad = grid_b * tile_b   # output rows (padded); tail rows are sliced off below.
    # NOTE: no explicit jnp.pad of `states`.  The final partial block reads
    # undefined tail rows; the math is row-independent and those rows are
    # discarded by the [:B] slice, so no kept row is contaminated.

    w_bytes = (D * H + H * H) * jnp.dtype(w1.dtype).itemsize + (3 * H + 1) * 4
    cost = pl.CostEstimate(
        flops=2 * B * (D * H + H * H + H),
        transcendentals=2 * B * H,
        bytes_accessed=B * D * states.dtype.itemsize + B * 4 + w_bytes,
    )

    out = pl.pallas_call(
        _vfn_kernel,
        out_shape=jax.ShapeDtypeStruct((b_pad // _LANE, _LANE), jnp.float32),
        grid_spec=pltpu.PrefetchScalarGridSpec(
            num_scalar_prefetch=0,
            grid=(grid_b,),
            in_specs=[
                pl.BlockSpec((tile_b, D), lambda i: (i, 0)),   # streamed f32 states
                pl.BlockSpec((D, H), lambda i: (0, 0)),        # weights stay VMEM-resident
                pl.BlockSpec((1, H), lambda i: (0, 0)),
                pl.BlockSpec((H, H), lambda i: (0, 0)),
                pl.BlockSpec((1, H), lambda i: (0, 0)),
                pl.BlockSpec((1, H), lambda i: (0, 0)),
                pl.BlockSpec((1, 1), lambda i: (0, 0)),
            ],
            out_specs=pl.BlockSpec((tile_b // _LANE, _LANE), lambda i: (i, 0)),
        ),
        compiler_params=pltpu.CompilerParams(
            dimension_semantics=("parallel",),                 # megacore on v7x
            vmem_limit_bytes=vmem_limit,
        ),
        cost_estimate=cost,
    )(states, w1, b1, w2, b2, w3_row, b3)

    return out.reshape(b_pad, 1)[:B]


def init_params(key, obs_dim, hidden, *, matmul_dtype=jnp.bfloat16):
    """Deterministic synthetic MLP params; hidden zero-padded to 128 lanes (exact)."""
    k1, k2, k3 = jax.random.split(key, 3)
    w1 = jax.random.normal(k1, (obs_dim, hidden), jnp.float32) / jnp.sqrt(obs_dim)
    w2 = jax.random.normal(k2, (hidden, hidden), jnp.float32) / jnp.sqrt(hidden)
    w3 = jax.random.normal(k3, (hidden, 1), jnp.float32) / jnp.sqrt(hidden)

    hp = pl.cdiv(hidden, _LANE) * _LANE
    ph = hp - hidden
    w1p = jnp.pad(w1, ((0, 0), (0, ph))).astype(matmul_dtype)     # (D, Hp) bf16 (MXU)
    b1p = jnp.zeros((1, hp), jnp.float32)
    w2p = jnp.pad(w2, ((0, ph), (0, ph))).astype(matmul_dtype)    # (Hp, Hp) bf16 (MXU)
    b2p = jnp.zeros((1, hp), jnp.float32)
    w3r = jnp.pad(w3, ((0, ph), (0, 0))).reshape(1, hp).astype(jnp.float32)  # VPU path, f32
    b3p = jnp.zeros((1, 1), jnp.float32)
    return (w1p, b1p, w2p, b2p, w3r, b3p)


def _reference(states, params):
    """Pure-JAX reference with identical dtype handling to the kernel."""
    w1, b1, w2, b2, w3r, b3 = params
    x = states.astype(w1.dtype)
    h1 = jnp.tanh(jnp.dot(x, w1, preferred_element_type=jnp.float32) + b1)
    h2 = jnp.tanh(jnp.dot(h1.astype(w2.dtype), w2,
                          preferred_element_type=jnp.float32) + b2)
    return jnp.sum(h2 * w3r, axis=-1, keepdims=True) + b3


if __name__ == "__main__":
    key = jax.random.PRNGKey(0)
    k_params, k_states = jax.random.split(key)

    # Small, representative RL shapes; B deliberately not a tile multiple to
    # exercise the unpadded-tail path (grid = 2 tiles of 1024 rows).
    B, OBS_DIM, HIDDEN = 2000, 32, 32
    params = init_params(k_params, OBS_DIM, HIDDEN)
    states = jax.random.normal(k_states, (B, OBS_DIM), jnp.float32)

    values = net_vfn_forward(states, params)
    values = jax.block_until_ready(values)

    ref = _reference(states, params)
    assert values.shape == (B, 1)
    assert jnp.allclose(values, ref, atol=1e-3, rtol=1e-3), float(
        jnp.max(jnp.abs(values - ref))
    )

    print("KERNEL_OK")
</pallas_src>

<mosaic_0001>
module attributes {stable_mosaic.version = 11 : i64} {
  func.func @_vfn_kernel(%arg0: i32, %arg1: memref<1024x32xf32, #tpu.memory_space<vmem>>, %arg2: memref<32x128xbf16, #tpu.memory_space<vmem>>, %arg3: memref<1x128xf32, #tpu.memory_space<vmem>>, %arg4: memref<128x128xbf16, #tpu.memory_space<vmem>>, %arg5: memref<1x128xf32, #tpu.memory_space<vmem>>, %arg6: memref<1x128xf32, #tpu.memory_space<vmem>>, %arg7: memref<1x1xf32, #tpu.memory_space<vmem>>, %arg8: memref<8x128xf32, #tpu.memory_space<vmem>>) attributes {dimension_semantics = [#tpu.dimension_semantics<parallel>], iteration_bounds = array<i64: 2>, scalar_prefetch = 0 : i64, scratch_operands = 0 : i64, tpu.core_type = #tpu.core_type<tc>, window_params = [{transform_indices = @transform_0, window_bounds = array<i64: 1024, 32>}, {pipeline_mode = #tpu.pipeline_mode<synchronous>, transform_indices = @transform_1, window_bounds = array<i64: 32, 128>}, {pipeline_mode = #tpu.pipeline_mode<synchronous>, transform_indices = @transform_2, window_bounds = array<i64: 1, 128>}, {pipeline_mode = #tpu.pipeline_mode<synchronous>, transform_indices = @transform_3, window_bounds = array<i64: 128, 128>}, {pipeline_mode = #tpu.pipeline_mode<synchronous>, transform_indices = @transform_4, window_bounds = array<i64: 1, 128>}, {pipeline_mode = #tpu.pipeline_mode<synchronous>, transform_indices = @transform_5, window_bounds = array<i64: 1, 128>}, {pipeline_mode = #tpu.pipeline_mode<synchronous>, transform_indices = @transform_6, window_bounds = array<i64: 1, 1>}, {transform_indices = @transform_7, window_bounds = array<i64: 8, 128>}]} {
    %c0 = arith.constant 0 : index
    %c0_0 = arith.constant 0 : index
    %0 = vector.load %arg1[%c0, %c0_0] : memref<1024x32xf32, #tpu.memory_space<vmem>>, vector<1024x32xf32>
    %1 = arith.truncf %0 : vector<1024x32xf32> to vector<1024x32xbf16>
    %c0_1 = arith.constant 0 : index
    %c0_2 = arith.constant 0 : index
    %2 = vector.load %arg2[%c0_1, %c0_2] : memref<32x128xbf16, #tpu.memory_space<vmem>>, vector<32x128xbf16>
    %cst = arith.constant dense<0.000000e+00> : vector<1024x128xf32>
    %3 = tpu.matmul %1, %2, %cst {dimension_numbers = #tpu.dot_dimension_numbers<[1], [0], [0], [1], [0, 0, 1, 1], [], []>} : vector<1024x32xbf16>, vector<32x128xbf16>, vector<1024x128xf32> -> vector<1024x128xf32>
    %c0_3 = arith.constant 0 : index
    %c0_4 = arith.constant 0 : index
    %4 = vector.load %arg3[%c0_3, %c0_4] : memref<1x128xf32, #tpu.memory_space<vmem>>, vector<1x128xf32>
    %5 = vector.broadcast %4 : vector<1x128xf32> to vector<1024x128xf32>
    %6 = arith.addf %3, %5 : vector<1024x128xf32>
    %7 = math.tanh %6 : vector<1024x128xf32>
    %8 = arith.truncf %7 : vector<1024x128xf32> to vector<1024x128xbf16>
    %c0_5 = arith.constant 0 : index
    %c0_6 = arith.constant 0 : index
    %9 = vector.load %arg4[%c0_5, %c0_6] : memref<128x128xbf16, #tpu.memory_space<vmem>>, vector<128x128xbf16>
    %cst_7 = arith.constant dense<0.000000e+00> : vector<1024x128xf32>
    %10 = tpu.matmul %8, %9, %cst_7 {dimension_numbers = #tpu.dot_dimension_numbers<[1], [0], [0], [1], [0, 0, 1, 1], [], []>} : vector<1024x128xbf16>, vector<128x128xbf16>, vector<1024x128xf32> -> vector<1024x128xf32>
    %c0_8 = arith.constant 0 : index
    %c0_9 = arith.constant 0 : index
    %11 = vector.load %arg5[%c0_8, %c0_9] : memref<1x128xf32, #tpu.memory_space<vmem>>, vector<1x128xf32>
    %12 = vector.broadcast %11 : vector<1x128xf32> to vector<1024x128xf32>
    %13 = arith.addf %10, %12 : vector<1024x128xf32>
    %14 = math.tanh %13 : vector<1024x128xf32>
    %15 = vector.shape_cast %14 : vector<1024x128xf32> to vector<8x128x128xf32>
    %c0_10 = arith.constant 0 : index
    %c0_11 = arith.constant 0 : index
    %16 = vector.load %arg6[%c0_10, %c0_11] : memref<1x128xf32, #tpu.memory_space<vmem>>, vector<1x128xf32>
    %17 = vector.shape_cast %16 : vector<1x128xf32> to vector<1x1x128xf32>
    %18 = vector.broadcast %17 : vector<1x1x128xf32> to vector<8x128x128xf32>
    %19 = arith.mulf %15, %18 : vector<8x128x128xf32>
    %cst_12 = arith.constant dense<0.000000e+00> : vector<8x128xf32>
    %20 = vector.multi_reduction <add>, %19, %cst_12 [2] : vector<8x128x128xf32> to vector<8x128xf32>
    %c0_13 = arith.constant 0 : index
    %c0_14 = arith.constant 0 : index
    %21 = vector.load %arg7[%c0_13, %c0_14] : memref<1x1xf32, #tpu.memory_space<vmem>>, vector<1x1xf32>
    %22 = vector.broadcast %21 : vector<1x1xf32> to vector<8x128xf32>
    %23 = arith.addf %20, %22 : vector<8x128xf32>
    %c0_15 = arith.constant 0 : index
    %c0_16 = arith.constant 0 : index
    %24 = vector.load %arg8[%c0_15, %c0_16] : memref<8x128xf32, #tpu.memory_space<vmem>>, vector<8x128xf32>
    tpu.vector_store %arg8[%c0_15, %c0_16], %23 {strides = array<i32>} : memref<8x128xf32, #tpu.memory_space<vmem>>, vector<8x128xf32>,
    return
  }
  func.func @transform_0(%arg0: i32) -> (i32, i32) {
    %c0_i32 = arith.constant 0 : i32
    %c0_i32_0 = arith.constant 0 : i32
    return %arg0, %c0_i32 : i32, i32
  }
  func.func @transform_1(%arg0: i32) -> (i32, i32) {
    %c0_i32 = arith.constant 0 : i32
    %c0_i32_0 = arith.constant 0 : i32
    %c0_i32_1 = arith.constant 0 : i32
    return %c0_i32, %c0_i32_0 : i32, i32
  }
  func.func @transform_2(%arg0: i32) -> (i32, i32) {
    %c0_i32 = arith.constant 0 : i32
    %c0_i32_0 = arith.constant 0 : i32
    %c0_i32_1 = arith.constant 0 : i32
    return %c0_i32, %c0_i32_0 : i32, i32
  }
  func.func @transform_3(%arg0: i32) -> (i32, i32) {
    %c0_i32 = arith.constant 0 : i32
    %c0_i32_0 = arith.constant 0 : i32
    %c0_i32_1 = arith.constant 0 : i32
    return %c0_i32, %c0_i32_0 : i32, i32
  }
  func.func @transform_4(%arg0: i32) -> (i32, i32) {
    %c0_i32 = arith.constant 0 : i32
    %c0_i32_0 = arith.constant 0 : i32
    %c0_i32_1 = arith.constant 0 : i32
    return %c0_i32, %c0_i32_0 : i32, i32
  }
  func.func @transform_5(%arg0: i32) -> (i32, i32) {
    %c0_i32 = arith.constant 0 : i32
    %c0_i32_0 = arith.constant 0 : i32
    %c0_i32_1 = arith.constant 0 : i32
    return %c0_i32, %c0_i32_0 : i32, i32
  }
  func.func @transform_6(%arg0: i32) -> (i32, i32) {
    %c0_i32 = arith.constant 0 : i32
    %c0_i32_0 = arith.constant 0 : i32
    %c0_i32_1 = arith.constant 0 : i32
    return %c0_i32, %c0_i32_0 : i32, i32
  }
  func.func @transform_7(%arg0: i32) -> (i32, i32) {
    %c0_i32 = arith.constant 0 : i32
    %c0_i32_0 = arith.constant 0 : i32
    return %arg0, %c0_i32 : i32, i32
  }
}

</mosaic_0001>

<llo_original>
// kernel: tpu_custom_call.1
$region0: #{tpu_custom_call.1}
  #allocation0 [shape = 'u32[]', space=smem, size = 0x4, offset = 0x4, fixed_abs, tag = 'smem constant byte address 0x4 - core index']
  #allocation1 [shape = 'u32[144,128]{1,0:T(1,128)}', space=vmem, size = 0x12000, scoped, tag = 'internal scratch']
  #allocation2 [shape = 'f32[1,1]{1,0:T(1,128)S(1)}', space=vmem, size = 0x200, scoped, tag = 'scoped memory for tpu_custom_call.1']
  %s0 = inlined_call_operand.vmem [shape: f32[2000,32], index: 0, kind: input, shape index: {}]
  %s1 = inlined_call_operand.vmem [shape: bf16[32,128], index: 1, kind: input, shape index: {}]
  %s2 = inlined_call_operand.vmem [shape: f32[1,128], index: 2, kind: input, shape index: {}]
  %s3 = inlined_call_operand.vmem [shape: bf16[128,128], index: 3, kind: input, shape index: {}]
  %s4 = inlined_call_operand.vmem [shape: f32[1,128], index: 4, kind: input, shape index: {}]
  %s5 = inlined_call_operand.vmem [shape: f32[1,128], index: 5, kind: input, shape index: {}]
  %s6 = inlined_call_operand.<no memory space> [shape: f32[1,1], index: 6, kind: input, shape index: {}]
  %s7 = inlined_call_operand.hbm [shape: f32[16,128], index: 7, kind: output, shape index: {}]
  %s8 = sld [smem:[#allocation0]]
  $region61: #{tpu_custom_call.1} parent=0
    _
  %s10 = ssub.s32 1, %s8
  %s11 = scalar_select 0, %s10, %s8
  %v12 = vstv %s6
  %13 = vst [vmem:[#allocation2] sm:$0x1] %v12
  $region1: #{tpu_custom_call.1} parent=0
    #allocation3 [shape = 'u8[8192]{0}', space=vmem, size = 0x2000, scoped, tag = 'output window, operand 0']
    #allocation4 [shape = 's32[2]{0}', space=sflag, size = 0x8, scoped, tag = 'scoped memory for tpu_custom_call.1']
    %14 = vsyncpa [#allocation4], 0
    %s15 = scalar_lea.sflag [#allocation4], 1
    %16 = vsyncpa %s15, 0
    loop: start=0, step=1, limit=4
    $region2: #{tpu_custom_call.1} parent=1 // loop_pre_header
      _
    $region3: #{tpu_custom_call.1} parent=1 // loop_header
      %s18 = sphi 0, %s22
      %p19 = scmp.ge.s32.totalorder %s18, 4
      %s28 = sphi 0, %s30
      %s31 = sphi 0, %s28
      %s32 = sphi 0, %s31
      %s48 = sphi 0, %s32
      %s52 = sphi 0, %s52
      %s54 = sphi 0, %s52
      %s55 = sphi 0, %s54
      %s69 = sphi 0, %s55
      %s73 = sphi 0, %s73
      %s75 = sphi 0, %s73
      %s76 = sphi 0, %s75
      %s90 = sphi 0, %s76
      %s94 = sphi 0, %s94
      %s96 = sphi 0, %s94
      %s97 = sphi 0, %s96
      %s111 = sphi 0, %s97
      %s115 = sphi 0, %s115
      %s117 = sphi 0, %s115
      %s118 = sphi 0, %s117
      %s132 = sphi 0, %s118
      %s136 = sphi 0, %s136
      %s138 = sphi 0, %s136
      %s139 = sphi 0, %s138
      %s153 = sphi 0, %s139
      %s157 = sphi 0, %s157
      %s159 = sphi 0, %s157
      %s160 = sphi 0, %s159
      %s174 = sphi 0, %s160
      %s180 = sphi 0, %s182
      %s183 = sphi 0, %s180
      %s184 = sphi 0, %s183
      %s200 = sphi 0, %s184
    $region4: #{tpu_custom_call.1} parent=1 // loop_header_branch
      %21 = sbr.rel (%p19) target = $region8
    $region5: #{tpu_custom_call.1} parent=1 // loop_body
      %s23 = ssub.s32 %s18, 1
      %s24 = ssub.s32 %s18, 2
      %s25 = sadd.s32 %s18, 1
      %s26 = ssub.s32 %s18, %s25
      %p27 = scmp.eq.s32.totalorder %s26, 0
      %s29 = sadd.s32 %s28, 1
      %s30 = scalar_select %p27, %s28, %s29
      %p33 = pneg %p27
      %p34 = scmp.eq.s32.totalorder %s18, 1
      %p35 = por %p33, %p34
      %p36 = scmp.ne.s32.totalorder %s28, %s31
      %p37 = scmp.eq.s32.totalorder %s18, 0
      %p38 = por %p36, %p37
      %p39 = scmp.ne.s32.totalorder %s28, %s31
      %p40 = scmp.eq.s32.totalorder %s23, 1
      %p41 = por %p39, %p40
      %p42 = scmp.ne.s32.totalorder %s31, %s32
      %p43 = scmp.eq.s32.totalorder %s23, 0
      %p44 = por %p42, %p43
      %p45 = scmp.ne.s32.totalorder %s31, %s32
      %p46 = scmp.eq.s32.totalorder %s24, 1
      %p47 = por %p45, %p46
      %p49 = scmp.ne.s32.totalorder %s32, %s48
      %p50 = scmp.eq.s32.totalorder %s24, 0
      %p51 = por %p49, %p50
      %s53 = sadd.s32 %s52, 1
      %p56 = scmp.eq.s32.totalorder %s18, 1
      %p57 = scmp.ne.s32.totalorder %s52, %s54
      %p58 = scmp.eq.s32.totalorder %s18, 0
      %p59 = por %p57, %p58
      %p60 = scmp.ne.s32.totalorder %s52, %s54
      %p61 = scmp.eq.s32.totalorder %s23, 1
      %p62 = por %p60, %p61
      %p63 = scmp.ne.s32.totalorder %s54, %s55
      %p64 = scmp.eq.s32.totalorder %s23, 0
      %p65 = por %p63, %p64
      %p66 = scmp.ne.s32.totalorder %s54, %s55
      %p67 = scmp.eq.s32.totalorder %s24, 1
      %p68 = por %p66, %p67
      %p70 = scmp.ne.s32.totalorder %s55, %s69
      %p71 = scmp.eq.s32.totalorder %s24, 0
      %p72 = por %p70, %p71
      %s74 = sadd.s32 %s73, 1
      %p77 = scmp.eq.s32.totalorder %s18, 1
      %p78 = scmp.ne.s32.totalorder %s73, %s75
      %p79 = scmp.eq.s32.totalorder %s18, 0
      %p80 = por %p78, %p79
      %p81 = scmp.ne.s32.totalorder %s73, %s75
      %p82 = scmp.eq.s32.totalorder %s23, 1
      %p83 = por %p81, %p82
      %p84 = scmp.ne.s32.totalorder %s75, %s76
      %p85 = scmp.eq.s32.totalorder %s23, 0
      %p86 = por %p84, %p85
      %p87 = scmp.ne.s32.totalorder %s75, %s76
      %p88 = scmp.eq.s32.totalorder %s24, 1
      %p89 = por %p87, %p88
      %p91 = scmp.ne.s32.totalorder %s76, %s90
      %p92 = scmp.eq.s32.totalorder %s24, 0
      %p93 = por %p91, %p92
      %s95 = sadd.s32 %s94, 1
      %p98 = scmp.eq.s32.totalorder %s18, 1
      %p99 = scmp.ne.s32.totalorder %s94, %s96
      %p100 = scmp.eq.s32.totalorder %s18, 0
      %p101 = por %p99, %p100
      %p102 = scmp.ne.s32.totalorder %s94, %s96
      %p103 = scmp.eq.s32.totalorder %s23, 1
      %p104 = por %p102, %p103
      %p105 = scmp.ne.s32.totalorder %s96, %s97
      %p106 = scmp.eq.s32.totalorder %s23, 0
      %p107 = por %p105, %p106
      %p108 = scmp.ne.s32.totalorder %s96, %s97
      %p109 = scmp.eq.s32.totalorder %s24, 1
      %p110 = por %p108, %p109
      %p112 = scmp.ne.s32.totalorder %s97, %s111
      %p113 = scmp.eq.s32.totalorder %s24, 0
      %p114 = por %p112, %p113
      %s116 = sadd.s32 %s115, 1
      %p119 = scmp.eq.s32.totalorder %s18, 1
      %p120 = scmp.ne.s32.totalorder %s115, %s117
      %p121 = scmp.eq.s32.totalorder %s18, 0
      %p122 = por %p120, %p121
      %p123 = scmp.ne.s32.totalorder %s115, %s117
      %p124 = scmp.eq.s32.totalorder %s23, 1
      %p125 = por %p123, %p124
      %p126 = scmp.ne.s32.totalorder %s117, %s118
      %p127 = scmp.eq.s32.totalorder %s23, 0
      %p128 = por %p126, %p127
      %p129 = scmp.ne.s32.totalorder %s117, %s118
      %p130 = scmp.eq.s32.totalorder %s24, 1
      %p131 = por %p129, %p130
      %p133 = scmp.ne.s32.totalorder %s118, %s132
      %p134 = scmp.eq.s32.totalorder %s24, 0
      %p135 = por %p133, %p134
      %s137 = sadd.s32 %s136, 1
      %p140 = scmp.eq.s32.totalorder %s18, 1
      %p141 = scmp.ne.s32.totalorder %s136, %s138
      %p142 = scmp.eq.s32.totalorder %s18, 0
      %p143 = por %p141, %p142
      %p144 = scmp.ne.s32.totalorder %s136, %s138
      %p145 = scmp.eq.s32.totalorder %s23, 1
      %p146 = por %p144, %p145
      %p147 = scmp.ne.s32.totalorder %s138, %s139
      %p148 = scmp.eq.s32.totalorder %s23, 0
      %p149 = por %p147, %p148
      %p150 = scmp.ne.s32.totalorder %s138, %s139
      %p151 = scmp.eq.s32.totalorder %s24, 1
      %p152 = por %p150, %p151
      %p154 = scmp.ne.s32.totalorder %s139, %s153
      %p155 = scmp.eq.s32.totalorder %s24, 0
      %p156 = por %p154, %p155
      %s158 = sadd.s32 %s157, 1
      %p161 = scmp.eq.s32.totalorder %s18, 1
      %p162 = scmp.ne.s32.totalorder %s157, %s159
      %p163 = scmp.eq.s32.totalorder %s18, 0
      %p164 = por %p162, %p163
      %p165 = scmp.ne.s32.totalorder %s157, %s159
      %p166 = scmp.eq.s32.totalorder %s23, 1
      %p167 = por %p165, %p166
      %p168 = scmp.ne.s32.totalorder %s159, %s160
      %p169 = scmp.eq.s32.totalorder %s23, 0
      %p170 = por %p168, %p169
      %p171 = scmp.ne.s32.totalorder %s159, %s160
      %p172 = scmp.eq.s32.totalorder %s24, 1
      %p173 = por %p171, %p172
      %p175 = scmp.ne.s32.totalorder %s160, %s174
      %p176 = scmp.eq.s32.totalorder %s24, 0
      %p177 = por %p175, %p176
      %s178 = ssub.s32 %s18, %s25
      %p179 = scmp.eq.s32.totalorder %s178, 0
      %s181 = sadd.s32 %s180, 1
      %s182 = scalar_select %p179, %s180, %s181
      %p185 = pneg %p179
      %p186 = scmp.eq.s32.totalorder %s18, 1
      %p187 = por %p185, %p186
      %p188 = scmp.ne.s32.totalorder %s180, %s183
      %p189 = scmp.eq.s32.totalorder %s18, 0
      %p190 = por %p188, %p189
      %p191 = scmp.ne.s32.totalorder %s180, %s183
      %p192 = scmp.eq.s32.totalorder %s23, 1
      %p193 = por %p191, %p192
      %p194 = scmp.ne.s32.totalorder %s183, %s184
      %p195 = scmp.eq.s32.totalorder %s23, 0
      %p196 = por %p194, %p195
      %p197 = scmp.ne.s32.totalorder %s183, %s184
      %p198 = scmp.eq.s32.totalorder %s24, 1
      %p199 = por %p197, %p198
      %p201 = scmp.ne.s32.totalorder %s184, %s200
      %p202 = scmp.eq.s32.totalorder %s24, 0
      %p203 = por %p201, %p202
      %p204 = scmp.le.s32.totalorder 1, %s18
      %p205 = scmp.lt.s32.totalorder %s18, 3
      %p206 = pnand %p204, %p205
      %p207 = pneg %p206
      // Predicated region
      $region9: #{tpu_custom_call.1} parent=5 // pred_check
        _
      $region10: #{tpu_custom_call.1} parent=5 // pred_check_branch
        %209 = sbr.rel (%p206) target = $region12
      $region11: #{tpu_custom_call.1} parent=5 // pred_region
        %s210 = ssub.s32 %s18, 1
        // Predicated region
        $region13: #{tpu_custom_call.1} parent=11 // pred_check
          %p211 = pneg %p65
        $region14: #{tpu_custom_call.1} parent=11 // pred_check_branch
          %213 = sbr.rel (%p211) target = $region16
        $region15: #{tpu_custom_call.1} parent=11 // pred_region
          _
        $region16: #{tpu_custom_call.1} parent=11 // pred_fallthru
          _
        // Predicated region
        $region17: #{tpu_custom_call.1} parent=11 // pred_check
          %p214 = pneg %p86
        $region18: #{tpu_custom_call.1} parent=11 // pred_check_branch
          %216 = sbr.rel (%p214) target = $region20
        $region19: #{tpu_custom_call.1} parent=11 // pred_region
          _
        $region20: #{tpu_custom_call.1} parent=11 // pred_fallthru
          _
        // Predicated region
        $region21: #{tpu_custom_call.1} parent=11 // pred_check
          %p217 = pneg %p107
        $region22: #{tpu_custom_call.1} parent=11 // pred_check_branch
          %219 = sbr.rel (%p217) target = $region24
        $region23: #{tpu_custom_call.1} parent=11 // pred_region
          _
        $region24: #{tpu_custom_call.1} parent=11 // pred_fallthru
          _
        // Predicated region
        $region25: #{tpu_custom_call.1} parent=11 // pred_check
          %p220 = pneg %p128
        $region26: #{tpu_custom_call.1} parent=11 // pred_check_branch
          %222 = sbr.rel (%p220) target = $region28
        $region27: #{tpu_custom_call.1} parent=11 // pred_region
          _
        $region28: #{tpu_custom_call.1} parent=11 // pred_fallthru
          _
        // Predicated region
        $region29: #{tpu_custom_call.1} parent=11 // pred_check
          %p223 = pneg %p149
        $region30: #{tpu_custom_call.1} parent=11 // pred_check_branch
          %225 = sbr.rel (%p223) target = $region32
        $region31: #{tpu_custom_call.1} parent=11 // pred_region
          _
        $region32: #{tpu_custom_call.1} parent=11 // pred_fallthru
          _
        // Predicated region
        $region33: #{tpu_custom_call.1} parent=11 // pred_check
          %p226 = pneg %p170
        $region34: #{tpu_custom_call.1} parent=11 // pred_check_branch
          %228 = sbr.rel (%p226) target = $region36
        $region35: #{tpu_custom_call.1} parent=11 // pred_region
          _
        $region36: #{tpu_custom_call.1} parent=11 // pred_fallthru
          _
      $region12: #{tpu_custom_call.1} parent=5 // pred_fallthru
        _
      %p229 = scmp.lt.s32.totalorder %s18, 2
      // Predicated region
      $region37: #{tpu_custom_call.1} parent=5 // pred_check
        %p230 = pneg %p229
      $region38: #{tpu_custom_call.1} parent=5 // pred_check_branch
        %232 = sbr.rel (%p230) target = $region40
      $region39: #{tpu_custom_call.1} parent=5 // pred_region
        // Predicated region
        $region41: #{tpu_custom_call.1} parent=39 // pred_check
          %p233 = pneg %p38
        $region42: #{tpu_custom_call.1} parent=39 // pred_check_branch
          %235 = sbr.rel (%p233) target = $region44
        $region43: #{tpu_custom_call.1} parent=39 // pred_region
          %s236 = smul.u32 128, %s18
          %s237 = ssub.s32 250, %s236
          %p238 = scmp.lt.s32.totalorder %s237, 128
          %s239 = scalar_select %p238, %s237, 128
          %s240 = smul.u32 128, %s239
          %p241 = scmp.lt.s32.totalorder %s236, 249
          %s242 = scalar_select %p241, %s236, 249
          %s243 = smul.addr %s242, 8
          %s244 = scalar_lea.vmem %s0, %s243
          %s245 = smul.u32 128, %s18
          %s246 = ssub.s32 250, %s245
          %p247 = scmp.lt.s32.totalorder %s246, 128
          %s248 = scalar_select %p247, %s246, 128
          %s249 = smul.u32 128, %s248
        $region44: #{tpu_custom_call.1} parent=39 // pred_fallthru
          _
      $region40: #{tpu_custom_call.1} parent=5 // pred_fallthru
        _
      %p250 = scmp.le.s32.totalorder 1, %s18
      %p251 = scmp.lt.s32.totalorder %s18, 3
      %p252 = pnand %p250, %p251
      %p253 = pneg %p252
      // Predicated region
      $region45: #{tpu_custom_call.1} parent=5 // pred_check
        _
      $region46: #{tpu_custom_call.1} parent=5 // pred_check_branch
        %255 = sbr.rel (%p252) target = $region48
      $region47: #{tpu_custom_call.1} parent=5 // pred_region
        %s256 = ssub.s32 %s18, 1
        %s257 = smul.u32 128, %s23
        %s258 = ssub.s32 250, %s257
        %p259 = scmp.lt.s32.totalorder %s258, 128
        %s260 = scalar_select %p259, %s258, 128
        %s261 = smul.u32 128, %s260
        %p262 = scmp.lt.s32.totalorder %s257, 249
        %s263 = scalar_select %p262, %s257, 249
        %s264 = smul.addr %s263, 8
        %s265 = scalar_lea.vmem %s0, %s264
        %p266 = pneg %p44
        %p267 = pneg %p41
        %p268 = pneg %p65
        %p269 = pneg %p62
        %p270 = pneg %p86
        %p271 = pneg %p83
        %p272 = pneg %p107
        %p273 = pneg %p104
        %p274 = pneg %p128
        %p275 = pneg %p125
        %p276 = pneg %p149
        %p277 = pneg %p146
        %p278 = pneg %p170
        %p279 = pneg %p167
        %p280 = pneg %p196
        %p281 = pneg %p193
        %s282 = sand.u32 %s183, 1
        %s283 = scalar_lea.sflag [#allocation4], %s282
        %s284 = sand.u32 %s183, 1
        %s285 = smul.addr %s284, 8
        %s286 = scalar_lea.vmem [#allocation3], %s285
        %s287 = smul.u32 128, %s23
        %s288 = ssub.s32 250, %s287
        %p289 = scmp.lt.s32.totalorder %s288, 128
        %s290 = scalar_select %p289, %s288, 128
        %s291 = smul.u32 128, %s290
        %p292 = scmp.lt.s32.totalorder %s287, 249
        %s293 = scalar_select %p292, %s287, 249
        %s294 = smul.addr %s293, 8
        %s295 = scalar_lea.vmem %s0, %s294
        %s296 = smul.u32 128, %s23
        %s297 = ssub.s32 250, %s296
        %p298 = scmp.lt.s32.totalorder %s297, 128
        %s299 = scalar_select %p298, %s297, 128
        %s300 = smul.u32 128, %s299
        %v302 = vld [vmem:[%s295] sm:$0xff]
        %v303 = vld [vmem:[%s295 + $0x8] sm:$0xff]
        %v304 = vld [vmem:[%s295 + $0x10] sm:$0xff]
        %v305 = vld [vmem:[%s295 + $0x18] sm:$0xff]
        %v306 = vld [vmem:[%s295 + $0x20] sm:$0xff]
        %v307 = vld [vmem:[%s295 + $0x28] sm:$0xff]
        %v308 = vld [vmem:[%s295 + $0x30] sm:$0xff]
        %v309 = vld [vmem:[%s295 + $0x38] sm:$0xff]
        %v310 = vld [vmem:[%s295 + $0x40] sm:$0xff]
        %v311 = vld [vmem:[%s295 + $0x48] sm:$0xff]
        %v312 = vld [vmem:[%s295 + $0x50] sm:$0xff]
        %v313 = vld [vmem:[%s295 + $0x58] sm:$0xff]
        %v314 = vld [vmem:[%s295 + $0x60] sm:$0xff]
        %v315 = vld [vmem:[%s295 + $0x68] sm:$0xff]
        %v316 = vld [vmem:[%s295 + $0x70] sm:$0xff]
        %v317 = vld [vmem:[%s295 + $0x78] sm:$0xff]
        %v318 = vld [vmem:[%s295 + $0x80] sm:$0xff]
        %v319 = vld [vmem:[%s295 + $0x88] sm:$0xff]
        %v320 = vld [vmem:[%s295 + $0x90] sm:$0xff]
        %v321 = vld [vmem:[%s295 + $0x98] sm:$0xff]
        %v322 = vld [vmem:[%s295 + $0xa0] sm:$0xff]
        %v323 = vld [vmem:[%s295 + $0xa8] sm:$0xff]
        %v324 = vld [vmem:[%s295 + $0xb0] sm:$0xff]
        %v325 = vld [vmem:[%s295 + $0xb8] sm:$0xff]
        %v326 = vld [vmem:[%s295 + $0xc0] sm:$0xff]
        %v327 = vld [vmem:[%s295 + $0xc8] sm:$0xff]
        %v328 = vld [vmem:[%s295 + $0xd0] sm:$0xff]
        %v329 = vld [vmem:[%s295 + $0xd8] sm:$0xff]
        %v330 = vld [vmem:[%s295 + $0xe0] sm:$0xff]
        %v331 = vld [vmem:[%s295 + $0xe8] sm:$0xff]
        %v332 = vld [vmem:[%s295 + $0xf0] sm:$0xff]
        %v333 = vld [vmem:[%s295 + $0xf8] sm:$0xff]
        %v334 = vld [vmem:[%s295 + $0x100] sm:$0xff]
        %v335 = vld [vmem:[%s295 + $0x108] sm:$0xff]
        %v336 = vld [vmem:[%s295 + $0x110] sm:$0xff]
        %v337 = vld [vmem:[%s295 + $0x118] sm:$0xff]
        %v338 = vld [vmem:[%s295 + $0x120] sm:$0xff]
        %v339 = vld [vmem:[%s295 + $0x128] sm:$0xff]
        %v340 = vld [vmem:[%s295 + $0x130] sm:$0xff]
        %v341 = vld [vmem:[%s295 + $0x138] sm:$0xff]
        %v342 = vld [vmem:[%s295 + $0x140] sm:$0xff]
        %v343 = vld [vmem:[%s295 + $0x148] sm:$0xff]
        %v344 = vld [vmem:[%s295 + $0x150] sm:$0xff]
        %v345 = vld [vmem:[%s295 + $0x158] sm:$0xff]
        %v346 = vld [vmem:[%s295 + $0x160] sm:$0xff]
        %v347 = vld [vmem:[%s295 + $0x168] sm:$0xff]
        %v348 = vld [vmem:[%s295 + $0x170] sm:$0xff]
        %v349 = vld [vmem:[%s295 + $0x178] sm:$0xff]
        %v350 = vld [vmem:[%s295 + $0x180] sm:$0xff]
        %v351 = vld [vmem:[%s295 + $0x188] sm:$0xff]
        %v352 = vld [vmem:[%s295 + $0x190] sm:$0xff]
        %v353 = vld [vmem:[%s295 + $0x198] sm:$0xff]
        %v354 = vld [vmem:[%s295 + $0x1a0] sm:$0xff]
        %v355 = vld [vmem:[%s295 + $0x1a8] sm:$0xff]
        %v356 = vld [vmem:[%s295 + $0x1b0] sm:$0xff]
        %v357 = vld [vmem:[%s295 + $0x1b8] sm:$0xff]
        %v358 = vld [vmem:[%s295 + $0x1c0] sm:$0xff]
        %v359 = vld [vmem:[%s295 + $0x1c8] sm:$0xff]
        %v360 = vld [vmem:[%s295 + $0x1d0] sm:$0xff]
        %v361 = vld [vmem:[%s295 + $0x1d8] sm:$0xff]
        %v362 = vld [vmem:[%s295 + $0x1e0] sm:$0xff]
        %v363 = vld [vmem:[%s295 + $0x1e8] sm:$0xff]
        %v364 = vld [vmem:[%s295 + $0x1f0] sm:$0xff]
        %v365 = vld [vmem:[%s295 + $0x1f8] sm:$0xff]
        %v366 = vld [vmem:[%s295 + $0x200] sm:$0xff]
        %v367 = vld [vmem:[%s295 + $0x208] sm:$0xff]
        %v368 = vld [vmem:[%s295 + $0x210] sm:$0xff]
        %v369 = vld [vmem:[%s295 + $0x218] sm:$0xff]
        %v370 = vld [vmem:[%s295 + $0x220] sm:$0xff]
        %v371 = vld [vmem:[%s295 + $0x228] sm:$0xff]
        %v372 = vld [vmem:[%s295 + $0x230] sm:$0xff]
        %v373 = vld [vmem:[%s295 + $0x238] sm:$0xff]
        %v374 = vld [vmem:[%s295 + $0x240] sm:$0xff]
        %v375 = vld [vmem:[%s295 + $0x248] sm:$0xff]
        %v376 = vld [vmem:[%s295 + $0x250] sm:$0xff]
        %v377 = vld [vmem:[%s295 + $0x258] sm:$0xff]
        %v378 = vld [vmem:[%s295 + $0x260] sm:$0xff]
        %v379 = vld [vmem:[%s295 + $0x268] sm:$0xff]
        %v380 = vld [vmem:[%s295 + $0x270] sm:$0xff]
        %v381 = vld [vmem:[%s295 + $0x278] sm:$0xff]
        %v382 = vld [vmem:[%s295 + $0x280] sm:$0xff]
        %v383 = vld [vmem:[%s295 + $0x288] sm:$0xff]
        %v384 = vld [vmem:[%s295 + $0x290] sm:$0xff]
        %v385 = vld [vmem:[%s295 + $0x298] sm:$0xff]
        %v386 = vld [vmem:[%s295 + $0x2a0] sm:$0xff]
        %v387 = vld [vmem:[%s295 + $0x2a8] sm:$0xff]
        %v388 = vld [vmem:[%s295 + $0x2b0] sm:$0xff]
        %v389 = vld [vmem:[%s295 + $0x2b8] sm:$0xff]
        %v390 = vld [vmem:[%s295 + $0x2c0] sm:$0xff]
        %v391 = vld [vmem:[%s295 + $0x2c8] sm:$0xff]
        %v392 = vld [vmem:[%s295 + $0x2d0] sm:$0xff]
        %v393 = vld [vmem:[%s295 + $0x2d8] sm:$0xff]
        %v394 = vld [vmem:[%s295 + $0x2e0] sm:$0xff]
        %v395 = vld [vmem:[%s295 + $0x2e8] sm:$0xff]
        %v396 = vld [vmem:[%s295 + $0x2f0] sm:$0xff]
        %v397 = vld [vmem:[%s295 + $0x2f8] sm:$0xff]
        %v398 = vld [vmem:[%s295 + $0x300] sm:$0xff]
        %v399 = vld [vmem:[%s295 + $0x308] sm:$0xff]
        %v400 = vld [vmem:[%s295 + $0x310] sm:$0xff]
        %v401 = vld [vmem:[%s295 + $0x318] sm:$0xff]
        %v402 = vld [vmem:[%s295 + $0x320] sm:$0xff]
        %v403 = vld [vmem:[%s295 + $0x328] sm:$0xff]
        %v404 = vld [vmem:[%s295 + $0x330] sm:$0xff]
        %v405 = vld [vmem:[%s295 + $0x338] sm:$0xff]
        %v406 = vld [vmem:[%s295 + $0x340] sm:$0xff]
        %v407 = vld [vmem:[%s295 + $0x348] sm:$0xff]
        %v408 = vld [vmem:[%s295 + $0x350] sm:$0xff]
        %v409 = vld [vmem:[%s295 + $0x358] sm:$0xff]
        %v410 = vld [vmem:[%s295 + $0x360] sm:$0xff]
        %v411 = vld [vmem:[%s295 + $0x368] sm:$0xff]
        %v412 = vld [vmem:[%s295 + $0x370] sm:$0xff]
        %v413 = vld [vmem:[%s295 + $0x378] sm:$0xff]
        %v414 = vld [vmem:[%s295 + $0x380] sm:$0xff]
        %v415 = vld [vmem:[%s295 + $0x388] sm:$0xff]
        %v416 = vld [vmem:[%s295 + $0x390] sm:$0xff]
        %v417 = vld [vmem:[%s295 + $0x398] sm:$0xff]
        %v418 = vld [vmem:[%s295 + $0x3a0] sm:$0xff]
        %v419 = vld [vmem:[%s295 + $0x3a8] sm:$0xff]
        %v420 = vld [vmem:[%s295 + $0x3b0] sm:$0xff]
        %v421 = vld [vmem:[%s295 + $0x3b8] sm:$0xff]
        %v422 = vld [vmem:[%s295 + $0x3c0] sm:$0xff]
        %v423 = vld [vmem:[%s295 + $0x3c8] sm:$0xff]
        %v424 = vld [vmem:[%s295 + $0x3d0] sm:$0xff]
        %v425 = vld [vmem:[%s295 + $0x3d8] sm:$0xff]
        %v426 = vld [vmem:[%s295 + $0x3e0] sm:$0xff]
        %v427 = vld [vmem:[%s295 + $0x3e8] sm:$0xff]
        %v428 = vld [vmem:[%s295 + $0x3f0] sm:$0xff]
        %v429 = vld [vmem:[%s295 + $0x3f8] sm:$0xff]
        %v430 = vpack.c.bf16 %v303, %v302
        %v431 = vpack.c.bf16 %v305, %v304
        %v432 = vpack.c.bf16 %v307, %v306
        %v433 = vpack.c.bf16 %v309, %v308
        %v434 = vpack.c.bf16 %v311, %v310
        %v435 = vpack.c.bf16 %v313, %v312
        %v436 = vpack.c.bf16 %v315, %v314
        %v437 = vpack.c.bf16 %v317, %v316
        %v438 = vpack.c.bf16 %v319, %v318
        %v439 = vpack.c.bf16 %v321, %v320
        %v440 = vpack.c.bf16 %v323, %v322
        %v441 = vpack.c.bf16 %v325, %v324
        %v442 = vpack.c.bf16 %v327, %v326
        %v443 = vpack.c.bf16 %v329, %v328
        %v444 = vpack.c.bf16 %v331, %v330
        %v445 = vpack.c.bf16 %v333, %v332
        %v446 = vpack.c.bf16 %v335, %v334
        %v447 = vpack.c.bf16 %v337, %v336
        %v448 = vpack.c.bf16 %v339, %v338
        %v449 = vpack.c.bf16 %v341, %v340
        %v450 = vpack.c.bf16 %v343, %v342
        %v451 = vpack.c.bf16 %v345, %v344
        %v452 = vpack.c.bf16 %v347, %v346
        %v453 = vpack.c.bf16 %v349, %v348
        %v454 = vpack.c.bf16 %v351, %v350
        %v455 = vpack.c.bf16 %v353, %v352
        %v456 = vpack.c.bf16 %v355, %v354
        %v457 = vpack.c.bf16 %v357, %v356
        %v458 = vpack.c.bf16 %v359, %v358
        %v459 = vpack.c.bf16 %v361, %v360
        %v460 = vpack.c.bf16 %v363, %v362
        %v461 = vpack.c.bf16 %v365, %v364
        %v462 = vpack.c.bf16 %v367, %v366
        %v463 = vpack.c.bf16 %v369, %v368
        %v464 = vpack.c.bf16 %v371, %v370
        %v465 = vpack.c.bf16 %v373, %v372
        %v466 = vpack.c.bf16 %v375, %v374
        %v467 = vpack.c.bf16 %v377, %v376
        %v468 = vpack.c.bf16 %v379, %v378
        %v469 = vpack.c.bf16 %v381, %v380
        %v470 = vpack.c.bf16 %v383, %v382
        %v471 = vpack.c.bf16 %v385, %v384
        %v472 = vpack.c.bf16 %v387, %v386
        %v473 = vpack.c.bf16 %v389, %v388
        %v474 = vpack.c.bf16 %v391, %v390
        %v475 = vpack.c.bf16 %v393, %v392
        %v476 = vpack.c.bf16 %v395, %v394
        %v477 = vpack.c.bf16 %v397, %v396
        %v478 = vpack.c.bf16 %v399, %v398
        %v479 = vpack.c.bf16 %v401, %v400
        %v480 = vpack.c.bf16 %v403, %v402
        %v481 = vpack.c.bf16 %v405, %v404
        %v482 = vpack.c.bf16 %v407, %v406
        %v483 = vpack.c.bf16 %v409, %v408
        %v484 = vpack.c.bf16 %v411, %v410
        %v485 = vpack.c.bf16 %v413, %v412
        %v486 = vpack.c.bf16 %v415, %v414
        %v487 = vpack.c.bf16 %v417, %v416
        %v488 = vpack.c.bf16 %v419, %v418
        %v489 = vpack.c.bf16 %v421, %v420
        %v490 = vpack.c.bf16 %v423, %v422
        %v491 = vpack.c.bf16 %v425, %v424
        %v492 = vpack.c.bf16 %v427, %v426
        %v493 = vpack.c.bf16 %v429, %v428
        %v494 = vld [vmem:[%s1] sm:$0xf]
        %v495 = vld [vmem:[%s1 + $0x4] sm:$0xf]
        %v496 = vld [vmem:[%s1 + $0x8] sm:$0xf]
        %v497 = vld [vmem:[%s1 + $0xc] sm:$0xf]
        %v498 = vld [vmem:[%s2] sm:$0x1]
        %v500 = vlaneseq
        %v501 = vshrl.u32 %v500, 7
        %v502 = vsub.s32 0, %v501
        %v503 = vrot.slane %v498, %v502
        %v509 = vunpack.c.l.b16 %v494
        %v510 = vunpack.c.l.b16 %v495
        %v511 = vunpack.c.l.b16 %v496
        %v512 = vunpack.c.l.b16 %v497
        %v513 = vpack.c.b16 %v510, %v509
        %v514 = vpack.c.b16 %v512, %v511
        %vm517 = vcmask 261120
        %v519 = vsel %vm517, %v430, 0
        %v522 = vsel %vm517, %v431, 0
        %v525 = vsel %vm517, %v432, 0
        %v528 = vsel %vm517, %v433, 0
        %v531 = vsel %vm517, %v434, 0
        %v534 = vsel %vm517, %v435, 0
        %v537 = vsel %vm517, %v436, 0
        %v540 = vsel %vm517, %v437, 0
        %v543 = vsel %vm517, %v438, 0
        %v546 = vsel %vm517, %v439, 0
        %v549 = vsel %vm517, %v440, 0
        %v552 = vsel %vm517, %v441, 0
        %v555 = vsel %vm517, %v442, 0
        %v558 = vsel %vm517, %v443, 0
        %v561 = vsel %vm517, %v444, 0
        %v564 = vsel %vm517, %v445, 0
        %v567 = vsel %vm517, %v446, 0
        %v570 = vsel %vm517, %v447, 0
        %v573 = vsel %vm517, %v448, 0
        %v576 = vsel %vm517, %v449, 0
        %v579 = vsel %vm517, %v450, 0
        %v582 = vsel %vm517, %v451, 0
        %v585 = vsel %vm517, %v452, 0
        %v588 = vsel %vm517, %v453, 0
        %v591 = vsel %vm517, %v454, 0
        %v594 = vsel %vm517, %v455, 0
        %v597 = vsel %vm517, %v456, 0
        %v600 = vsel %vm517, %v457, 0
        %v603 = vsel %vm517, %v458, 0
        %v606 = vsel %vm517, %v459, 0
        %v609 = vsel %vm517, %v460, 0
        %v612 = vsel %vm517, %v461, 0
        %v615 = vsel %vm517, %v462, 0
        %v618 = vsel %vm517, %v463, 0
        %v621 = vsel %vm517, %v464, 0
        %v624 = vsel %vm517, %v465, 0
        %v627 = vsel %vm517, %v466, 0
        %v630 = vsel %vm517, %v467, 0
        %v633 = vsel %vm517, %v468, 0
        %v636 = vsel %vm517, %v469, 0
        %v639 = vsel %vm517, %v470, 0
        %v642 = vsel %vm517, %v471, 0
        %v645 = vsel %vm517, %v472, 0
        %v648 = vsel %vm517, %v473, 0
        %v651 = vsel %vm517, %v474, 0
        %v654 = vsel %vm517, %v475, 0
        %v657 = vsel %vm517, %v476, 0
        %v660 = vsel %vm517, %v477, 0
        %v663 = vsel %vm517, %v478, 0
        %v666 = vsel %vm517, %v479, 0
        %v669 = vsel %vm517, %v480, 0
        %v672 = vsel %vm517, %v481, 0
        %v675 = vsel %vm517, %v482, 0
        %v678 = vsel %vm517, %v483, 0
        %v681 = vsel %vm517, %v484, 0
        %v684 = vsel %vm517, %v485, 0
        %v687 = vsel %vm517, %v486, 0
        %v690 = vsel %vm517, %v487, 0
        %v693 = vsel %vm517, %v488, 0
        %v696 = vsel %vm517, %v489, 0
        %v699 = vsel %vm517, %v490, 0
        %v702 = vsel %vm517, %v491, 0
        %v705 = vsel %vm517, %v492, 0
        %v708 = vsel %vm517, %v493, 0
        %710 = vmatprep.subr.bf16.mxu0 0
        %711 = vmatpush1.bf16.msra.mxu0 %v513
        %712 = vmatprep.subr.bf16.mxu0 0
        %713 = vmatpush1.bf16.msra.mxu0 %v514
        %714 = vmatprep.subr.bf16.mxu0 0
        %715 = vmatpush1.bf16.msra.mxu0 0
        %716 = vmatprep.subr.bf16.mxu0 0
        %717 = vmatpush1.bf16.msra.mxu0 0
        %718 = vmatprep.subr.bf16.mxu0 0
        %719 = vmatpush1.bf16.msra.mxu0 0
        %720 = vmatprep.subr.bf16.mxu0 0
        %721 = vmatpush1.bf16.msra.mxu0 0
        %722 = vmatprep.subr.bf16.mxu0 0
        %723 = vmatpush1.bf16.msra.mxu0 0
        %724 = vmatprep.subr.bf16.mxu0 0
        %725 = vmatpush1.bf16.msra.mxu0 0
        %726 = vmatprep.subr.bf16.mxu0 0
        %727 = vmatpush1.bf16.msra.mxu0 0
        %728 = vmatprep.subr.bf16.mxu0 0
        %729 = vmatpush1.bf16.msra.mxu0 0
        %730 = vmatprep.subr.bf16.mxu0 0
        %731 = vmatpush1.bf16.msra.mxu0 0
        %732 = vmatprep.subr.bf16.mxu0 0
        %733 = vmatpush1.bf16.msra.mxu0 0
        %734 = vmatprep.subr.bf16.mxu0 0
        %735 = vmatpush1.bf16.msra.mxu0 0
        %736 = vmatprep.subr.bf16.mxu0 0
        %737 = vmatpush1.bf16.msra.mxu0 0
        %738 = vmatprep.subr.bf16.mxu0 0
        %739 = vmatpush1.bf16.msra.mxu0 0
        %740 = vmatprep.subr.bf16.mxu0 0
        %741 = vmatpush1.bf16.msra.mxu0 0
        %742 = vmatprep.mubr.bf16.mxu0 0
        %743 = vmatmul.mubr.bf16.gmra.mrb[0].mxu0 %v519
        %v744 = vpop.f32.mrb[0].mxu0
        %v745 = vadd.f32 %v503, %v744
        %v746 = vpop.f32.mrb[0].mxu0
        %v747 = vpop.f32.mrb[0].mxu0
        %v748 = vadd.f32 %v503, %v747
        %v749 = vpop.f32.mrb[0].mxu0
        %750 = vmatprep.mubr.bf16.mxu0 0
        %751 = vmatmul.mubr.bf16.gmra.mrb[0].mxu0 %v522
        %v752 = vpop.f32.mrb[0].mxu0
        %v753 = vadd.f32 %v503, %v752
        %v754 = vpop.f32.mrb[0].mxu0
        %v755 = vpop.f32.mrb[0].mxu0
        %v756 = vadd.f32 %v503, %v755
        %v757 = vpop.f32.mrb[0].mxu0
        %758 = vmatprep.mubr.bf16.mxu0 0
        %759 = vmatmul.mubr.bf16.gmra.mrb[0].mxu0 %v525
        %v760 = vpop.f32.mrb[0].mxu0
        %v761 = vadd.f32 %v503, %v760
        %v762 = vpop.f32.mrb[0].mxu0
        %v763 = vpop.f32.mrb[0].mxu0
        %v764 = vadd.f32 %v503, %v763
        %v765 = vpop.f32.mrb[0].mxu0
        %766 = vmatprep.mubr.bf16.mxu0 0
        %767 = vmatmul.mubr.bf16.gmra.mrb[0].mxu0 %v528
        %v768 = vpop.f32.mrb[0].mxu0
        %v769 = vadd.f32 %v503, %v768
        %v770 = vpop.f32.mrb[0].mxu0
        %v771 = vpop.f32.mrb[0].mxu0
        %v772 = vadd.f32 %v503, %v771
        %v773 = vpop.f32.mrb[0].mxu0
        %774 = vmatprep.mubr.bf16.mxu0 0
        %775 = vmatmul.mubr.bf16.gmra.mrb[0].mxu0 %v531
        %v776 = vpop.f32.mrb[0].mxu0
        %v777 = vadd.f32 %v503, %v776
        %v778 = vpop.f32.mrb[0].mxu0
        %v779 = vpop.f32.mrb[0].mxu0
        %v780 = vadd.f32 %v503, %v779
        %v781 = vpop.f32.mrb[0].mxu0
        %782 = vmatprep.mubr.bf16.mxu0 0
        %783 = vmatmul.mubr.bf16.gmra.mrb[0].mxu0 %v534
        %v784 = vpop.f32.mrb[0].mxu0
        %v785 = vadd.f32 %v503, %v784
        %v786 = vpop.f32.mrb[0].mxu0
        %v787 = vpop.f32.mrb[0].mxu0
        %v788 = vadd.f32 %v503, %v787
        %v789 = vpop.f32.mrb[0].mxu0
        %790 = vmatprep.mubr.bf16.mxu0 0
        %791 = vmatmul.mubr.bf16.gmra.mrb[0].mxu0 %v537
        %v792 = vpop.f32.mrb[0].mxu0
        %v793 = vadd.f32 %v503, %v792
        %v794 = vpop.f32.mrb[0].mxu0
        %v795 = vpop.f32.mrb[0].mxu0
        %v796 = vadd.f32 %v503, %v795
        %v797 = vpop.f32.mrb[0].mxu0
        %798 = vmatprep.mubr.bf16.mxu0 0
        %799 = vmatmul.mubr.bf16.gmra.mrb[0].mxu0 %v540
        %v800 = vpop.f32.mrb[0].mxu0
        %v801 = vadd.f32 %v503, %v800
        %v802 = vpop.f32.mrb[0].mxu0
        %v803 = vpop.f32.mrb[0].mxu0
        %v804 = vadd.f32 %v503, %v803
        %v805 = vpop.f32.mrb[0].mxu0
        %806 = vmatprep.mubr.bf16.mxu0 0
        %807 = vmatmul.mubr.bf16.gmra.mrb[0].mxu0 %v543
        %v808 = vpop.f32.mrb[0].mxu0
        %v809 = vadd.f32 %v503, %v808
        %v810 = vpop.f32.mrb[0].mxu0
        %v811 = vpop.f32.mrb[0].mxu0
        %v812 = vadd.f32 %v503, %v811
        %v813 = vpop.f32.mrb[0].mxu0
        %814 = vmatprep.mubr.bf16.mxu0 0
        %815 = vmatmul.mubr.bf16.gmra.mrb[0].mxu0 %v546
        %v816 = vpop.f32.mrb[0].mxu0
        %v817 = vadd.f32 %v503, %v816
        %v818 = vpop.f32.mrb[0].mxu0
        %v819 = vpop.f32.mrb[0].mxu0
        %v820 = vadd.f32 %v503, %v819
        %v821 = vpop.f32.mrb[0].mxu0
        %822 = vmatprep.mubr.bf16.mxu0 0
        %823 = vmatmul.mubr.bf16.gmra.mrb[0].mxu0 %v549
        %v824 = vpop.f32.mrb[0].mxu0
        %v825 = vadd.f32 %v503, %v824
        %v826 = vpop.f32.mrb[0].mxu0
        %v827 = vpop.f32.mrb[0].mxu0
        %v828 = vadd.f32 %v503, %v827
        %v829 = vpop.f32.mrb[0].mxu0
        %830 = vmatprep.mubr.bf16.mxu0 0
        %831 = vmatmul.mubr.bf16.gmra.mrb[0].mxu0 %v552
        %v832 = vpop.f32.mrb[0].mxu0
        %v833 = vadd.f32 %v503, %v832
        %v834 = vpop.f32.mrb[0].mxu0
        %v835 = vpop.f32.mrb[0].mxu0
        %v836 = vadd.f32 %v503, %v835
        %v837 = vpop.f32.mrb[0].mxu0
        %838 = vmatprep.mubr.bf16.mxu0 0
        %839 = vmatmul.mubr.bf16.gmra.mrb[0].mxu0 %v555
        %v840 = vpop.f32.mrb[0].mxu0
        %v841 = vadd.f32 %v503, %v840
        %v842 = vpop.f32.mrb[0].mxu0
        %v843 = vpop.f32.mrb[0].mxu0
        %v844 = vadd.f32 %v503, %v843
        %v845 = vpop.f32.mrb[0].mxu0
        %846 = vmatprep.mubr.bf16.mxu0 0
        %847 = vmatmul.mubr.bf16.gmra.mrb[0].mxu0 %v558
        %v848 = vpop.f32.mrb[0].mxu0
        %v849 = vadd.f32 %v503, %v848
        %v850 = vpop.f32.mrb[0].mxu0
        %v851 = vpop.f32.mrb[0].mxu0
        %v852 = vadd.f32 %v503, %v851
        %v853 = vpop.f32.mrb[0].mxu0
        %854 = vmatprep.mubr.bf16.mxu0 0
        %855 = vmatmul.mubr.bf16.gmra.mrb[0].mxu0 %v561
        %v856 = vpop.f32.mrb[0].mxu0
        %v857 = vadd.f32 %v503, %v856
        %v858 = vpop.f32.mrb[0].mxu0
        %v859 = vpop.f32.mrb[0].mxu0
        %v860 = vadd.f32 %v503, %v859
        %v861 = vpop.f32.mrb[0].mxu0
        %862 = vmatprep.mubr.bf16.mxu0 0
        %863 = vmatmul.mubr.bf16.gmra.mrb[0].mxu0 %v564
        %v864 = vpop.f32.mrb[0].mxu0
        %v865 = vadd.f32 %v503, %v864
        %v866 = vpop.f32.mrb[0].mxu0
        %v867 = vpop.f32.mrb[0].mxu0
        %v868 = vadd.f32 %v503, %v867
        %v869 = vpop.f32.mrb[0].mxu0
        %870 = vmatprep.mubr.bf16.mxu0 0
        %871 = vmatmul.mubr.bf16.gmra.mrb[0].mxu0 %v567
        %v872 = vpop.f32.mrb[0].mxu0
        %v873 = vadd.f32 %v503, %v872
        %v874 = vpop.f32.mrb[0].mxu0
        %v875 = vpop.f32.mrb[0].mxu0
        %v876 = vadd.f32 %v503, %v875
        %v877 = vpop.f32.mrb[0].mxu0
        %878 = vmatprep.mubr.bf16.mxu0 0
        %879 = vmatmul.mubr.bf16.gmra.mrb[0].mxu0 %v570
        %v880 = vpop.f32.mrb[0].mxu0
        %v881 = vadd.f32 %v503, %v880
        %v882 = vpop.f32.mrb[0].mxu0
        %v883 = vpop.f32.mrb[0].mxu0
        %v884 = vadd.f32 %v503, %v883
        %v885 = vpop.f32.mrb[0].mxu0
        %886 = vmatprep.mubr.bf16.mxu0 0
        %887 = vmatmul.mubr.bf16.gmra.mrb[0].mxu0 %v573
        %v888 = vpop.f32.mrb[0].mxu0
        %v889 = vadd.f32 %v503, %v888
        %v890 = vpop.f32.mrb[0].mxu0
        %v891 = vpop.f32.mrb[0].mxu0
        %v892 = vadd.f32 %v503, %v891
        %v893 = vpop.f32.mrb[0].mxu0
        %894 = vmatprep.mubr.bf16.mxu0 0
        %895 = vmatmul.mubr.bf16.gmra.mrb[0].mxu0 %v576
        %v896 = vpop.f32.mrb[0].mxu0
        %v897 = vadd.f32 %v503, %v896
        %v898 = vpop.f32.mrb[0].mxu0
        %v899 = vpop.f32.mrb[0].mxu0
        %v900 = vadd.f32 %v503, %v899
        %v901 = vpop.f32.mrb[0].mxu0
        %902 = vmatprep.mubr.bf16.mxu0 0
        %903 = vmatmul.mubr.bf16.gmra.mrb[0].mxu0 %v579
        %v904 = vpop.f32.mrb[0].mxu0
        %v905 = vadd.f32 %v503, %v904
        %v906 = vpop.f32.mrb[0].mxu0
        %v907 = vpop.f32.mrb[0].mxu0
        %v908 = vadd.f32 %v503, %v907
        %v909 = vpop.f32.mrb[0].mxu0
        %910 = vmatprep.mubr.bf16.mxu0 0
        %911 = vmatmul.mubr.bf16.gmra.mrb[0].mxu0 %v582
        %v912 = vpop.f32.mrb[0].mxu0
        %v913 = vadd.f32 %v503, %v912
        %v914 = vpop.f32.mrb[0].mxu0
        %v915 = vpop.f32.mrb[0].mxu0
        %v916 = vadd.f32 %v503, %v915
        %v917 = vpop.f32.mrb[0].mxu0
        %918 = vmatprep.mubr.bf16.mxu0 0
        %919 = vmatmul.mubr.bf16.gmra.mrb[0].mxu0 %v585
        %v920 = vpop.f32.mrb[0].mxu0
        %v921 = vadd.f32 %v503, %v920
        %v922 = vpop.f32.mrb[0].mxu0
        %v923 = vpop.f32.mrb[0].mxu0
        %v924 = vadd.f32 %v503, %v923
        %v925 = vpop.f32.mrb[0].mxu0
        %926 = vmatprep.mubr.bf16.mxu0 0
        %927 = vmatmul.mubr.bf16.gmra.mrb[0].mxu0 %v588
        %v928 = vpop.f32.mrb[0].mxu0
        %v929 = vadd.f32 %v503, %v928
        %v930 = vpop.f32.mrb[0].mxu0
        %v931 = vpop.f32.mrb[0].mxu0
        %v932 = vadd.f32 %v503, %v931
        %v933 = vpop.f32.mrb[0].mxu0
        %934 = vmatprep.mubr.bf16.mxu0 0
        %935 = vmatmul.mubr.bf16.gmra.mrb[0].mxu0 %v591
        %v936 = vpop.f32.mrb[0].mxu0
        %v937 = vadd.f32 %v503, %v936
        %v938 = vpop.f32.mrb[0].mxu0
        %v939 = vpop.f32.mrb[0].mxu0
        %v940 = vadd.f32 %v503, %v939
        %v941 = vpop.f32.mrb[0].mxu0
        %942 = vmatprep.mubr.bf16.mxu0 0
        %943 = vmatmul.mubr.bf16.gmra.mrb[0].mxu0 %v594
        %v944 = vpop.f32.mrb[0].mxu0
        %v945 = vadd.f32 %v503, %v944
        %v946 = vpop.f32.mrb[0].mxu0
        %v947 = vpop.f32.mrb[0].mxu0
        %v948 = vadd.f32 %v503, %v947
        %v949 = vpop.f32.mrb[0].mxu0
        %950 = vmatprep.mubr.bf16.mxu0 0
        %951 = vmatmul.mubr.bf16.gmra.mrb[0].mxu0 %v597
        %v952 = vpop.f32.mrb[0].mxu0
        %v953 = vadd.f32 %v503, %v952
        %v954 = vpop.f32.mrb[0].mxu0
        %v955 = vpop.f32.mrb[0].mxu0
        %v956 = vadd.f32 %v503, %v955
        %v957 = vpop.f32.mrb[0].mxu0
        %958 = vmatprep.mubr.bf16.mxu0 0
        %959 = vmatmul.mubr.bf16.gmra.mrb[0].mxu0 %v600
        %v960 = vpop.f32.mrb[0].mxu0
        %v961 = vadd.f32 %v503, %v960
        %v962 = vpop.f32.mrb[0].mxu0
        %v963 = vpop.f32.mrb[0].mxu0
        %v964 = vadd.f32 %v503, %v963
        %v965 = vpop.f32.mrb[0].mxu0
        %966 = vmatprep.mubr.bf16.mxu0 0
        %967 = vmatmul.mubr.bf16.gmra.mrb[0].mxu0 %v603
        %v968 = vpop.f32.mrb[0].mxu0
        %v969 = vadd.f32 %v503, %v968
        %v970 = vpop.f32.mrb[0].mxu0
        %v971 = vpop.f32.mrb[0].mxu0
        %v972 = vadd.f32 %v503, %v971
        %v973 = vpop.f32.mrb[0].mxu0
        %974 = vmatprep.mubr.bf16.mxu0 0
        %975 = vmatmul.mubr.bf16.gmra.mrb[0].mxu0 %v606
        %v976 = vpop.f32.mrb[0].mxu0
        %v977 = vadd.f32 %v503, %v976
        %v978 = vpop.f32.mrb[0].mxu0
        %v979 = vpop.f32.mrb[0].mxu0
        %v980 = vadd.f32 %v503, %v979
        %v981 = vpop.f32.mrb[0].mxu0
        %982 = vmatprep.mubr.bf16.mxu0 0
        %983 = vmatmul.mubr.bf16.gmra.mrb[0].mxu0 %v609
        %v984 = vpop.f32.mrb[0].mxu0
        %v985 = vadd.f32 %v503, %v984
        %v986 = vpop.f32.mrb[0].mxu0
        %v987 = vpop.f32.mrb[0].mxu0
        %v988 = vadd.f32 %v503, %v987
        %v989 = vpop.f32.mrb[0].mxu0
        %990 = vmatprep.mubr.bf16.mxu0 0
        %991 = vmatmul.mubr.bf16.gmra.mrb[0].mxu0 %v612
        %v992 = vpop.f32.mrb[0].mxu0
        %v993 = vadd.f32 %v503, %v992
        %v994 = vpop.f32.mrb[0].mxu0
        %v995 = vpop.f32.mrb[0].mxu0
        %v996 = vadd.f32 %v503, %v995
        %v997 = vpop.f32.mrb[0].mxu0
        %998 = vmatprep.mubr.bf16.mxu0 0
        %999 = vmatmul.mubr.bf16.gmra.mrb[0].mxu0 %v615
        %v1000 = vpop.f32.mrb[0].mxu0
        %v1001 = vadd.f32 %v503, %v1000
        %v1002 = vpop.f32.mrb[0].mxu0
        %v1003 = vpop.f32.mrb[0].mxu0
        %v1004 = vadd.f32 %v503, %v1003
        %v1005 = vpop.f32.mrb[0].mxu0
        %1006 = vmatprep.mubr.bf16.mxu0 0
        %1007 = vmatmul.mubr.bf16.gmra.mrb[0].mxu0 %v618
        %v1008 = vpop.f32.mrb[0].mxu0
        %v1009 = vadd.f32 %v503, %v1008
        %v1010 = vpop.f32.mrb[0].mxu0
        %v1011 = vpop.f32.mrb[0].mxu0
        %v1012 = vadd.f32 %v503, %v1011
        %v1013 = vpop.f32.mrb[0].mxu0
        %1014 = vmatprep.mubr.bf16.mxu0 0
        %1015 = vmatmul.mubr.bf16.gmra.mrb[0].mxu0 %v621
        %v1016 = vpop.f32.mrb[0].mxu0
        %v1017 = vadd.f32 %v503, %v1016
        %v1018 = vpop.f32.mrb[0].mxu0
        %v1019 = vpop.f32.mrb[0].mxu0
        %v1020 = vadd.f32 %v503, %v1019
        %v1021 = vpop.f32.mrb[0].mxu0
        %1022 = vmatprep.mubr.bf16.mxu0 0
        %1023 = vmatmul.mubr.bf16.gmra.mrb[0].mxu0 %v624
        %v1024 = vpop.f32.mrb[0].mxu0
        %v1025 = vadd.f32 %v503, %v1024
        %v1026 = vpop.f32.mrb[0].mxu0
        %v1027 = vpop.f32.mrb[0].mxu0
        %v1028 = vadd.f32 %v503, %v1027
        %v1029 = vpop.f32.mrb[0].mxu0
        %1030 = vmatprep.mubr.bf16.mxu0 0
        %1031 = vmatmul.mubr.bf16.gmra.mrb[0].mxu0 %v627
        %v1032 = vpop.f32.mrb[0].mxu0
        %v1033 = vadd.f32 %v503, %v1032
        %v1034 = vpop.f32.mrb[0].mxu0
        %v1035 = vpop.f32.mrb[0].mxu0
        %v1036 = vadd.f32 %v503, %v1035
        %v1037 = vpop.f32.mrb[0].mxu0
        %1038 = vmatprep.mubr.bf16.mxu0 0
        %1039 = vmatmul.mubr.bf16.gmra.mrb[0].mxu0 %v630
        %v1040 = vpop.f32.mrb[0].mxu0
        %v1041 = vadd.f32 %v503, %v1040
        %v1042 = vpop.f32.mrb[0].mxu0
        %v1043 = vpop.f32.mrb[0].mxu0
        %v1044 = vadd.f32 %v503, %v1043
        %v1045 = vpop.f32.mrb[0].mxu0
        %1046 = vmatprep.mubr.bf16.mxu0 0
        %1047 = vmatmul.mubr.bf16.gmra.mrb[0].mxu0 %v633
        %v1048 = vpop.f32.mrb[0].mxu0
        %v1049 = vadd.f32 %v503, %v1048
        %v1050 = vpop.f32.mrb[0].mxu0
        %v1051 = vpop.f32.mrb[0].mxu0
        %v1052 = vadd.f32 %v503, %v1051
        %v1053 = vpop.f32.mrb[0].mxu0
        %1054 = vmatprep.mubr.bf16.mxu0 0
        %1055 = vmatmul.mubr.bf16.gmra.mrb[0].mxu0 %v636
        %v1056 = vpop.f32.mrb[0].mxu0
        %v1057 = vadd.f32 %v503, %v1056
        %v1058 = vpop.f32.mrb[0].mxu0
        %v1059 = vpop.f32.mrb[0].mxu0
        %v1060 = vadd.f32 %v503, %v1059
        %v1061 = vpop.f32.mrb[0].mxu0
        %1062 = vmatprep.mubr.bf16.mxu0 0
        %1063 = vmatmul.mubr.bf16.gmra.mrb[0].mxu0 %v639
        %v1064 = vpop.f32.mrb[0].mxu0
        %v1065 = vadd.f32 %v503, %v1064
        %v1066 = vpop.f32.mrb[0].mxu0
        %v1067 = vpop.f32.mrb[0].mxu0
        %v1068 = vadd.f32 %v503, %v1067
        %v1069 = vpop.f32.mrb[0].mxu0
        %1070 = vmatprep.mubr.bf16.mxu0 0
        %1071 = vmatmul.mubr.bf16.gmra.mrb[0].mxu0 %v642
        %v1072 = vpop.f32.mrb[0].mxu0
        %v1073 = vadd.f32 %v503, %v1072
        %v1074 = vpop.f32.mrb[0].mxu0
        %v1075 = vpop.f32.mrb[0].mxu0
        %v1076 = vadd.f32 %v503, %v1075
        %v1077 = vpop.f32.mrb[0].mxu0
        %1078 = vmatprep.mubr.bf16.mxu0 0
        %1079 = vmatmul.mubr.bf16.gmra.mrb[0].mxu0 %v645
        %v1080 = vpop.f32.mrb[0].mxu0
        %v1081 = vadd.f32 %v503, %v1080
        %v1082 = vpop.f32.mrb[0].mxu0
        %v1083 = vpop.f32.mrb[0].mxu0
        %v1084 = vadd.f32 %v503, %v1083
        %v1085 = vpop.f32.mrb[0].mxu0
        %1086 = vmatprep.mubr.bf16.mxu0 0
        %1087 = vmatmul.mubr.bf16.gmra.mrb[0].mxu0 %v648
        %v1088 = vpop.f32.mrb[0].mxu0
        %v1089 = vadd.f32 %v503, %v1088
        %v1090 = vpop.f32.mrb[0].mxu0
        %v1091 = vpop.f32.mrb[0].mxu0
        %v1092 = vadd.f32 %v503, %v1091
        %v1093 = vpop.f32.mrb[0].mxu0
        %1094 = vmatprep.mubr.bf16.mxu0 0
        %1095 = vmatmul.mubr.bf16.gmra.mrb[0].mxu0 %v651
        %v1096 = vpop.f32.mrb[0].mxu0
        %v1097 = vadd.f32 %v503, %v1096
        %v1098 = vpop.f32.mrb[0].mxu0
        %v1099 = vpop.f32.mrb[0].mxu0
        %v1100 = vadd.f32 %v503, %v1099
        %v1101 = vpop.f32.mrb[0].mxu0
        %1102 = vmatprep.mubr.bf16.mxu0 0
        %1103 = vmatmul.mubr.bf16.gmra.mrb[0].mxu0 %v654
        %v1104 = vpop.f32.mrb[0].mxu0
        %v1105 = vadd.f32 %v503, %v1104
        %v1106 = vpop.f32.mrb[0].mxu0
        %v1107 = vpop.f32.mrb[0].mxu0
        %v1108 = vadd.f32 %v503, %v1107
        %v1109 = vpop.f32.mrb[0].mxu0
        %1110 = vmatprep.mubr.bf16.mxu0 0
        %1111 = vmatmul.mubr.bf16.gmra.mrb[0].mxu0 %v657
        %v1112 = vpop.f32.mrb[0].mxu0
        %v1113 = vadd.f32 %v503, %v1112
        %v1114 = vpop.f32.mrb[0].mxu0
        %v1115 = vpop.f32.mrb[0].mxu0
        %v1116 = vadd.f32 %v503, %v1115
        %v1117 = vpop.f32.mrb[0].mxu0
        %1118 = vmatprep.mubr.bf16.mxu0 0
        %1119 = vmatmul.mubr.bf16.gmra.mrb[0].mxu0 %v660
        %v1120 = vpop.f32.mrb[0].mxu0
        %v1121 = vadd.f32 %v503, %v1120
        %v1122 = vpop.f32.mrb[0].mxu0
        %v1123 = vpop.f32.mrb[0].mxu0
        %v1124 = vadd.f32 %v503, %v1123
        %v1125 = vpop.f32.mrb[0].mxu0
        %1126 = vmatprep.mubr.bf16.mxu0 0
        %1127 = vmatmul.mubr.bf16.gmra.mrb[0].mxu0 %v663
        %v1128 = vpop.f32.mrb[0].mxu0
        %v1129 = vadd.f32 %v503, %v1128
        %v1130 = vpop.f32.mrb[0].mxu0
        %v1131 = vpop.f32.mrb[0].mxu0
        %v1132 = vadd.f32 %v503, %v1131
        %v1133 = vpop.f32.mrb[0].mxu0
        %1134 = vmatprep.mubr.bf16.mxu0 0
        %1135 = vmatmul.mubr.bf16.gmra.mrb[0].mxu0 %v666
        %v1136 = vpop.f32.mrb[0].mxu0
        %v1137 = vadd.f32 %v503, %v1136
        %v1138 = vpop.f32.mrb[0].mxu0
        %v1139 = vpop.f32.mrb[0].mxu0
        %v1140 = vadd.f32 %v503, %v1139
        %v1141 = vpop.f32.mrb[0].mxu0
        %1142 = vmatprep.mubr.bf16.mxu0 0
        %1143 = vmatmul.mubr.bf16.gmra.mrb[0].mxu0 %v669
        %v1144 = vpop.f32.mrb[0].mxu0
        %v1145 = vadd.f32 %v503, %v1144
        %v1146 = vpop.f32.mrb[0].mxu0
        %v1147 = vpop.f32.mrb[0].mxu0
        %v1148 = vadd.f32 %v503, %v1147
        %v1149 = vpop.f32.mrb[0].mxu0
        %1150 = vmatprep.mubr.bf16.mxu0 0
        %1151 = vmatmul.mubr.bf16.gmra.mrb[0].mxu0 %v672
        %v1152 = vpop.f32.mrb[0].mxu0
        %v1153 = vadd.f32 %v503, %v1152
        %v1154 = vpop.f32.mrb[0].mxu0
        %v1155 = vpop.f32.mrb[0].mxu0
        %v1156 = vadd.f32 %v503, %v1155
        %v1157 = vpop.f32.mrb[0].mxu0
        %1158 = vmatprep.mubr.bf16.mxu0 0
        %1159 = vmatmul.mubr.bf16.gmra.mrb[0].mxu0 %v675
        %v1160 = vpop.f32.mrb[0].mxu0
        %v1161 = vadd.f32 %v503, %v1160
        %v1162 = vpop.f32.mrb[0].mxu0
        %v1163 = vpop.f32.mrb[0].mxu0
        %v1164 = vadd.f32 %v503, %v1163
        %v1165 = vpop.f32.mrb[0].mxu0
        %1166 = vmatprep.mubr.bf16.mxu0 0
        %1167 = vmatmul.mubr.bf16.gmra.mrb[0].mxu0 %v678
        %v1168 = vpop.f32.mrb[0].mxu0
        %v1169 = vadd.f32 %v503, %v1168
        %v1170 = vpop.f32.mrb[0].mxu0
        %v1171 = vpop.f32.mrb[0].mxu0
        %v1172 = vadd.f32 %v503, %v1171
        %v1173 = vpop.f32.mrb[0].mxu0
        %1174 = vmatprep.mubr.bf16.mxu0 0
        %1175 = vmatmul.mubr.bf16.gmra.mrb[0].mxu0 %v681
        %v1176 = vpop.f32.mrb[0].mxu0
        %v1177 = vadd.f32 %v503, %v1176
        %v1178 = vpop.f32.mrb[0].mxu0
        %v1179 = vpop.f32.mrb[0].mxu0
        %v1180 = vadd.f32 %v503, %v1179
        %v1181 = vpop.f32.mrb[0].mxu0
        %1182 = vmatprep.mubr.bf16.mxu0 0
        %1183 = vmatmul.mubr.bf16.gmra.mrb[0].mxu0 %v684
        %v1184 = vpop.f32.mrb[0].mxu0
        %v1185 = vadd.f32 %v503, %v1184
        %v1186 = vpop.f32.mrb[0].mxu0
        %v1187 = vpop.f32.mrb[0].mxu0
        %v1188 = vadd.f32 %v503, %v1187
        %v1189 = vpop.f32.mrb[0].mxu0
        %1190 = vmatprep.mubr.bf16.mxu0 0
        %1191 = vmatmul.mubr.bf16.gmra.mrb[0].mxu0 %v687
        %v1192 = vpop.f32.mrb[0].mxu0
        %v1193 = vadd.f32 %v503, %v1192
        %v1194 = vpop.f32.mrb[0].mxu0
        %v1195 = vpop.f32.mrb[0].mxu0
        %v1196 = vadd.f32 %v503, %v1195
        %v1197 = vpop.f32.mrb[0].mxu0
        %1198 = vmatprep.mubr.bf16.mxu0 0
        %1199 = vmatmul.mubr.bf16.gmra.mrb[0].mxu0 %v690
        %v1200 = vpop.f32.mrb[0].mxu0
        %v1201 = vadd.f32 %v503, %v1200
        %v1202 = vpop.f32.mrb[0].mxu0
        %v1203 = vpop.f32.mrb[0].mxu0
        %v1204 = vadd.f32 %v503, %v1203
        %v1205 = vpop.f32.mrb[0].mxu0
        %1206 = vmatprep.mubr.bf16.mxu0 0
        %1207 = vmatmul.mubr.bf16.gmra.mrb[0].mxu0 %v693
        %v1208 = vpop.f32.mrb[0].mxu0
        %v1209 = vadd.f32 %v503, %v1208
        %v1210 = vpop.f32.mrb[0].mxu0
        %v1211 = vpop.f32.mrb[0].mxu0
        %v1212 = vadd.f32 %v503, %v1211
        %v1213 = vpop.f32.mrb[0].mxu0
        %1214 = vmatprep.mubr.bf16.mxu0 0
        %1215 = vmatmul.mubr.bf16.gmra.mrb[0].mxu0 %v696
        %v1216 = vpop.f32.mrb[0].mxu0
        %v1217 = vadd.f32 %v503, %v1216
        %v1218 = vpop.f32.mrb[0].mxu0
        %v1219 = vpop.f32.mrb[0].mxu0
        %v1220 = vadd.f32 %v503, %v1219
        %v1221 = vpop.f32.mrb[0].mxu0
        %1222 = vmatprep.mubr.bf16.mxu0 0
        %1223 = vmatmul.mubr.bf16.gmra.mrb[0].mxu0 %v699
        %v1224 = vpop.f32.mrb[0].mxu0
        %v1225 = vadd.f32 %v503, %v1224
        %v1226 = vpop.f32.mrb[0].mxu0
        %v1227 = vpop.f32.mrb[0].mxu0
        %v1228 = vadd.f32 %v503, %v1227
        %v1229 = vpop.f32.mrb[0].mxu0
        %1230 = vmatprep.mubr.bf16.mxu0 0
        %1231 = vmatmul.mubr.bf16.gmra.mrb[0].mxu0 %v702
        %v1232 = vpop.f32.mrb[0].mxu0
        %v1233 = vadd.f32 %v503, %v1232
        %v1234 = vpop.f32.mrb[0].mxu0
        %v1235 = vpop.f32.mrb[0].mxu0
        %v1236 = vadd.f32 %v503, %v1235
        %v1237 = vpop.f32.mrb[0].mxu0
        %1238 = vmatprep.mubr.bf16.mxu0 0
        %1239 = vmatmul.mubr.bf16.gmra.mrb[0].mxu0 %v705
        %v1240 = vpop.f32.mrb[0].mxu0
        %v1241 = vadd.f32 %v503, %v1240
        %v1242 = vpop.f32.mrb[0].mxu0
        %v1243 = vpop.f32.mrb[0].mxu0
        %v1244 = vadd.f32 %v503, %v1243
        %v1245 = vpop.f32.mrb[0].mxu0
        %1246 = vmatprep.mubr.bf16.mxu0 0
        %1247 = vmatmul.mubr.bf16.gmra.mrb[0].mxu0 %v708
        %v1248 = vpop.f32.mrb[0].mxu0
        %v1249 = vadd.f32 %v503, %v1248
        %v1250 = vpop.f32.mrb[0].mxu0
        %v1251 = vpop.f32.mrb[0].mxu0
        %v1252 = vadd.f32 %v503, %v1251
        %v1253 = vpop.f32.mrb[0].mxu0
        %1254 = vdwg.mxu0
        %v1255 = vtanh.pop %v745
        %v1256 = vtanh.pop %v748
        %v1257 = vtanh.pop %v753
        %v1258 = vtanh.pop %v756
        %v1259 = vtanh.pop %v761
        %v1260 = vtanh.pop %v764
        %v1261 = vtanh.pop %v769
        %v1262 = vtanh.pop %v772
        %v1263 = vtanh.pop %v777
        %v1264 = vtanh.pop %v780
        %v1265 = vtanh.pop %v785
        %v1266 = vtanh.pop %v788
        %v1267 = vtanh.pop %v793
        %v1268 = vtanh.pop %v796
        %v1269 = vtanh.pop %v801
        %v1270 = vtanh.pop %v804
        %v1271 = vtanh.pop %v809
        %v1272 = vtanh.pop %v812
        %v1273 = vtanh.pop %v817
        %v1274 = vtanh.pop %v820
        %v1275 = vtanh.pop %v825
        %v1276 = vtanh.pop %v828
        %v1277 = vtanh.pop %v833
        %v1278 = vtanh.pop %v836
        %v1279 = vtanh.pop %v841
        %v1280 = vtanh.pop %v844
        %v1281 = vtanh.pop %v849
        %v1282 = vtanh.pop %v852
        %v1283 = vtanh.pop %v857
        %v1284 = vtanh.pop %v860
        %v1285 = vtanh.pop %v865
        %v1286 = vtanh.pop %v868
        %v1287 = vtanh.pop %v873
        %v1288 = vtanh.pop %v876
        %v1289 = vtanh.pop %v881
        %v1290 = vtanh.pop %v884
        %v1291 = vtanh.pop %v889
        %v1292 = vtanh.pop %v892
        %v1293 = vtanh.pop %v897
        %v1294 = vtanh.pop %v900
        %v1295 = vtanh.pop %v905
        %v1296 = vtanh.pop %v908
        %v1297 = vtanh.pop %v913
        %v1298 = vtanh.pop %v916
        %v1299 = vtanh.pop %v921
        %v1300 = vtanh.pop %v924
        %v1301 = vtanh.pop %v929
        %v1302 = vtanh.pop %v932
        %v1303 = vtanh.pop %v937
        %v1304 = vtanh.pop %v940
        %v1305 = vtanh.pop %v945
        %v1306 = vtanh.pop %v948
        %v1307 = vtanh.pop %v953
        %v1308 = vtanh.pop %v956
        %v1309 = vtanh.pop %v961
        %v1310 = vtanh.pop %v964
        %v1311 = vtanh.pop %v969
        %v1312 = vtanh.pop %v972
        %v1313 = vtanh.pop %v977
        %v1314 = vtanh.pop %v980
        %v1315 = vtanh.pop %v985
        %v1316 = vtanh.pop %v988
        %v1317 = vtanh.pop %v993
        %v1318 = vtanh.pop %v996
        %v1319 = vtanh.pop %v1001
        %v1320 = vtanh.pop %v1004
        %v1321 = vtanh.pop %v1009
        %v1322 = vtanh.pop %v1012
        %v1323 = vtanh.pop %v1017
        %v1324 = vtanh.pop %v1020
        %v1325 = vtanh.pop %v1025
        %v1326 = vtanh.pop %v1028
        %v1327 = vtanh.pop %v1033
        %v1328 = vtanh.pop %v1036
        %v1329 = vtanh.pop %v1041
        %v1330 = vtanh.pop %v1044
        %v1331 = vtanh.pop %v1049
        %v1332 = vtanh.pop %v1052
        %v1333 = vtanh.pop %v1057
        %v1334 = vtanh.pop %v1060
        %v1335 = vtanh.pop %v1065
        %v1336 = vtanh.pop %v1068
        %v1337 = vtanh.pop %v1073
        %v1338 = vtanh.pop %v1076
        %v1339 = vtanh.pop %v1081
        %v1340 = vtanh.pop %v1084
        %v1341 = vtanh.pop %v1089
        %v1342 = vtanh.pop %v1092
        %v1343 = vtanh.pop %v1097
        %v1344 = vtanh.pop %v1100
        %v1345 = vtanh.pop %v1105
        %v1346 = vtanh.pop %v1108
        %v1347 = vtanh.pop %v1113
        %v1348 = vtanh.pop %v1116
        %v1349 = vtanh.pop %v1121
        %v1350 = vtanh.pop %v1124
        %v1351 = vtanh.pop %v1129
        %v1352 = vtanh.pop %v1132
        %v1353 = vtanh.pop %v1137
        %v1354 = vtanh.pop %v1140
        %v1355 = vtanh.pop %v1145
        %v1356 = vtanh.pop %v1148
        %v1357 = vtanh.pop %v1153
        %v1358 = vtanh.pop %v1156
        %v1359 = vtanh.pop %v1161
        %v1360 = vtanh.pop %v1164
        %v1361 = vtanh.pop %v1169
        %v1362 = vtanh.pop %v1172
        %v1363 = vtanh.pop %v1177
        %v1364 = vtanh.pop %v1180
        %v1365 = vtanh.pop %v1185
        %v1366 = vtanh.pop %v1188
        %v1367 = vtanh.pop %v1193
        %v1368 = vtanh.pop %v1196
        %v1369 = vtanh.pop %v1201
        %v1370 = vtanh.pop %v1204
        %v1371 = vtanh.pop %v1209
        %v1372 = vtanh.pop %v1212
        %v1373 = vtanh.pop %v1217
        %v1374 = vtanh.pop %v1220
        %v1375 = vtanh.pop %v1225
        %v1376 = vtanh.pop %v1228
        %v1377 = vtanh.pop %v1233
        %v1378 = vtanh.pop %v1236
        %v1379 = vtanh.pop %v1241
        %v1380 = vtanh.pop %v1244
        %v1381 = vtanh.pop %v1249
        %v1382 = vtanh.pop %v1252
        %v1383 = vpack.c.bf16 %v1256, %v1255
        %v1384 = vpack.c.bf16 %v1258, %v1257
        %v1385 = vpack.c.bf16 %v1260, %v1259
        %v1386 = vpack.c.bf16 %v1262, %v1261
        %v1387 = vpack.c.bf16 %v1264, %v1263
        %v1388 = vpack.c.bf16 %v1266, %v1265
        %v1389 = vpack.c.bf16 %v1268, %v1267
        %v1390 = vpack.c.bf16 %v1270, %v1269
        %v1391 = vpack.c.bf16 %v1272, %v1271
        %v1392 = vpack.c.bf16 %v1274, %v1273
        %v1393 = vpack.c.bf16 %v1276, %v1275
        %v1394 = vpack.c.bf16 %v1278, %v1277
        %v1395 = vpack.c.bf16 %v1280, %v1279
        %v1396 = vpack.c.bf16 %v1282, %v1281
        %v1397 = vpack.c.bf16 %v1284, %v1283
        %v1398 = vpack.c.bf16 %v1286, %v1285
        %v1399 = vpack.c.bf16 %v1288, %v1287
        %v1400 = vpack.c.bf16 %v1290, %v1289
        %v1401 = vpack.c.bf16 %v1292, %v1291
        %v1402 = vpack.c.bf16 %v1294, %v1293
        %v1403 = vpack.c.bf16 %v1296, %v1295
        %v1404 = vpack.c.bf16 %v1298, %v1297
        %v1405 = vpack.c.bf16 %v1300, %v1299
        %v1406 = vpack.c.bf16 %v1302, %v1301
        %v1407 = vpack.c.bf16 %v1304, %v1303
        %v1408 = vpack.c.bf16 %v1306, %v1305
        %v1409 = vpack.c.bf16 %v1308, %v1307
        %v1410 = vpack.c.bf16 %v1310, %v1309
        %v1411 = vpack.c.bf16 %v1312, %v1311
        %v1412 = vpack.c.bf16 %v1314, %v1313
        %v1413 = vpack.c.bf16 %v1316, %v1315
        %v1414 = vpack.c.bf16 %v1318, %v1317
        %v1415 = vpack.c.bf16 %v1320, %v1319
        %v1416 = vpack.c.bf16 %v1322, %v1321
        %v1417 = vpack.c.bf16 %v1324, %v1323
        %v1418 = vpack.c.bf16 %v1326, %v1325
        %v1419 = vpack.c.bf16 %v1328, %v1327
        %v1420 = vpack.c.bf16 %v1330, %v1329
        %v1421 = vpack.c.bf16 %v1332, %v1331
        %v1422 = vpack.c.bf16 %v1334, %v1333
        %v1423 = vpack.c.bf16 %v1336, %v1335
        %v1424 = vpack.c.bf16 %v1338, %v1337
        %v1425 = vpack.c.bf16 %v1340, %v1339
        %v1426 = vpack.c.bf16 %v1342, %v1341
        %v1427 = vpack.c.bf16 %v1344, %v1343
        %v1428 = vpack.c.bf16 %v1346, %v1345
        %v1429 = vpack.c.bf16 %v1348, %v1347
        %v1430 = vpack.c.bf16 %v1350, %v1349
        %v1431 = vpack.c.bf16 %v1352, %v1351
        %v1432 = vpack.c.bf16 %v1354, %v1353
        %v1433 = vpack.c.bf16 %v1356, %v1355
        %v1434 = vpack.c.bf16 %v1358, %v1357
        %v1435 = vpack.c.bf16 %v1360, %v1359
        %v1436 = vpack.c.bf16 %v1362, %v1361
        %v1437 = vpack.c.bf16 %v1364, %v1363
        %v1438 = vpack.c.bf16 %v1366, %v1365
        %v1439 = vpack.c.bf16 %v1368, %v1367
        %v1440 = vpack.c.bf16 %v1370, %v1369
        %v1441 = vpack.c.bf16 %v1372, %v1371
        %v1442 = vpack.c.bf16 %v1374, %v1373
        %v1443 = vpack.c.bf16 %v1376, %v1375
        %v1444 = vpack.c.bf16 %v1378, %v1377
        %v1445 = vpack.c.bf16 %v1380, %v1379
        %v1446 = vpack.c.bf16 %v1382, %v1381
        %v1447 = vld [vmem:[%s3] sm:$0xf]
        %v1448 = vld [vmem:[%s3 + $0x4] sm:$0xf]
        %v1449 = vld [vmem:[%s3 + $0x8] sm:$0xf]
        %v1450 = vld [vmem:[%s3 + $0xc] sm:$0xf]
        %v1451 = vld [vmem:[%s3 + $0x10] sm:$0xf]
        %v1452 = vld [vmem:[%s3 + $0x14] sm:$0xf]
        %v1453 = vld [vmem:[%s3 + $0x18] sm:$0xf]
        %v1454 = vld [vmem:[%s3 + $0x1c] sm:$0xf]
        %v1455 = vld [vmem:[%s3 + $0x20] sm:$0xf]
        %v1456 = vld [vmem:[%s3 + $0x24] sm:$0xf]
        %v1457 = vld [vmem:[%s3 + $0x28] sm:$0xf]
        %v1458 = vld [vmem:[%s3 + $0x2c] sm:$0xf]
        %v1459 = vld [vmem:[%s3 + $0x30] sm:$0xf]
        %v1460 = vld [vmem:[%s3 + $0x34] sm:$0xf]
        %v1461 = vld [vmem:[%s3 + $0x38] sm:$0xf]
        %v1462 = vld [vmem:[%s3 + $0x3c] sm:$0xf]
        %v1463 = vld [vmem:[%s4] sm:$0x1]
        %v1465 = vlaneseq
        %v1466 = vshrl.u32 %v1465, 7
        %v1467 = vsub.s32 0, %v1466
        %v1468 = vrot.slane %v1463, %v1467
        %v1486 = vunpack.c.l.b16 %v1447
        %v1487 = vunpack.c.l.b16 %v1448
        %v1488 = vunpack.c.l.b16 %v1449
        %v1489 = vunpack.c.l.b16 %v1450
        %v1490 = vunpack.c.l.b16 %v1451
        %v1491 = vunpack.c.l.b16 %v1452
        %v1492 = vunpack.c.l.b16 %v1453
        %v1493 = vunpack.c.l.b16 %v1454
        %v1494 = vunpack.c.l.b16 %v1455
        %v1495 = vunpack.c.l.b16 %v1456
        %v1496 = vunpack.c.l.b16 %v1457
        %v1497 = vunpack.c.l.b16 %v1458
        %v1498 = vunpack.c.l.b16 %v1459
        %v1499 = vunpack.c.l.b16 %v1460
        %v1500 = vunpack.c.l.b16 %v1461
        %v1501 = vunpack.c.l.b16 %v1462
        %v1502 = vpack.c.b16 %v1487, %v1486
        %v1503 = vpack.c.b16 %v1489, %v1488
        %v1504 = vpack.c.b16 %v1491, %v1490
        %v1505 = vpack.c.b16 %v1493, %v1492
        %v1506 = vpack.c.b16 %v1495, %v1494
        %v1507 = vpack.c.b16 %v1497, %v1496
        %v1508 = vpack.c.b16 %v1499, %v1498
        %v1509 = vpack.c.b16 %v1501, %v1500
        %1518 = vmatprep.subr.bf16.mxu0 0
        %1519 = vmatpush1.bf16.msra.mxu0 %v1502
        %1520 = vmatprep.subr.bf16.mxu0 0
        %1521 = vmatpush1.bf16.msra.mxu0 %v1503
        %1522 = vmatprep.subr.bf16.mxu0 0
        %1523 = vmatpush1.bf16.msra.mxu0 %v1504
        %1524 = vmatprep.subr.bf16.mxu0 0
        %1525 = vmatpush1.bf16.msra.mxu0 %v1505
        %1526 = vmatprep.subr.bf16.mxu0 0
        %1527 = vmatpush1.bf16.msra.mxu0 %v1506
        %1528 = vmatprep.subr.bf16.mxu0 0
        %1529 = vmatpush1.bf16.msra.mxu0 %v1507
        %1530 = vmatprep.subr.bf16.mxu0 0
        %1531 = vmatpush1.bf16.msra.mxu0 %v1508
        %1532 = vmatprep.subr.bf16.mxu0 0
        %1533 = vmatpush1.bf16.msra.mxu0 %v1509
        %1534 = vmatprep.subr.bf16.mxu0 0
        %1535 = vmatpush1.bf16.msra.mxu0 0
        %1536 = vmatprep.subr.bf16.mxu0 0
        %1537 = vmatpush1.bf16.msra.mxu0 0
        %1538 = vmatprep.subr.bf16.mxu0 0
        %1539 = vmatpush1.bf16.msra.mxu0 0
        %1540 = vmatprep.subr.bf16.mxu0 0
        %1541 = vmatpush1.bf16.msra.mxu0 0
        %1542 = vmatprep.subr.bf16.mxu0 0
        %1543 = vmatpush1.bf16.msra.mxu0 0
        %1544 = vmatprep.subr.bf16.mxu0 0
        %1545 = vmatpush1.bf16.msra.mxu0 0
        %1546 = vmatprep.subr.bf16.mxu0 0
        %1547 = vmatpush1.bf16.msra.mxu0 0
        %1548 = vmatprep.subr.bf16.mxu0 0
        %1549 = vmatpush1.bf16.msra.mxu0 0
        %1550 = vmatprep.mubr.bf16.mxu0 0
        %1551 = vmatmul.mubr.bf16.gmra.mrb[0].mxu0 %v1383
        %v1552 = vpop.f32.mrb[0].mxu0
        %v1553 = vadd.f32 %v1468, %v1552
        %v1554 = vpop.f32.mrb[0].mxu0
        %v1555 = vpop.f32.mrb[0].mxu0
        %v1556 = vadd.f32 %v1468, %v1555
        %v1557 = vpop.f32.mrb[0].mxu0
        %1558 = vmatprep.mubr.bf16.mxu0 0
        %1559 = vmatmul.mubr.bf16.gmra.mrb[0].mxu0 %v1384
        %v1560 = vpop.f32.mrb[0].mxu0
        %v1561 = vadd.f32 %v1468, %v1560
        %v1562 = vpop.f32.mrb[0].mxu0
        %v1563 = vpop.f32.mrb[0].mxu0
        %v1564 = vadd.f32 %v1468, %v1563
        %v1565 = vpop.f32.mrb[0].mxu0
        %1566 = vmatprep.mubr.bf16.mxu0 0
        %1567 = vmatmul.mubr.bf16.gmra.mrb[0].mxu0 %v1385
        %v1568 = vpop.f32.mrb[0].mxu0
        %v1569 = vadd.f32 %v1468, %v1568
        %v1570 = vpop.f32.mrb[0].mxu0
        %v1571 = vpop.f32.mrb[0].mxu0
        %v1572 = vadd.f32 %v1468, %v1571
        %v1573 = vpop.f32.mrb[0].mxu0
        %1574 = vmatprep.mubr.bf16.mxu0 0
        %1575 = vmatmul.mubr.bf16.gmra.mrb[0].mxu0 %v1386
        %v1576 = vpop.f32.mrb[0].mxu0
        %v1577 = vadd.f32 %v1468, %v1576
        %v1578 = vpop.f32.mrb[0].mxu0
        %v1579 = vpop.f32.mrb[0].mxu0
        %v1580 = vadd.f32 %v1468, %v1579
        %v1581 = vpop.f32.mrb[0].mxu0
        %1582 = vmatprep.mubr.bf16.mxu0 0
        %1583 = vmatmul.mubr.bf16.gmra.mrb[0].mxu0 %v1387
        %v1584 = vpop.f32.mrb[0].mxu0
        %v1585 = vadd.f32 %v1468, %v1584
        %v1586 = vpop.f32.mrb[0].mxu0
        %v1587 = vpop.f32.mrb[0].mxu0
        %v1588 = vadd.f32 %v1468, %v1587
        %v1589 = vpop.f32.mrb[0].mxu0
        %1590 = vmatprep.mubr.bf16.mxu0 0
        %1591 = vmatmul.mubr.bf16.gmra.mrb[0].mxu0 %v1388
        %v1592 = vpop.f32.mrb[0].mxu0
        %v1593 = vadd.f32 %v1468, %v1592
        %v1594 = vpop.f32.mrb[0].mxu0
        %v1595 = vpop.f32.mrb[0].mxu0
        %v1596 = vadd.f32 %v1468, %v1595
        %v1597 = vpop.f32.mrb[0].mxu0
        %1598 = vmatprep.mubr.bf16.mxu0 0
        %1599 = vmatmul.mubr.bf16.gmra.mrb[0].mxu0 %v1389
        %v1600 = vpop.f32.mrb[0].mxu0
        %v1601 = vadd.f32 %v1468, %v1600
        %v1602 = vpop.f32.mrb[0].mxu0
        %v1603 = vpop.f32.mrb[0].mxu0
        %v1604 = vadd.f32 %v1468, %v1603
        %v1605 = vpop.f32.mrb[0].mxu0
        %1606 = vmatprep.mubr.bf16.mxu0 0
        %1607 = vmatmul.mubr.bf16.gmra.mrb[0].mxu0 %v1390
        %v1608 = vpop.f32.mrb[0].mxu0
        %v1609 = vadd.f32 %v1468, %v1608
        %v1610 = vpop.f32.mrb[0].mxu0
        %v1611 = vpop.f32.mrb[0].mxu0
        %v1612 = vadd.f32 %v1468, %v1611
        %v1613 = vpop.f32.mrb[0].mxu0
        %1614 = vmatprep.mubr.bf16.mxu0 0
        %1615 = vmatmul.mubr.bf16.gmra.mrb[0].mxu0 %v1391
        %v1616 = vpop.f32.mrb[0].mxu0
        %v1617 = vadd.f32 %v1468, %v1616
        %v1618 = vpop.f32.mrb[0].mxu0
        %v1619 = vpop.f32.mrb[0].mxu0
        %v1620 = vadd.f32 %v1468, %v1619
        %v1621 = vpop.f32.mrb[0].mxu0
        %1622 = vmatprep.mubr.bf16.mxu0 0
        %1623 = vmatmul.mubr.bf16.gmra.mrb[0].mxu0 %v1392
        %v1624 = vpop.f32.mrb[0].mxu0
        %v1625 = vadd.f32 %v1468, %v1624
        %v1626 = vpop.f32.mrb[0].mxu0
        %v1627 = vpop.f32.mrb[0].mxu0
        %v1628 = vadd.f32 %v1468, %v1627
        %v1629 = vpop.f32.mrb[0].mxu0
        %1630 = vmatprep.mubr.bf16.mxu0 0
        %1631 = vmatmul.mubr.bf16.gmra.mrb[0].mxu0 %v1393
        %v1632 = vpop.f32.mrb[0].mxu0
        %v1633 = vadd.f32 %v1468, %v1632
        %v1634 = vpop.f32.mrb[0].mxu0
        %v1635 = vpop.f32.mrb[0].mxu0
        %v1636 = vadd.f32 %v1468, %v1635
        %v1637 = vpop.f32.mrb[0].mxu0
        %1638 = vmatprep.mubr.bf16.mxu0 0
        %1639 = vmatmul.mubr.bf16.gmra.mrb[0].mxu0 %v1394
        %v1640 = vpop.f32.mrb[0].mxu0
        %v1641 = vadd.f32 %v1468, %v1640
        %v1642 = vpop.f32.mrb[0].mxu0
        %v1643 = vpop.f32.mrb[0].mxu0
        %v1644 = vadd.f32 %v1468, %v1643
        %v1645 = vpop.f32.mrb[0].mxu0
        %1646 = vmatprep.mubr.bf16.mxu0 0
        %1647 = vmatmul.mubr.bf16.gmra.mrb[0].mxu0 %v1395
        %v1648 = vpop.f32.mrb[0].mxu0
        %v1649 = vadd.f32 %v1468, %v1648
        %v1650 = vpop.f32.mrb[0].mxu0
        %v1651 = vpop.f32.mrb[0].mxu0
        %v1652 = vadd.f32 %v1468, %v1651
        %v1653 = vpop.f32.mrb[0].mxu0
        %1654 = vmatprep.mubr.bf16.mxu0 0
        %1655 = vmatmul.mubr.bf16.gmra.mrb[0].mxu0 %v1396
        %v1656 = vpop.f32.mrb[0].mxu0
        %v1657 = vadd.f32 %v1468, %v1656
        %v1658 = vpop.f32.mrb[0].mxu0
        %v1659 = vpop.f32.mrb[0].mxu0
        %v1660 = vadd.f32 %v1468, %v1659
        %v1661 = vpop.f32.mrb[0].mxu0
        %1662 = vmatprep.mubr.bf16.mxu0 0
        %1663 = vmatmul.mubr.bf16.gmra.mrb[0].mxu0 %v1397
        %v1664 = vpop.f32.mrb[0].mxu0
        %v1665 = vadd.f32 %v1468, %v1664
        %v1666 = vpop.f32.mrb[0].mxu0
        %v1667 = vpop.f32.mrb[0].mxu0
        %v1668 = vadd.f32 %v1468, %v1667
        %v1669 = vpop.f32.mrb[0].mxu0
        %1670 = vmatprep.mubr.bf16.mxu0 0
        %1671 = vmatmul.mubr.bf16.gmra.mrb[0].mxu0 %v1398
        %v1672 = vpop.f32.mrb[0].mxu0
        %v1673 = vadd.f32 %v1468, %v1672
        %v1674 = vpop.f32.mrb[0].mxu0
        %v1675 = vpop.f32.mrb[0].mxu0
        %v1676 = vadd.f32 %v1468, %v1675
        %v1677 = vpop.f32.mrb[0].mxu0
        %1678 = vmatprep.mubr.bf16.mxu0 0
        %1679 = vmatmul.mubr.bf16.gmra.mrb[0].mxu0 %v1399
        %v1680 = vpop.f32.mrb[0].mxu0
        %v1681 = vadd.f32 %v1468, %v1680
        %v1682 = vpop.f32.mrb[0].mxu0
        %v1683 = vpop.f32.mrb[0].mxu0
        %v1684 = vadd.f32 %v1468, %v1683
        %v1685 = vpop.f32.mrb[0].mxu0
        %1686 = vmatprep.mubr.bf16.mxu0 0
        %1687 = vmatmul.mubr.bf16.gmra.mrb[0].mxu0 %v1400
        %v1688 = vpop.f32.mrb[0].mxu0
        %v1689 = vadd.f32 %v1468, %v1688
        %v1690 = vpop.f32.mrb[0].mxu0
        %v1691 = vpop.f32.mrb[0].mxu0
        %v1692 = vadd.f32 %v1468, %v1691
        %v1693 = vpop.f32.mrb[0].mxu0
        %1694 = vmatprep.mubr.bf16.mxu0 0
        %1695 = vmatmul.mubr.bf16.gmra.mrb[0].mxu0 %v1401
        %v1696 = vpop.f32.mrb[0].mxu0
        %v1697 = vadd.f32 %v1468, %v1696
        %v1698 = vpop.f32.mrb[0].mxu0
        %v1699 = vpop.f32.mrb[0].mxu0
        %v1700 = vadd.f32 %v1468, %v1699
        %v1701 = vpop.f32.mrb[0].mxu0
        %1702 = vmatprep.mubr.bf16.mxu0 0
        %1703 = vmatmul.mubr.bf16.gmra.mrb[0].mxu0 %v1402
        %v1704 = vpop.f32.mrb[0].mxu0
        %v1705 = vadd.f32 %v1468, %v1704
        %v1706 = vpop.f32.mrb[0].mxu0
        %v1707 = vpop.f32.mrb[0].mxu0
        %v1708 = vadd.f32 %v1468, %v1707
        %v1709 = vpop.f32.mrb[0].mxu0
        %1710 = vmatprep.mubr.bf16.mxu0 0
        %1711 = vmatmul.mubr.bf16.gmra.mrb[0].mxu0 %v1403
        %v1712 = vpop.f32.mrb[0].mxu0
        %v1713 = vadd.f32 %v1468, %v1712
        %v1714 = vpop.f32.mrb[0].mxu0
        %v1715 = vpop.f32.mrb[0].mxu0
        %v1716 = vadd.f32 %v1468, %v1715
        %v1717 = vpop.f32.mrb[0].mxu0
        %1718 = vmatprep.mubr.bf16.mxu0 0
        %1719 = vmatmul.mubr.bf16.gmra.mrb[0].mxu0 %v1404
        %v1720 = vpop.f32.mrb[0].mxu0
        %v1721 = vadd.f32 %v1468, %v1720
        %v1722 = vpop.f32.mrb[0].mxu0
        %v1723 = vpop.f32.mrb[0].mxu0
        %v1724 = vadd.f32 %v1468, %v1723
        %v1725 = vpop.f32.mrb[0].mxu0
        %1726 = vmatprep.mubr.bf16.mxu0 0
        %1727 = vmatmul.mubr.bf16.gmra.mrb[0].mxu0 %v1405
        %v1728 = vpop.f32.mrb[0].mxu0
        %v1729 = vadd.f32 %v1468, %v1728
        %v1730 = vpop.f32.mrb[0].mxu0
        %v1731 = vpop.f32.mrb[0].mxu0
        %v1732 = vadd.f32 %v1468, %v1731
        %v1733 = vpop.f32.mrb[0].mxu0
        %1734 = vmatprep.mubr.bf16.mxu0 0
        %1735 = vmatmul.mubr.bf16.gmra.mrb[0].mxu0 %v1406
        %v1736 = vpop.f32.mrb[0].mxu0
        %v1737 = vadd.f32 %v1468, %v1736
        %v1738 = vpop.f32.mrb[0].mxu0
        %v1739 = vpop.f32.mrb[0].mxu0
        %v1740 = vadd.f32 %v1468, %v1739
        %v1741 = vpop.f32.mrb[0].mxu0
        %1742 = vmatprep.mubr.bf16.mxu0 0
        %1743 = vmatmul.mubr.bf16.gmra.mrb[0].mxu0 %v1407
        %v1744 = vpop.f32.mrb[0].mxu0
        %v1745 = vadd.f32 %v1468, %v1744
        %v1746 = vpop.f32.mrb[0].mxu0
        %v1747 = vpop.f32.mrb[0].mxu0
        %v1748 = vadd.f32 %v1468, %v1747
        %v1749 = vpop.f32.mrb[0].mxu0
        %1750 = vmatprep.mubr.bf16.mxu0 0
        %1751 = vmatmul.mubr.bf16.gmra.mrb[0].mxu0 %v1408
        %v1752 = vpop.f32.mrb[0].mxu0
        %v1753 = vadd.f32 %v1468, %v1752
        %v1754 = vpop.f32.mrb[0].mxu0
        %v1755 = vpop.f32.mrb[0].mxu0
        %v1756 = vadd.f32 %v1468, %v1755
        %v1757 = vpop.f32.mrb[0].mxu0
        %1758 = vmatprep.mubr.bf16.mxu0 0
        %1759 = vmatmul.mubr.bf16.gmra.mrb[0].mxu0 %v1409
        %v1760 = vpop.f32.mrb[0].mxu0
        %v1761 = vadd.f32 %v1468, %v1760
        %v1762 = vpop.f32.mrb[0].mxu0
        %v1763 = vpop.f32.mrb[0].mxu0
        %v1764 = vadd.f32 %v1468, %v1763
        %v1765 = vpop.f32.mrb[0].mxu0
        %1766 = vmatprep.mubr.bf16.mxu0 0
        %1767 = vmatmul.mubr.bf16.gmra.mrb[0].mxu0 %v1410
        %v1768 = vpop.f32.mrb[0].mxu0
        %v1769 = vadd.f32 %v1468, %v1768
        %v1770 = vpop.f32.mrb[0].mxu0
        %v1771 = vpop.f32.mrb[0].mxu0
        %v1772 = vadd.f32 %v1468, %v1771
        %v1773 = vpop.f32.mrb[0].mxu0
        %1774 = vmatprep.mubr.bf16.mxu0 0
        %1775 = vmatmul.mubr.bf16.gmra.mrb[0].mxu0 %v1411
        %v1776 = vpop.f32.mrb[0].mxu0
        %v1777 = vadd.f32 %v1468, %v1776
        %v1778 = vpop.f32.mrb[0].mxu0
        %v1779 = vpop.f32.mrb[0].mxu0
        %v1780 = vadd.f32 %v1468, %v1779
        %v1781 = vpop.f32.mrb[0].mxu0
        %1782 = vmatprep.mubr.bf16.mxu0 0
        %1783 = vmatmul.mubr.bf16.gmra.mrb[0].mxu0 %v1412
        %v1784 = vpop.f32.mrb[0].mxu0
        %v1785 = vadd.f32 %v1468, %v1784
        %v1786 = vpop.f32.mrb[0].mxu0
        %v1787 = vpop.f32.mrb[0].mxu0
        %v1788 = vadd.f32 %v1468, %v1787
        %v1789 = vpop.f32.mrb[0].mxu0
        %1790 = vmatprep.mubr.bf16.mxu0 0
        %1791 = vmatmul.mubr.bf16.gmra.mrb[0].mxu0 %v1413
        %v1792 = vpop.f32.mrb[0].mxu0
        %v1793 = vadd.f32 %v1468, %v1792
        %v1794 = vpop.f32.mrb[0].mxu0
        %v1795 = vpop.f32.mrb[0].mxu0
        %v1796 = vadd.f32 %v1468, %v1795
        %v1797 = vpop.f32.mrb[0].mxu0
        %1798 = vmatprep.mubr.bf16.mxu0 0
        %1799 = vmatmul.mubr.bf16.gmra.mrb[0].mxu0 %v1414
        %v1800 = vpop.f32.mrb[0].mxu0
        %v1801 = vadd.f32 %v1468, %v1800
        %v1802 = vpop.f32.mrb[0].mxu0
        %v1803 = vpop.f32.mrb[0].mxu0
        %v1804 = vadd.f32 %v1468, %v1803
        %v1805 = vpop.f32.mrb[0].mxu0
        %1806 = vmatprep.mubr.bf16.mxu0 0
        %1807 = vmatmul.mubr.bf16.gmra.mrb[0].mxu0 %v1415
        %v1808 = vpop.f32.mrb[0].mxu0
        %v1809 = vadd.f32 %v1468, %v1808
        %v1810 = vpop.f32.mrb[0].mxu0
        %v1811 = vpop.f32.mrb[0].mxu0
        %v1812 = vadd.f32 %v1468, %v1811
        %v1813 = vpop.f32.mrb[0].mxu0
        %1814 = vmatprep.mubr.bf16.mxu0 0
        %1815 = vmatmul.mubr.bf16.gmra.mrb[0].mxu0 %v1416
        %v1816 = vpop.f32.mrb[0].mxu0
        %v1817 = vadd.f32 %v1468, %v1816
        %v1818 = vpop.f32.mrb[0].mxu0
        %v1819 = vpop.f32.mrb[0].mxu0
        %v1820 = vadd.f32 %v1468, %v1819
        %v1821 = vpop.f32.mrb[0].mxu0
        %1822 = vmatprep.mubr.bf16.mxu0 0
        %1823 = vmatmul.mubr.bf16.gmra.mrb[0].mxu0 %v1417
        %v1824 = vpop.f32.mrb[0].mxu0
        %v1825 = vadd.f32 %v1468, %v1824
        %v1826 = vpop.f32.mrb[0].mxu0
        %v1827 = vpop.f32.mrb[0].mxu0
        %v1828 = vadd.f32 %v1468, %v1827
        %v1829 = vpop.f32.mrb[0].mxu0
        %1830 = vmatprep.mubr.bf16.mxu0 0
        %1831 = vmatmul.mubr.bf16.gmra.mrb[0].mxu0 %v1418
        %v1832 = vpop.f32.mrb[0].mxu0
        %v1833 = vadd.f32 %v1468, %v1832
        %v1834 = vpop.f32.mrb[0].mxu0
        %v1835 = vpop.f32.mrb[0].mxu0
        %v1836 = vadd.f32 %v1468, %v1835
        %v1837 = vpop.f32.mrb[0].mxu0
        %1838 = vmatprep.mubr.bf16.mxu0 0
        %1839 = vmatmul.mubr.bf16.gmra.mrb[0].mxu0 %v1419
        %v1840 = vpop.f32.mrb[0].mxu0
        %v1841 = vadd.f32 %v1468, %v1840
        %v1842 = vpop.f32.mrb[0].mxu0
        %v1843 = vpop.f32.mrb[0].mxu0
        %v1844 = vadd.f32 %v1468, %v1843
        %v1845 = vpop.f32.mrb[0].mxu0
        %1846 = vmatprep.mubr.bf16.mxu0 0
        %1847 = vmatmul.mubr.bf16.gmra.mrb[0].mxu0 %v1420
        %v1848 = vpop.f32.mrb[0].mxu0
        %v1849 = vadd.f32 %v1468, %v1848
        %v1850 = vpop.f32.mrb[0].mxu0
        %v1851 = vpop.f32.mrb[0].mxu0
        %v1852 = vadd.f32 %v1468, %v1851
        %v1853 = vpop.f32.mrb[0].mxu0
        %1854 = vmatprep.mubr.bf16.mxu0 0
        %1855 = vmatmul.mubr.bf16.gmra.mrb[0].mxu0 %v1421
        %v1856 = vpop.f32.mrb[0].mxu0
        %v1857 = vadd.f32 %v1468, %v1856
        %v1858 = vpop.f32.mrb[0].mxu0
        %v1859 = vpop.f32.mrb[0].mxu0
        %v1860 = vadd.f32 %v1468, %v1859
        %v1861 = vpop.f32.mrb[0].mxu0
        %1862 = vmatprep.mubr.bf16.mxu0 0
        %1863 = vmatmul.mubr.bf16.gmra.mrb[0].mxu0 %v1422
        %v1864 = vpop.f32.mrb[0].mxu0
        %v1865 = vadd.f32 %v1468, %v1864
        %v1866 = vpop.f32.mrb[0].mxu0
        %v1867 = vpop.f32.mrb[0].mxu0
        %v1868 = vadd.f32 %v1468, %v1867
        %v1869 = vpop.f32.mrb[0].mxu0
        %1870 = vmatprep.mubr.bf16.mxu0 0
        %1871 = vmatmul.mubr.bf16.gmra.mrb[0].mxu0 %v1423
        %v1872 = vpop.f32.mrb[0].mxu0
        %v1873 = vadd.f32 %v1468, %v1872
        %v1874 = vpop.f32.mrb[0].mxu0
        %v1875 = vpop.f32.mrb[0].mxu0
        %v1876 = vadd.f32 %v1468, %v1875
        %v1877 = vpop.f32.mrb[0].mxu0
        %1878 = vmatprep.mubr.bf16.mxu0 0
        %1879 = vmatmul.mubr.bf16.gmra.mrb[0].mxu0 %v1424
        %v1880 = vpop.f32.mrb[0].mxu0
        %v1881 = vadd.f32 %v1468, %v1880
        %v1882 = vpop.f32.mrb[0].mxu0
        %v1883 = vpop.f32.mrb[0].mxu0
        %v1884 = vadd.f32 %v1468, %v1883
        %v1885 = vpop.f32.mrb[0].mxu0
        %1886 = vmatprep.mubr.bf16.mxu0 0
        %1887 = vmatmul.mubr.bf16.gmra.mrb[0].mxu0 %v1425
        %v1888 = vpop.f32.mrb[0].mxu0
        %v1889 = vadd.f32 %v1468, %v1888
        %v1890 = vpop.f32.mrb[0].mxu0
        %v1891 = vpop.f32.mrb[0].mxu0
        %v1892 = vadd.f32 %v1468, %v1891
        %v1893 = vpop.f32.mrb[0].mxu0
        %1894 = vmatprep.mubr.bf16.mxu0 0
        %1895 = vmatmul.mubr.bf16.gmra.mrb[0].mxu0 %v1426
        %v1896 = vpop.f32.mrb[0].mxu0
        %v1897 = vadd.f32 %v1468, %v1896
        %v1898 = vpop.f32.mrb[0].mxu0
        %v1899 = vpop.f32.mrb[0].mxu0
        %v1900 = vadd.f32 %v1468, %v1899
        %v1901 = vpop.f32.mrb[0].mxu0
        %1902 = vmatprep.mubr.bf16.mxu0 0
        %1903 = vmatmul.mubr.bf16.gmra.mrb[0].mxu0 %v1427
        %v1904 = vpop.f32.mrb[0].mxu0
        %v1905 = vadd.f32 %v1468, %v1904
        %v1906 = vpop.f32.mrb[0].mxu0
        %v1907 = vpop.f32.mrb[0].mxu0
        %v1908 = vadd.f32 %v1468, %v1907
        %v1909 = vpop.f32.mrb[0].mxu0
        %1910 = vmatprep.mubr.bf16.mxu0 0
        %1911 = vmatmul.mubr.bf16.gmra.mrb[0].mxu0 %v1428
        %v1912 = vpop.f32.mrb[0].mxu0
        %v1913 = vadd.f32 %v1468, %v1912
        %v1914 = vpop.f32.mrb[0].mxu0
        %v1915 = vpop.f32.mrb[0].mxu0
        %v1916 = vadd.f32 %v1468, %v1915
        %v1917 = vpop.f32.mrb[0].mxu0
        %1918 = vmatprep.mubr.bf16.mxu0 0
        %1919 = vmatmul.mubr.bf16.gmra.mrb[0].mxu0 %v1429
        %v1920 = vpop.f32.mrb[0].mxu0
        %v1921 = vadd.f32 %v1468, %v1920
        %v1922 = vpop.f32.mrb[0].mxu0
        %v1923 = vpop.f32.mrb[0].mxu0
        %v1924 = vadd.f32 %v1468, %v1923
        %v1925 = vpop.f32.mrb[0].mxu0
        %1926 = vmatprep.mubr.bf16.mxu0 0
        %1927 = vmatmul.mubr.bf16.gmra.mrb[0].mxu0 %v1430
        %v1928 = vpop.f32.mrb[0].mxu0
        %v1929 = vadd.f32 %v1468, %v1928
        %v1930 = vpop.f32.mrb[0].mxu0
        %v1931 = vpop.f32.mrb[0].mxu0
        %v1932 = vadd.f32 %v1468, %v1931
        %v1933 = vpop.f32.mrb[0].mxu0
        %1934 = vmatprep.mubr.bf16.mxu0 0
        %1935 = vmatmul.mubr.bf16.gmra.mrb[0].mxu0 %v1431
        %v1936 = vpop.f32.mrb[0].mxu0
        %v1937 = vadd.f32 %v1468, %v1936
        %v1938 = vpop.f32.mrb[0].mxu0
        %v1939 = vpop.f32.mrb[0].mxu0
        %v1940 = vadd.f32 %v1468, %v1939
        %v1941 = vpop.f32.mrb[0].mxu0
        %1942 = vmatprep.mubr.bf16.mxu0 0
        %1943 = vmatmul.mubr.bf16.gmra.mrb[0].mxu0 %v1432
        %v1944 = vpop.f32.mrb[0].mxu0
        %v1945 = vadd.f32 %v1468, %v1944
        %v1946 = vpop.f32.mrb[0].mxu0
        %v1947 = vpop.f32.mrb[0].mxu0
        %v1948 = vadd.f32 %v1468, %v1947
        %v1949 = vpop.f32.mrb[0].mxu0
        %1950 = vmatprep.mubr.bf16.mxu0 0
        %1951 = vmatmul.mubr.bf16.gmra.mrb[0].mxu0 %v1433
        %v1952 = vpop.f32.mrb[0].mxu0
        %v1953 = vadd.f32 %v1468, %v1952
        %v1954 = vpop.f32.mrb[0].mxu0
        %v1955 = vpop.f32.mrb[0].mxu0
        %v1956 = vadd.f32 %v1468, %v1955
        %v1957 = vpop.f32.mrb[0].mxu0
        %1958 = vmatprep.mubr.bf16.mxu0 0
        %1959 = vmatmul.mubr.bf16.gmra.mrb[0].mxu0 %v1434
        %v1960 = vpop.f32.mrb[0].mxu0
        %v1961 = vadd.f32 %v1468, %v1960
        %v1962 = vpop.f32.mrb[0].mxu0
        %v1963 = vpop.f32.mrb[0].mxu0
        %v1964 = vadd.f32 %v1468, %v1963
        %v1965 = vpop.f32.mrb[0].mxu0
        %1966 = vmatprep.mubr.bf16.mxu0 0
        %1967 = vmatmul.mubr.bf16.gmra.mrb[0].mxu0 %v1435
        %v1968 = vpop.f32.mrb[0].mxu0
        %v1969 = vadd.f32 %v1468, %v1968
        %v1970 = vpop.f32.mrb[0].mxu0
        %v1971 = vpop.f32.mrb[0].mxu0
        %v1972 = vadd.f32 %v1468, %v1971
        %v1973 = vpop.f32.mrb[0].mxu0
        %1974 = vmatprep.mubr.bf16.mxu0 0
        %1975 = vmatmul.mubr.bf16.gmra.mrb[0].mxu0 %v1436
        %v1976 = vpop.f32.mrb[0].mxu0
        %v1977 = vadd.f32 %v1468, %v1976
        %v1978 = vpop.f32.mrb[0].mxu0
        %v1979 = vpop.f32.mrb[0].mxu0
        %v1980 = vadd.f32 %v1468, %v1979
        %v1981 = vpop.f32.mrb[0].mxu0
        %1982 = vmatprep.mubr.bf16.mxu0 0
        %1983 = vmatmul.mubr.bf16.gmra.mrb[0].mxu0 %v1437
        %v1984 = vpop.f32.mrb[0].mxu0
        %v1985 = vadd.f32 %v1468, %v1984
        %v1986 = vpop.f32.mrb[0].mxu0
        %v1987 = vpop.f32.mrb[0].mxu0
        %v1988 = vadd.f32 %v1468, %v1987
        %v1989 = vpop.f32.mrb[0].mxu0
        %1990 = vmatprep.mubr.bf16.mxu0 0
        %1991 = vmatmul.mubr.bf16.gmra.mrb[0].mxu0 %v1438
        %v1992 = vpop.f32.mrb[0].mxu0
        %v1993 = vadd.f32 %v1468, %v1992
        %v1994 = vpop.f32.mrb[0].mxu0
        %v1995 = vpop.f32.mrb[0].mxu0
        %v1996 = vadd.f32 %v1468, %v1995
        %v1997 = vpop.f32.mrb[0].mxu0
        %1998 = vmatprep.mubr.bf16.mxu0 0
        %1999 = vmatmul.mubr.bf16.gmra.mrb[0].mxu0 %v1439
        %v2000 = vpop.f32.mrb[0].mxu0
        %v2001 = vadd.f32 %v1468, %v2000
        %v2002 = vpop.f32.mrb[0].mxu0
        %v2003 = vpop.f32.mrb[0].mxu0
        %v2004 = vadd.f32 %v1468, %v2003
        %v2005 = vpop.f32.mrb[0].mxu0
        %2006 = vmatprep.mubr.bf16.mxu0 0
        %2007 = vmatmul.mubr.bf16.gmra.mrb[0].mxu0 %v1440
        %v2008 = vpop.f32.mrb[0].mxu0
        %v2009 = vadd.f32 %v1468, %v2008
        %v2010 = vpop.f32.mrb[0].mxu0
        %v2011 = vpop.f32.mrb[0].mxu0
        %v2012 = vadd.f32 %v1468, %v2011
        %v2013 = vpop.f32.mrb[0].mxu0
        %2014 = vmatprep.mubr.bf16.mxu0 0
        %2015 = vmatmul.mubr.bf16.gmra.mrb[0].mxu0 %v1441
        %v2016 = vpop.f32.mrb[0].mxu0
        %v2017 = vadd.f32 %v1468, %v2016
        %v2018 = vpop.f32.mrb[0].mxu0
        %v2019 = vpop.f32.mrb[0].mxu0
        %v2020 = vadd.f32 %v1468, %v2019
        %v2021 = vpop.f32.mrb[0].mxu0
        %2022 = vmatprep.mubr.bf16.mxu0 0
        %2023 = vmatmul.mubr.bf16.gmra.mrb[0].mxu0 %v1442
        %v2024 = vpop.f32.mrb[0].mxu0
        %v2025 = vadd.f32 %v1468, %v2024
        %v2026 = vpop.f32.mrb[0].mxu0
        %v2027 = vpop.f32.mrb[0].mxu0
        %v2028 = vadd.f32 %v1468, %v2027
        %v2029 = vpop.f32.mrb[0].mxu0
        %2030 = vmatprep.mubr.bf16.mxu0 0
        %2031 = vmatmul.mubr.bf16.gmra.mrb[0].mxu0 %v1443
        %v2032 = vpop.f32.mrb[0].mxu0
        %v2033 = vadd.f32 %v1468, %v2032
        %v2034 = vpop.f32.mrb[0].mxu0
        %v2035 = vpop.f32.mrb[0].mxu0
        %v2036 = vadd.f32 %v1468, %v2035
        %v2037 = vpop.f32.mrb[0].mxu0
        %2038 = vmatprep.mubr.bf16.mxu0 0
        %2039 = vmatmul.mubr.bf16.gmra.mrb[0].mxu0 %v1444
        %v2040 = vpop.f32.mrb[0].mxu0
        %v2041 = vadd.f32 %v1468, %v2040
        %v2042 = vpop.f32.mrb[0].mxu0
        %v2043 = vpop.f32.mrb[0].mxu0
        %v2044 = vadd.f32 %v1468, %v2043
        %v2045 = vpop.f32.mrb[0].mxu0
        %2046 = vmatprep.mubr.bf16.mxu0 0
        %2047 = vmatmul.mubr.bf16.gmra.mrb[0].mxu0 %v1445
        %v2048 = vpop.f32.mrb[0].mxu0
        %v2049 = vadd.f32 %v1468, %v2048
        %v2050 = vpop.f32.mrb[0].mxu0
        %v2051 = vpop.f32.mrb[0].mxu0
        %v2052 = vadd.f32 %v1468, %v2051
        %v2053 = vpop.f32.mrb[0].mxu0
        %2054 = vmatprep.mubr.bf16.mxu0 0
        %2055 = vmatmul.mubr.bf16.gmra.mrb[0].mxu0 %v1446
        %v2056 = vpop.f32.mrb[0].mxu0
        %v2057 = vadd.f32 %v1468, %v2056
        %v2058 = vpop.f32.mrb[0].mxu0
        %v2059 = vpop.f32.mrb[0].mxu0
        %v2060 = vadd.f32 %v1468, %v2059
        %v2061 = vpop.f32.mrb[0].mxu0
        %2062 = vdwg.mxu0
        %v2063 = vtanh.pop %v1553
        %v2064 = vtanh.pop %v1556
        %v2065 = vtanh.pop %v1561
        %v2066 = vtanh.pop %v1564
        %v2067 = vtanh.pop %v1569
        %v2068 = vtanh.pop %v1572
        %v2069 = vtanh.pop %v1577
        %v2070 = vtanh.pop %v1580
        %v2071 = vtanh.pop %v1585
        %v2072 = vtanh.pop %v1588
        %v2073 = vtanh.pop %v1593
        %v2074 = vtanh.pop %v1596
        %v2075 = vtanh.pop %v1601
        %v2076 = vtanh.pop %v1604
        %v2077 = vtanh.pop %v1609
        %v2078 = vtanh.pop %v1612
        %v2079 = vtanh.pop %v1617
        %v2080 = vtanh.pop %v1620
        %v2081 = vtanh.pop %v1625
        %v2082 = vtanh.pop %v1628
        %v2083 = vtanh.pop %v1633
        %v2084 = vtanh.pop %v1636
        %v2085 = vtanh.pop %v1641
        %v2086 = vtanh.pop %v1644
        %v2087 = vtanh.pop %v1649
        %v2088 = vtanh.pop %v1652
        %v2089 = vtanh.pop %v1657
        %v2090 = vtanh.pop %v1660
        %v2091 = vtanh.pop %v1665
        %v2092 = vtanh.pop %v1668
        %v2093 = vtanh.pop %v1673
        %v2094 = vtanh.pop %v1676
        %v2095 = vtanh.pop %v1681
        %v2096 = vtanh.pop %v1684
        %v2097 = vtanh.pop %v1689
        %v2098 = vtanh.pop %v1692
        %v2099 = vtanh.pop %v1697
        %v2100 = vtanh.pop %v1700
        %v2101 = vtanh.pop %v1705
        %v2102 = vtanh.pop %v1708
        %v2103 = vtanh.pop %v1713
        %v2104 = vtanh.pop %v1716
        %v2105 = vtanh.pop %v1721
        %v2106 = vtanh.pop %v1724
        %v2107 = vtanh.pop %v1729
        %v2108 = vtanh.pop %v1732
        %v2109 = vtanh.pop %v1737
        %v2110 = vtanh.pop %v1740
        %v2111 = vtanh.pop %v1745
        %v2112 = vtanh.pop %v1748
        %v2113 = vtanh.pop %v1753
        %v2114 = vtanh.pop %v1756
        %v2115 = vtanh.pop %v1761
        %v2116 = vtanh.pop %v1764
        %v2117 = vtanh.pop %v1769
        %v2118 = vtanh.pop %v1772
        %v2119 = vtanh.pop %v1777
        %v2120 = vtanh.pop %v1780
        %v2121 = vtanh.pop %v1785
        %v2122 = vtanh.pop %v1788
        %v2123 = vtanh.pop %v1793
        %v2124 = vtanh.pop %v1796
        %v2125 = vtanh.pop %v1801
        %v2126 = vtanh.pop %v1804
        %v2127 = vtanh.pop %v1809
        %v2128 = vtanh.pop %v1812
        %v2129 = vtanh.pop %v1817
        %v2130 = vtanh.pop %v1820
        %v2131 = vtanh.pop %v1825
        %v2132 = vtanh.pop %v1828
        %v2133 = vtanh.pop %v1833
        %v2134 = vtanh.pop %v1836
        %v2135 = vtanh.pop %v1841
        %v2136 = vtanh.pop %v1844
        %v2137 = vtanh.pop %v1849
        %v2138 = vtanh.pop %v1852
        %v2139 = vtanh.pop %v1857
        %v2140 = vtanh.pop %v1860
        %v2141 = vtanh.pop %v1865
        %v2142 = vtanh.pop %v1868
        %v2143 = vtanh.pop %v1873
        %v2144 = vtanh.pop %v1876
        %v2145 = vtanh.pop %v1881
        %v2146 = vtanh.pop %v1884
        %v2147 = vtanh.pop %v1889
        %v2148 = vtanh.pop %v1892
        %v2149 = vtanh.pop %v1897
        %v2150 = vtanh.pop %v1900
        %v2151 = vtanh.pop %v1905
        %v2152 = vtanh.pop %v1908
        %v2153 = vtanh.pop %v1913
        %v2154 = vtanh.pop %v1916
        %v2155 = vtanh.pop %v1921
        %v2156 = vtanh.pop %v1924
        %v2157 = vtanh.pop %v1929
        %v2158 = vtanh.pop %v1932
        %v2159 = vtanh.pop %v1937
        %v2160 = vtanh.pop %v1940
        %v2161 = vtanh.pop %v1945
        %v2162 = vtanh.pop %v1948
        %v2163 = vtanh.pop %v1953
        %v2164 = vtanh.pop %v1956
        %v2165 = vtanh.pop %v1961
        %v2166 = vtanh.pop %v1964
        %v2167 = vtanh.pop %v1969
        %v2168 = vtanh.pop %v1972
        %v2169 = vtanh.pop %v1977
        %v2170 = vtanh.pop %v1980
        %v2171 = vtanh.pop %v1985
        %v2172 = vtanh.pop %v1988
        %v2173 = vtanh.pop %v1993
        %v2174 = vtanh.pop %v1996
        %v2175 = vtanh.pop %v2001
        %v2176 = vtanh.pop %v2004
        %v2177 = vtanh.pop %v2009
        %v2178 = vtanh.pop %v2012
        %v2179 = vtanh.pop %v2017
        %v2180 = vtanh.pop %v2020
        %v2181 = vtanh.pop %v2025
        %v2182 = vtanh.pop %v2028
        %v2183 = vtanh.pop %v2033
        %v2184 = vtanh.pop %v2036
        %v2185 = vtanh.pop %v2041
        %v2186 = vtanh.pop %v2044
        %v2187 = vtanh.pop %v2049
        %v2188 = vtanh.pop %v2052
        %v2189 = vtanh.pop %v2057
        %v2190 = vtanh.pop %v2060
        %v2191 = vld [vmem:[%s5] sm:$0x1]
        %v2193 = vlaneseq
        %v2194 = vshrl.u32 %v2193, 7
        %v2195 = vsub.s32 0, %v2194
        %v2196 = vrot.slane %v2191, %v2195
        %v2198 = vmul.f32 %v2063, %v2196
        %v2199 = vmul.f32 %v2064, %v2196
        %v2200 = vmul.f32 %v2065, %v2196
        %v2201 = vmul.f32 %v2066, %v2196
        %v2202 = vmul.f32 %v2067, %v2196
        %v2203 = vmul.f32 %v2068, %v2196
        %v2204 = vmul.f32 %v2069, %v2196
        %v2205 = vmul.f32 %v2070, %v2196
        %v2206 = vmul.f32 %v2071, %v2196
        %v2207 = vmul.f32 %v2072, %v2196
        %v2208 = vmul.f32 %v2073, %v2196
        %v2209 = vmul.f32 %v2074, %v2196
        %v2210 = vmul.f32 %v2075, %v2196
        %v2211 = vmul.f32 %v2076, %v2196
        %v2212 = vmul.f32 %v2077, %v2196
        %v2213 = vmul.f32 %v2078, %v2196
        %v2214 = vmul.f32 %v2079, %v2196
        %v2215 = vmul.f32 %v2080, %v2196
        %v2216 = vmul.f32 %v2081, %v2196
        %v2217 = vmul.f32 %v2082, %v2196
        %v2218 = vmul.f32 %v2083, %v2196
        %v2219 = vmul.f32 %v2084, %v2196
        %v2220 = vmul.f32 %v2085, %v2196
        %v2221 = vmul.f32 %v2086, %v2196
        %v2222 = vmul.f32 %v2087, %v2196
        %v2223 = vmul.f32 %v2088, %v2196
        %v2224 = vmul.f32 %v2089, %v2196
        %v2225 = vmul.f32 %v2090, %v2196
        %v2226 = vmul.f32 %v2091, %v2196
        %v2227 = vmul.f32 %v2092, %v2196
        %v2228 = vmul.f32 %v2093, %v2196
        %v2229 = vmul.f32 %v2094, %v2196
        %v2230 = vmul.f32 %v2095, %v2196
        %v2231 = vmul.f32 %v2096, %v2196
        %v2232 = vmul.f32 %v2097, %v2196
        %v2233 = vmul.f32 %v2098, %v2196
        %v2234 = vmul.f32 %v2099, %v2196
        %v2235 = vmul.f32 %v2100, %v2196
        %v2236 = vmul.f32 %v2101, %v2196
        %v2237 = vmul.f32 %v2102, %v2196
        %v2238 = vmul.f32 %v2103, %v2196
        %v2239 = vmul.f32 %v2104, %v2196
        %v2240 = vmul.f32 %v2105, %v2196
        %v2241 = vmul.f32 %v2106, %v2196
        %v2242 = vmul.f32 %v2107, %v2196
        %v2243 = vmul.f32 %v2108, %v2196
        %v2244 = vmul.f32 %v2109, %v2196
        %v2245 = vmul.f32 %v2110, %v2196
        %v2246 = vmul.f32 %v2111, %v2196
        %v2247 = vmul.f32 %v2112, %v2196
        %v2248 = vmul.f32 %v2113, %v2196
        %v2249 = vmul.f32 %v2114, %v2196
        %v2250 = vmul.f32 %v2115, %v2196
        %v2251 = vmul.f32 %v2116, %v2196
        %v2252 = vmul.f32 %v2117, %v2196
        %v2253 = vmul.f32 %v2118, %v2196
        %v2254 = vmul.f32 %v2119, %v2196
        %v2255 = vmul.f32 %v2120, %v2196
        %v2256 = vmul.f32 %v2121, %v2196
        %v2257 = vmul.f32 %v2122, %v2196
        %v2258 = vmul.f32 %v2123, %v2196
        %v2259 = vmul.f32 %v2124, %v2196
        %v2260 = vmul.f32 %v2125, %v2196
        %v2261 = vmul.f32 %v2126, %v2196
        %v2262 = vmul.f32 %v2127, %v2196
        %v2263 = vmul.f32 %v2128, %v2196
        %v2264 = vmul.f32 %v2129, %v2196
        %v2265 = vmul.f32 %v2130, %v2196
        %v2266 = vmul.f32 %v2131, %v2196
        %v2267 = vmul.f32 %v2132, %v2196
        %v2268 = vmul.f32 %v2133, %v2196
        %v2269 = vmul.f32 %v2134, %v2196
        %v2270 = vmul.f32 %v2135, %v2196
        %v2271 = vmul.f32 %v2136, %v2196
        %v2272 = vmul.f32 %v2137, %v2196
        %v2273 = vmul.f32 %v2138, %v2196
        %v2274 = vmul.f32 %v2139, %v2196
        %v2275 = vmul.f32 %v2140, %v2196
        %v2276 = vmul.f32 %v2141, %v2196
        %v2277 = vmul.f32 %v2142, %v2196
        %v2278 = vmul.f32 %v2143, %v2196
        %v2279 = vmul.f32 %v2144, %v2196
        %v2280 = vmul.f32 %v2145, %v2196
        %v2281 = vmul.f32 %v2146, %v2196
        %v2282 = vmul.f32 %v2147, %v2196
        %v2283 = vmul.f32 %v2148, %v2196
        %v2284 = vmul.f32 %v2149, %v2196
        %v2285 = vmul.f32 %v2150, %v2196
        %v2286 = vmul.f32 %v2151, %v2196
        %v2287 = vmul.f32 %v2152, %v2196
        %v2288 = vmul.f32 %v2153, %v2196
        %v2289 = vmul.f32 %v2154, %v2196
        %v2290 = vmul.f32 %v2155, %v2196
        %v2291 = vmul.f32 %v2156, %v2196
        %v2292 = vmul.f32 %v2157, %v2196
        %v2293 = vmul.f32 %v2158, %v2196
        %v2294 = vmul.f32 %v2159, %v2196
        %v2295 = vmul.f32 %v2160, %v2196
        %v2296 = vmul.f32 %v2161, %v2196
        %v2297 = vmul.f32 %v2162, %v2196
        %v2298 = vmul.f32 %v2163, %v2196
        %v2299 = vmul.f32 %v2164, %v2196
        %v2300 = vmul.f32 %v2165, %v2196
        %v2301 = vmul.f32 %v2166, %v2196
        %v2302 = vmul.f32 %v2167, %v2196
        %v2303 = vmul.f32 %v2168, %v2196
        %v2304 = vmul.f32 %v2169, %v2196
        %v2305 = vmul.f32 %v2170, %v2196
        %v2306 = vmul.f32 %v2171, %v2196
        %v2307 = vmul.f32 %v2172, %v2196
        %v2308 = vmul.f32 %v2173, %v2196
        %v2309 = vmul.f32 %v2174, %v2196
        %v2310 = vmul.f32 %v2175, %v2196
        %v2311 = vmul.f32 %v2176, %v2196
        %v2312 = vmul.f32 %v2177, %v2196
        %v2313 = vmul.f32 %v2178, %v2196
        %v2314 = vmul.f32 %v2179, %v2196
        %v2315 = vmul.f32 %v2180, %v2196
        %v2316 = vmul.f32 %v2181, %v2196
        %v2317 = vmul.f32 %v2182, %v2196
        %v2318 = vmul.f32 %v2183, %v2196
        %v2319 = vmul.f32 %v2184, %v2196
        %v2320 = vmul.f32 %v2185, %v2196
        %v2321 = vmul.f32 %v2186, %v2196
        %v2322 = vmul.f32 %v2187, %v2196
        %v2323 = vmul.f32 %v2188, %v2196
        %v2324 = vmul.f32 %v2189, %v2196
        %v2325 = vmul.f32 %v2190, %v2196
        %2326 = vadd.xlane.f32.xlu0 %v2198
        %v2327 = vpop.xlane.xlu0 %2326
        %2328 = vadd.xlane.f32.xlu0 %v2199
        %v2329 = vpop.xlane.xlu0 %2328
        %2330 = vadd.xlane.f32.xlu0 %v2200
        %v2331 = vpop.xlane.xlu0 %2330
        %2332 = vadd.xlane.f32.xlu0 %v2201
        %v2333 = vpop.xlane.xlu0 %2332
        %2334 = vadd.xlane.f32.xlu0 %v2202
        %v2335 = vpop.xlane.xlu0 %2334
        %2336 = vadd.xlane.f32.xlu0 %v2203
        %v2337 = vpop.xlane.xlu0 %2336
        %2338 = vadd.xlane.f32.xlu0 %v2204
        %v2339 = vpop.xlane.xlu0 %2338
        %2340 = vadd.xlane.f32.xlu0 %v2205
        %v2341 = vpop.xlane.xlu0 %2340
        %2342 = vadd.xlane.f32.xlu0 %v2206
        %v2343 = vpop.xlane.xlu0 %2342
        %2344 = vadd.xlane.f32.xlu0 %v2207
        %v2345 = vpop.xlane.xlu0 %2344
        %2346 = vadd.xlane.f32.xlu0 %v2208
        %v2347 = vpop.xlane.xlu0 %2346
        %2348 = vadd.xlane.f32.xlu0 %v2209
        %v2349 = vpop.xlane.xlu0 %2348
        %2350 = vadd.xlane.f32.xlu0 %v2210
        %v2351 = vpop.xlane.xlu0 %2350
        %2352 = vadd.xlane.f32.xlu0 %v2211
        %v2353 = vpop.xlane.xlu0 %2352
        %2354 = vadd.xlane.f32.xlu0 %v2212
        %v2355 = vpop.xlane.xlu0 %2354
        %2356 = vadd.xlane.f32.xlu0 %v2213
        %v2357 = vpop.xlane.xlu0 %2356
        %2358 = vadd.xlane.f32.xlu0 %v2214
        %v2359 = vpop.xlane.xlu0 %2358
        %2360 = vadd.xlane.f32.xlu0 %v2215
        %v2361 = vpop.xlane.xlu0 %2360
        %2362 = vadd.xlane.f32.xlu0 %v2216
        %v2363 = vpop.xlane.xlu0 %2362
        %2364 = vadd.xlane.f32.xlu0 %v2217
        %v2365 = vpop.xlane.xlu0 %2364
        %2366 = vadd.xlane.f32.xlu0 %v2218
        %v2367 = vpop.xlane.xlu0 %2366
        %2368 = vadd.xlane.f32.xlu0 %v2219
        %v2369 = vpop.xlane.xlu0 %2368
        %2370 = vadd.xlane.f32.xlu0 %v2220
        %v2371 = vpop.xlane.xlu0 %2370
        %2372 = vadd.xlane.f32.xlu0 %v2221
        %v2373 = vpop.xlane.xlu0 %2372
        %2374 = vadd.xlane.f32.xlu0 %v2222
        %v2375 = vpop.xlane.xlu0 %2374
        %2376 = vadd.xlane.f32.xlu0 %v2223
        %v2377 = vpop.xlane.xlu0 %2376
        %2378 = vadd.xlane.f32.xlu0 %v2224
        %v2379 = vpop.xlane.xlu0 %2378
        %2380 = vadd.xlane.f32.xlu0 %v2225
        %v2381 = vpop.xlane.xlu0 %2380
        %2382 = vadd.xlane.f32.xlu0 %v2226
        %v2383 = vpop.xlane.xlu0 %2382
        %2384 = vadd.xlane.f32.xlu0 %v2227
        %v2385 = vpop.xlane.xlu0 %2384
        %2386 = vadd.xlane.f32.xlu0 %v2228
        %v2387 = vpop.xlane.xlu0 %2386
        %2388 = vadd.xlane.f32.xlu0 %v2229
        %v2389 = vpop.xlane.xlu0 %2388
        %2390 = vadd.xlane.f32.xlu0 %v2230
        %v2391 = vpop.xlane.xlu0 %2390
        %2392 = vadd.xlane.f32.xlu0 %v2231
        %v2393 = vpop.xlane.xlu0 %2392
        %2394 = vadd.xlane.f32.xlu0 %v2232
        %v2395 = vpop.xlane.xlu0 %2394
        %2396 = vadd.xlane.f32.xlu0 %v2233
        %v2397 = vpop.xlane.xlu0 %2396
        %2398 = vadd.xlane.f32.xlu0 %v2234
        %v2399 = vpop.xlane.xlu0 %2398
        %2400 = vadd.xlane.f32.xlu0 %v2235
        %v2401 = vpop.xlane.xlu0 %2400
        %2402 = vadd.xlane.f32.xlu0 %v2236
        %v2403 = vpop.xlane.xlu0 %2402
        %2404 = vadd.xlane.f32.xlu0 %v2237
        %v2405 = vpop.xlane.xlu0 %2404
        %2406 = vadd.xlane.f32.xlu0 %v2238
        %v2407 = vpop.xlane.xlu0 %2406
        %2408 = vadd.xlane.f32.xlu0 %v2239
        %v2409 = vpop.xlane.xlu0 %2408
        %2410 = vadd.xlane.f32.xlu0 %v2240
        %v2411 = vpop.xlane.xlu0 %2410
        %2412 = vadd.xlane.f32.xlu0 %v2241
        %v2413 = vpop.xlane.xlu0 %2412
        %2414 = vadd.xlane.f32.xlu0 %v2242
        %v2415 = vpop.xlane.xlu0 %2414
        %2416 = vadd.xlane.f32.xlu0 %v2243
        %v2417 = vpop.xlane.xlu0 %2416
        %2418 = vadd.xlane.f32.xlu0 %v2244
        %v2419 = vpop.xlane.xlu0 %2418
        %2420 = vadd.xlane.f32.xlu0 %v2245
        %v2421 = vpop.xlane.xlu0 %2420
        %2422 = vadd.xlane.f32.xlu0 %v2246
        %v2423 = vpop.xlane.xlu0 %2422
        %2424 = vadd.xlane.f32.xlu0 %v2247
        %v2425 = vpop.xlane.xlu0 %2424
        %2426 = vadd.xlane.f32.xlu0 %v2248
        %v2427 = vpop.xlane.xlu0 %2426
        %2428 = vadd.xlane.f32.xlu0 %v2249
        %v2429 = vpop.xlane.xlu0 %2428
        %2430 = vadd.xlane.f32.xlu0 %v2250
        %v2431 = vpop.xlane.xlu0 %2430
        %2432 = vadd.xlane.f32.xlu0 %v2251
        %v2433 = vpop.xlane.xlu0 %2432
        %2434 = vadd.xlane.f32.xlu0 %v2252
        %v2435 = vpop.xlane.xlu0 %2434
        %2436 = vadd.xlane.f32.xlu0 %v2253
        %v2437 = vpop.xlane.xlu0 %2436
        %2438 = vadd.xlane.f32.xlu0 %v2254
        %v2439 = vpop.xlane.xlu0 %2438
        %2440 = vadd.xlane.f32.xlu0 %v2255
        %v2441 = vpop.xlane.xlu0 %2440
        %2442 = vadd.xlane.f32.xlu0 %v2256
        %v2443 = vpop.xlane.xlu0 %2442
        %2444 = vadd.xlane.f32.xlu0 %v2257
        %v2445 = vpop.xlane.xlu0 %2444
        %2446 = vadd.xlane.f32.xlu0 %v2258
        %v2447 = vpop.xlane.xlu0 %2446
        %2448 = vadd.xlane.f32.xlu0 %v2259
        %v2449 = vpop.xlane.xlu0 %2448
        %2450 = vadd.xlane.f32.xlu0 %v2260
        %v2451 = vpop.xlane.xlu0 %2450
        %2452 = vadd.xlane.f32.xlu0 %v2261
        %v2453 = vpop.xlane.xlu0 %2452
        %2454 = vadd.xlane.f32.xlu0 %v2262
        %v2455 = vpop.xlane.xlu0 %2454
        %2456 = vadd.xlane.f32.xlu0 %v2263
        %v2457 = vpop.xlane.xlu0 %2456
        %2458 = vadd.xlane.f32.xlu0 %v2264
        %v2459 = vpop.xlane.xlu0 %2458
        %2460 = vadd.xlane.f32.xlu0 %v2265
        %v2461 = vpop.xlane.xlu0 %2460
        %2462 = vadd.xlane.f32.xlu0 %v2266
        %v2463 = vpop.xlane.xlu0 %2462
        %2464 = vadd.xlane.f32.xlu0 %v2267
        %v2465 = vpop.xlane.xlu0 %2464
        %2466 = vadd.xlane.f32.xlu0 %v2268
        %v2467 = vpop.xlane.xlu0 %2466
        %2468 = vadd.xlane.f32.xlu0 %v2269
        %v2469 = vpop.xlane.xlu0 %2468
        %2470 = vadd.xlane.f32.xlu0 %v2270
        %v2471 = vpop.xlane.xlu0 %2470
        %2472 = vadd.xlane.f32.xlu0 %v2271
        %v2473 = vpop.xlane.xlu0 %2472
        %2474 = vadd.xlane.f32.xlu0 %v2272
        %v2475 = vpop.xlane.xlu0 %2474
        %2476 = vadd.xlane.f32.xlu0 %v2273
        %v2477 = vpop.xlane.xlu0 %2476
        %2478 = vadd.xlane.f32.xlu0 %v2274
        %v2479 = vpop.xlane.xlu0 %2478
        %2480 = vadd.xlane.f32.xlu0 %v2275
        %v2481 = vpop.xlane.xlu0 %2480
        %2482 = vadd.xlane.f32.xlu0 %v2276
        %v2483 = vpop.xlane.xlu0 %2482
        %2484 = vadd.xlane.f32.xlu0 %v2277
        %v2485 = vpop.xlane.xlu0 %2484
        %2486 = vadd.xlane.f32.xlu0 %v2278
        %v2487 = vpop.xlane.xlu0 %2486
        %2488 = vadd.xlane.f32.xlu0 %v2279
        %v2489 = vpop.xlane.xlu0 %2488
        %2490 = vadd.xlane.f32.xlu0 %v2280
        %v2491 = vpop.xlane.xlu0 %2490
        %2492 = vadd.xlane.f32.xlu0 %v2281
        %v2493 = vpop.xlane.xlu0 %2492
        %2494 = vadd.xlane.f32.xlu0 %v2282
        %v2495 = vpop.xlane.xlu0 %2494
        %2496 = vadd.xlane.f32.xlu0 %v2283
        %v2497 = vpop.xlane.xlu0 %2496
        %2498 = vadd.xlane.f32.xlu0 %v2284
        %v2499 = vpop.xlane.xlu0 %2498
        %2500 = vadd.xlane.f32.xlu0 %v2285
        %v2501 = vpop.xlane.xlu0 %2500
        %2502 = vadd.xlane.f32.xlu0 %v2286
        %v2503 = vpop.xlane.xlu0 %2502
        %2504 = vadd.xlane.f32.xlu0 %v2287
        %v2505 = vpop.xlane.xlu0 %2504
        %2506 = vadd.xlane.f32.xlu0 %v2288
        %v2507 = vpop.xlane.xlu0 %2506
        %2508 = vadd.xlane.f32.xlu0 %v2289
        %v2509 = vpop.xlane.xlu0 %2508
        %2510 = vadd.xlane.f32.xlu0 %v2290
        %v2511 = vpop.xlane.xlu0 %2510
        %2512 = vadd.xlane.f32.xlu0 %v2291
        %v2513 = vpop.xlane.xlu0 %2512
        %2514 = vadd.xlane.f32.xlu0 %v2292
        %v2515 = vpop.xlane.xlu0 %2514
        %2516 = vadd.xlane.f32.xlu0 %v2293
        %v2517 = vpop.xlane.xlu0 %2516
        %2518 = vadd.xlane.f32.xlu0 %v2294
        %v2519 = vpop.xlane.xlu0 %2518
        %2520 = vadd.xlane.f32.xlu0 %v2295
        %v2521 = vpop.xlane.xlu0 %2520
        %2522 = vadd.xlane.f32.xlu0 %v2296
        %v2523 = vpop.xlane.xlu0 %2522
        %2524 = vadd.xlane.f32.xlu0 %v2297
        %v2525 = vpop.xlane.xlu0 %2524
        %2526 = vadd.xlane.f32.xlu0 %v2298
        %v2527 = vpop.xlane.xlu0 %2526
        %2528 = vadd.xlane.f32.xlu0 %v2299
        %v2529 = vpop.xlane.xlu0 %2528
        %2530 = vadd.xlane.f32.xlu0 %v2300
        %v2531 = vpop.xlane.xlu0 %2530
        %2532 = vadd.xlane.f32.xlu0 %v2301
        %v2533 = vpop.xlane.xlu0 %2532
        %2534 = vadd.xlane.f32.xlu0 %v2302
        %v2535 = vpop.xlane.xlu0 %2534
        %2536 = vadd.xlane.f32.xlu0 %v2303
        %v2537 = vpop.xlane.xlu0 %2536
        %2538 = vadd.xlane.f32.xlu0 %v2304
        %v2539 = vpop.xlane.xlu0 %2538
        %2540 = vadd.xlane.f32.xlu0 %v2305
        %v2541 = vpop.xlane.xlu0 %2540
        %2542 = vadd.xlane.f32.xlu0 %v2306
        %v2543 = vpop.xlane.xlu0 %2542
        %2544 = vadd.xlane.f32.xlu0 %v2307
        %v2545 = vpop.xlane.xlu0 %2544
        %2546 = vadd.xlane.f32.xlu0 %v2308
        %v2547 = vpop.xlane.xlu0 %2546
        %2548 = vadd.xlane.f32.xlu0 %v2309
        %v2549 = vpop.xlane.xlu0 %2548
        %2550 = vadd.xlane.f32.xlu0 %v2310
        %v2551 = vpop.xlane.xlu0 %2550
        %2552 = vadd.xlane.f32.xlu0 %v2311
        %v2553 = vpop.xlane.xlu0 %2552
        %2554 = vadd.xlane.f32.xlu0 %v2312
        %v2555 = vpop.xlane.xlu0 %2554
        %2556 = vadd.xlane.f32.xlu0 %v2313
        %v2557 = vpop.xlane.xlu0 %2556
        %2558 = vadd.xlane.f32.xlu0 %v2314
        %v2559 = vpop.xlane.xlu0 %2558
        %2560 = vadd.xlane.f32.xlu0 %v2315
        %v2561 = vpop.xlane.xlu0 %2560
        %2562 = vadd.xlane.f32.xlu0 %v2316
        %v2563 = vpop.xlane.xlu0 %2562
        %2564 = vadd.xlane.f32.xlu0 %v2317
        %v2565 = vpop.xlane.xlu0 %2564
        %2566 = vadd.xlane.f32.xlu0 %v2318
        %v2567 = vpop.xlane.xlu0 %2566
        %2568 = vadd.xlane.f32.xlu0 %v2319
        %v2569 = vpop.xlane.xlu0 %2568
        %2570 = vadd.xlane.f32.xlu0 %v2320
        %v2571 = vpop.xlane.xlu0 %2570
        %2572 = vadd.xlane.f32.xlu0 %v2321
        %v2573 = vpop.xlane.xlu0 %2572
        %2574 = vadd.xlane.f32.xlu0 %v2322
        %v2575 = vpop.xlane.xlu0 %2574
        %2576 = vadd.xlane.f32.xlu0 %v2323
        %v2577 = vpop.xlane.xlu0 %2576
        %2578 = vadd.xlane.f32.xlu0 %v2324
        %v2579 = vpop.xlane.xlu0 %2578
        %2580 = vadd.xlane.f32.xlu0 %v2325
        %v2581 = vpop.xlane.xlu0 %2580
        %v2582 = vld [vmem:[#allocation2] sm:$0x1]
        %v2584 = vlaneseq
        %v2585 = vshrl.u32 %v2584, 7
        %v2586 = vsub.s32 0, %v2585
        %v2587 = vrot.slane %v2582, %v2586
        %2588 = vset.pattern.permute.xlu0 0
        %2589 = vperm.xlu0 %2588, %v2587
        %v2590 = vpop.permute.xlu0 %2589
        %v2592 = vadd.f32 %v2327, %v2590
        %v2593 = vadd.f32 %v2329, %v2590
        %v2594 = vadd.f32 %v2331, %v2590
        %v2595 = vadd.f32 %v2333, %v2590
        %v2596 = vadd.f32 %v2335, %v2590
        %v2597 = vadd.f32 %v2337, %v2590
        %v2598 = vadd.f32 %v2339, %v2590
        %v2599 = vadd.f32 %v2341, %v2590
        %v2600 = vadd.f32 %v2343, %v2590
        %v2601 = vadd.f32 %v2345, %v2590
        %v2602 = vadd.f32 %v2347, %v2590
        %v2603 = vadd.f32 %v2349, %v2590
        %v2604 = vadd.f32 %v2351, %v2590
        %v2605 = vadd.f32 %v2353, %v2590
        %v2606 = vadd.f32 %v2355, %v2590
        %v2607 = vadd.f32 %v2357, %v2590
        %v2608 = vadd.f32 %v2359, %v2590
        %v2609 = vadd.f32 %v2361, %v2590
        %v2610 = vadd.f32 %v2363, %v2590
        %v2611 = vadd.f32 %v2365, %v2590
        %v2612 = vadd.f32 %v2367, %v2590
        %v2613 = vadd.f32 %v2369, %v2590
        %v2614 = vadd.f32 %v2371, %v2590
        %v2615 = vadd.f32 %v2373, %v2590
        %v2616 = vadd.f32 %v2375, %v2590
        %v2617 = vadd.f32 %v2377, %v2590
        %v2618 = vadd.f32 %v2379, %v2590
        %v2619 = vadd.f32 %v2381, %v2590
        %v2620 = vadd.f32 %v2383, %v2590
        %v2621 = vadd.f32 %v2385, %v2590
        %v2622 = vadd.f32 %v2387, %v2590
        %v2623 = vadd.f32 %v2389, %v2590
        %v2624 = vadd.f32 %v2391, %v2590
        %v2625 = vadd.f32 %v2393, %v2590
        %v2626 = vadd.f32 %v2395, %v2590
        %v2627 = vadd.f32 %v2397, %v2590
        %v2628 = vadd.f32 %v2399, %v2590
        %v2629 = vadd.f32 %v2401, %v2590
        %v2630 = vadd.f32 %v2403, %v2590
        %v2631 = vadd.f32 %v2405, %v2590
        %v2632 = vadd.f32 %v2407, %v2590
        %v2633 = vadd.f32 %v2409, %v2590
        %v2634 = vadd.f32 %v2411, %v2590
        %v2635 = vadd.f32 %v2413, %v2590
        %v2636 = vadd.f32 %v2415, %v2590
        %v2637 = vadd.f32 %v2417, %v2590
        %v2638 = vadd.f32 %v2419, %v2590
        %v2639 = vadd.f32 %v2421, %v2590
        %v2640 = vadd.f32 %v2423, %v2590
        %v2641 = vadd.f32 %v2425, %v2590
        %v2642 = vadd.f32 %v2427, %v2590
        %v2643 = vadd.f32 %v2429, %v2590
        %v2644 = vadd.f32 %v2431, %v2590
        %v2645 = vadd.f32 %v2433, %v2590
        %v2646 = vadd.f32 %v2435, %v2590
        %v2647 = vadd.f32 %v2437, %v2590
        %v2648 = vadd.f32 %v2439, %v2590
        %v2649 = vadd.f32 %v2441, %v2590
        %v2650 = vadd.f32 %v2443, %v2590
        %v2651 = vadd.f32 %v2445, %v2590
        %v2652 = vadd.f32 %v2447, %v2590
        %v2653 = vadd.f32 %v2449, %v2590
        %v2654 = vadd.f32 %v2451, %v2590
        %v2655 = vadd.f32 %v2453, %v2590
        %v2656 = vadd.f32 %v2455, %v2590
        %v2657 = vadd.f32 %v2457, %v2590
        %v2658 = vadd.f32 %v2459, %v2590
        %v2659 = vadd.f32 %v2461, %v2590
        %v2660 = vadd.f32 %v2463, %v2590
        %v2661 = vadd.f32 %v2465, %v2590
        %v2662 = vadd.f32 %v2467, %v2590
        %v2663 = vadd.f32 %v2469, %v2590
        %v2664 = vadd.f32 %v2471, %v2590
        %v2665 = vadd.f32 %v2473, %v2590
        %v2666 = vadd.f32 %v2475, %v2590
        %v2667 = vadd.f32 %v2477, %v2590
        %v2668 = vadd.f32 %v2479, %v2590
        %v2669 = vadd.f32 %v2481, %v2590
        %v2670 = vadd.f32 %v2483, %v2590
        %v2671 = vadd.f32 %v2485, %v2590
        %v2672 = vadd.f32 %v2487, %v2590
        %v2673 = vadd.f32 %v2489, %v2590
        %v2674 = vadd.f32 %v2491, %v2590
        %v2675 = vadd.f32 %v2493, %v2590
        %v2676 = vadd.f32 %v2495, %v2590
        %v2677 = vadd.f32 %v2497, %v2590
        %v2678 = vadd.f32 %v2499, %v2590
        %v2679 = vadd.f32 %v2501, %v2590
        %v2680 = vadd.f32 %v2503, %v2590
        %v2681 = vadd.f32 %v2505, %v2590
        %v2682 = vadd.f32 %v2507, %v2590
        %v2683 = vadd.f32 %v2509, %v2590
        %v2684 = vadd.f32 %v2511, %v2590
        %v2685 = vadd.f32 %v2513, %v2590
        %v2686 = vadd.f32 %v2515, %v2590
        %v2687 = vadd.f32 %v2517, %v2590
        %v2688 = vadd.f32 %v2519, %v2590
        %v2689 = vadd.f32 %v2521, %v2590
        %v2690 = vadd.f32 %v2523, %v2590
        %v2691 = vadd.f32 %v2525, %v2590
        %v2692 = vadd.f32 %v2527, %v2590
        %v2693 = vadd.f32 %v2529, %v2590
        %v2694 = vadd.f32 %v2531, %v2590
        %v2695 = vadd.f32 %v2533, %v2590
        %v2696 = vadd.f32 %v2535, %v2590
        %v2697 = vadd.f32 %v2537, %v2590
        %v2698 = vadd.f32 %v2539, %v2590
        %v2699 = vadd.f32 %v2541, %v2590
        %v2700 = vadd.f32 %v2543, %v2590
        %v2701 = vadd.f32 %v2545, %v2590
        %v2702 = vadd.f32 %v2547, %v2590
        %v2703 = vadd.f32 %v2549, %v2590
        %v2704 = vadd.f32 %v2551, %v2590
        %v2705 = vadd.f32 %v2553, %v2590
        %v2706 = vadd.f32 %v2555, %v2590
        %v2707 = vadd.f32 %v2557, %v2590
        %v2708 = vadd.f32 %v2559, %v2590
        %v2709 = vadd.f32 %v2561, %v2590
        %v2710 = vadd.f32 %v2563, %v2590
        %v2711 = vadd.f32 %v2565, %v2590
        %v2712 = vadd.f32 %v2567, %v2590
        %v2713 = vadd.f32 %v2569, %v2590
        %v2714 = vadd.f32 %v2571, %v2590
        %v2715 = vadd.f32 %v2573, %v2590
        %v2716 = vadd.f32 %v2575, %v2590
        %v2717 = vadd.f32 %v2577, %v2590
        %v2718 = vadd.f32 %v2579, %v2590
        %v2719 = vadd.f32 %v2581, %v2590
        %v2848 = vlaneseq
        %v2849 = vand.u32 %v2848, 127
        %v2850 = vlaneseq
        %v2851 = vshrl.u32 %v2850, 7
        %v2852 = vsub.s32 %v2849, %v2851
        %v2853 = vrot.slane %v2592, %v2852
        %v2854 = vadd.s32 %v2849, 4294967288
        %v2855 = vlaneseq
        %v2856 = vshrl.u32 %v2855, 7
        %v2857 = vsub.s32 %v2854, %v2856
        %v2858 = vrot.slane %v2593, %v2857
        %vm2859 = vcmask 130112
        %v2860 = vsel %vm2859, %v2858, %v2853
        %v2861 = vadd.s32 %v2849, 4294967280
        %v2862 = vlaneseq
        %v2863 = vshrl.u32 %v2862, 7
        %v2864 = vsub.s32 %v2861, %v2863
        %v2865 = vrot.slane %v2594, %v2864
        %vm2866 = vcmask 195712
        %v2867 = vsel %vm2866, %v2865, %v2860
        %v2868 = vadd.s32 %v2849, 4294967272
        %v2869 = vlaneseq
        %v2870 = vshrl.u32 %v2869, 7
        %v2871 = vsub.s32 %v2868, %v2870
        %v2872 = vrot.slane %v2595, %v2871
        %vm2873 = vcmask 261312
        %v2874 = vsel %vm2873, %v2872, %v2867
        %v2875 = vadd.s32 %v2849, 4294967264
        %v2876 = vlaneseq
        %v2877 = vshrl.u32 %v2876, 7
        %v2878 = vsub.s32 %v2875, %v2877
        %v2879 = vrot.slane %v2596, %v2878
        %vm2880 = vcmask 326912
        %v2881 = vsel %vm2880, %v2879, %v2874
        %v2882 = vadd.s32 %v2849, 4294967256
        %v2883 = vlaneseq
        %v2884 = vshrl.u32 %v2883, 7
        %v2885 = vsub.s32 %v2882, %v2884
        %v2886 = vrot.slane %v2597, %v2885
        %vm2887 = vcmask 392512
        %v2888 = vsel %vm2887, %v2886, %v2881
        %v2889 = vadd.s32 %v2849, 4294967248
        %v2890 = vlaneseq
        %v2891 = vshrl.u32 %v2890, 7
        %v2892 = vsub.s32 %v2889, %v2891
        %v2893 = vrot.slane %v2598, %v2892
        %vm2894 = vcmask 458112
        %v2895 = vsel %vm2894, %v2893, %v2888
        %v2896 = vadd.s32 %v2849, 4294967240
        %v2897 = vlaneseq
        %v2898 = vshrl.u32 %v2897, 7
        %v2899 = vsub.s32 %v2896, %v2898
        %v2900 = vrot.slane %v2599, %v2899
        %vm2901 = vcmask 523712
        %v2902 = vsel %vm2901, %v2900, %v2895
        %v2903 = vadd.s32 %v2849, 4294967232
        %v2904 = vlaneseq
        %v2905 = vshrl.u32 %v2904, 7
        %v2906 = vsub.s32 %v2903, %v2905
        %v2907 = vrot.slane %v2600, %v2906
        %vm2908 = vcmask 589312
        %v2909 = vsel %vm2908, %v2907, %v2902
        %v2910 = vadd.s32 %v2849, 4294967224
        %v2911 = vlaneseq
        %v2912 = vshrl.u32 %v2911, 7
        %v2913 = vsub.s32 %v2910, %v2912
        %v2914 = vrot.slane %v2601, %v2913
        %vm2915 = vcmask 654912
        %v2916 = vsel %vm2915, %v2914, %v2909
        %v2917 = vadd.s32 %v2849, 4294967216
        %v2918 = vlaneseq
        %v2919 = vshrl.u32 %v2918, 7
        %v2920 = vsub.s32 %v2917, %v2919
        %v2921 = vrot.slane %v2602, %v2920
        %vm2922 = vcmask 720512
        %v2923 = vsel %vm2922, %v2921, %v2916
        %v2924 = vadd.s32 %v2849, 4294967208
        %v2925 = vlaneseq
        %v2926 = vshrl.u32 %v2925, 7
        %v2927 = vsub.s32 %v2924, %v2926
        %v2928 = vrot.slane %v2603, %v2927
        %vm2929 = vcmask 786112
        %v2930 = vsel %vm2929, %v2928, %v2923
        %v2931 = vadd.s32 %v2849, 4294967200
        %v2932 = vlaneseq
        %v2933 = vshrl.u32 %v2932, 7
        %v2934 = vsub.s32 %v2931, %v2933
        %v2935 = vrot.slane %v2604, %v2934
        %vm2936 = vcmask 851712
        %v2937 = vsel %vm2936, %v2935, %v2930
        %v2938 = vadd.s32 %v2849, 4294967192
        %v2939 = vlaneseq
        %v2940 = vshrl.u32 %v2939, 7
        %v2941 = vsub.s32 %v2938, %v2940
        %v2942 = vrot.slane %v2605, %v2941
        %vm2943 = vcmask 917312
        %v2944 = vsel %vm2943, %v2942, %v2937
        %v2945 = vadd.s32 %v2849, 4294967184
        %v2946 = vlaneseq
        %v2947 = vshrl.u32 %v2946, 7
        %v2948 = vsub.s32 %v2945, %v2947
        %v2949 = vrot.slane %v2606, %v2948
        %vm2950 = vcmask 982912
        %v2951 = vsel %vm2950, %v2949, %v2944
        %v2952 = vadd.s32 %v2849, 4294967176
        %v2953 = vlaneseq
        %v2954 = vshrl.u32 %v2953, 7
        %v2955 = vsub.s32 %v2952, %v2954
        %v2956 = vrot.slane %v2607, %v2955
        %vm2957 = vcmask 1048512
        %v2958 = vsel %vm2957, %v2956, %v2951
        %v2959 = vlaneseq
        %v2960 = vshrl.u32 %v2959, 7
        %v2961 = vsub.s32 %v2849, %v2960
        %v2962 = vrot.slane %v2608, %v2961
        %v2963 = vlaneseq
        %v2964 = vshrl.u32 %v2963, 7
        %v2965 = vsub.s32 %v2854, %v2964
        %v2966 = vrot.slane %v2609, %v2965
        %v2967 = vsel %vm2859, %v2966, %v2962
        %v2968 = vlaneseq
        %v2969 = vshrl.u32 %v2968, 7
        %v2970 = vsub.s32 %v2861, %v2969
        %v2971 = vrot.slane %v2610, %v2970
        %v2972 = vsel %vm2866, %v2971, %v2967
        %v2973 = vlaneseq
        %v2974 = vshrl.u32 %v2973, 7
        %v2975 = vsub.s32 %v2868, %v2974
        %v2976 = vrot.slane %v2611, %v2975
        %v2977 = vsel %vm2873, %v2976, %v2972
        %v2978 = vlaneseq
        %v2979 = vshrl.u32 %v2978, 7
        %v2980 = vsub.s32 %v2875, %v2979
        %v2981 = vrot.slane %v2612, %v2980
        %v2982 = vsel %vm2880, %v2981, %v2977
        %v2983 = vlaneseq
        %v2984 = vshrl.u32 %v2983, 7
        %v2985 = vsub.s32 %v2882, %v2984
        %v2986 = vrot.slane %v2613, %v2985
        %v2987 = vsel %vm2887, %v2986, %v2982
        %v2988 = vlaneseq
        %v2989 = vshrl.u32 %v2988, 7
        %v2990 = vsub.s32 %v2889, %v2989
        %v2991 = vrot.slane %v2614, %v2990
        %v2992 = vsel %vm2894, %v2991, %v2987
        %v2993 = vlaneseq
        %v2994 = vshrl.u32 %v2993, 7
        %v2995 = vsub.s32 %v2896, %v2994
        %v2996 = vrot.slane %v2615, %v2995
        %v2997 = vsel %vm2901, %v2996, %v2992
        %v2998 = vlaneseq
        %v2999 = vshrl.u32 %v2998, 7
        %v3000 = vsub.s32 %v2903, %v2999
        %v3001 = vrot.slane %v2616, %v3000
        %v3002 = vsel %vm2908, %v3001, %v2997
        %v3003 = vlaneseq
        %v3004 = vshrl.u32 %v3003, 7
        %v3005 = vsub.s32 %v2910, %v3004
        %v3006 = vrot.slane %v2617, %v3005
        %v3007 = vsel %vm2915, %v3006, %v3002
        %v3008 = vlaneseq
        %v3009 = vshrl.u32 %v3008, 7
        %v3010 = vsub.s32 %v2917, %v3009
        %v3011 = vrot.slane %v2618, %v3010
        %v3012 = vsel %vm2922, %v3011, %v3007
        %v3013 = vlaneseq
        %v3014 = vshrl.u32 %v3013, 7
        %v3015 = vsub.s32 %v2924, %v3014
        %v3016 = vrot.slane %v2619, %v3015
        %v3017 = vsel %vm2929, %v3016, %v3012
        %v3018 = vlaneseq
        %v3019 = vshrl.u32 %v3018, 7
        %v3020 = vsub.s32 %v2931, %v3019
        %v3021 = vrot.slane %v2620, %v3020
        %v3022 = vsel %vm2936, %v3021, %v3017
        %v3023 = vlaneseq
        %v3024 = vshrl.u32 %v3023, 7
        %v3025 = vsub.s32 %v2938, %v3024
        %v3026 = vrot.slane %v2621, %v3025
        %v3027 = vsel %vm2943, %v3026, %v3022
        %v3028 = vlaneseq
        %v3029 = vshrl.u32 %v3028, 7
        %v3030 = vsub.s32 %v2945, %v3029
        %v3031 = vrot.slane %v2622, %v3030
        %v3032 = vsel %vm2950, %v3031, %v3027
        %v3033 = vlaneseq
        %v3034 = vshrl.u32 %v3033, 7
        %v3035 = vsub.s32 %v2952, %v3034
        %v3036 = vrot.slane %v2623, %v3035
        %v3037 = vsel %vm2957, %v3036, %v3032
        %v3038 = vlaneseq
        %v3039 = vshrl.u32 %v3038, 7
        %v3040 = vsub.s32 %v2849, %v3039
        %v3041 = vrot.slane %v2624, %v3040
        %v3042 = vlaneseq
        %v3043 = vshrl.u32 %v3042, 7
        %v3044 = vsub.s32 %v2854, %v3043
        %v3045 = vrot.slane %v2625, %v3044
        %v3046 = vsel %vm2859, %v3045, %v3041
        %v3047 = vlaneseq
        %v3048 = vshrl.u32 %v3047, 7
        %v3049 = vsub.s32 %v2861, %v3048
        %v3050 = vrot.slane %v2626, %v3049
        %v3051 = vsel %vm2866, %v3050, %v3046
        %v3052 = vlaneseq
        %v3053 = vshrl.u32 %v3052, 7
        %v3054 = vsub.s32 %v2868, %v3053
        %v3055 = vrot.slane %v2627, %v3054
        %v3056 = vsel %vm2873, %v3055, %v3051
        %v3057 = vlaneseq
        %v3058 = vshrl.u32 %v3057, 7
        %v3059 = vsub.s32 %v2875, %v3058
        %v3060 = vrot.slane %v2628, %v3059
        %v3061 = vsel %vm2880, %v3060, %v3056
        %v3062 = vlaneseq
        %v3063 = vshrl.u32 %v3062, 7
        %v3064 = vsub.s32 %v2882, %v3063
        %v3065 = vrot.slane %v2629, %v3064
        %v3066 = vsel %vm2887, %v3065, %v3061
        %v3067 = vlaneseq
        %v3068 = vshrl.u32 %v3067, 7
        %v3069 = vsub.s32 %v2889, %v3068
        %v3070 = vrot.slane %v2630, %v3069
        %v3071 = vsel %vm2894, %v3070, %v3066
        %v3072 = vlaneseq
        %v3073 = vshrl.u32 %v3072, 7
        %v3074 = vsub.s32 %v2896, %v3073
        %v3075 = vrot.slane %v2631, %v3074
        %v3076 = vsel %vm2901, %v3075, %v3071
        %v3077 = vlaneseq
        %v3078 = vshrl.u32 %v3077, 7
        %v3079 = vsub.s32 %v2903, %v3078
        %v3080 = vrot.slane %v2632, %v3079
        %v3081 = vsel %vm2908, %v3080, %v3076
        %v3082 = vlaneseq
        %v3083 = vshrl.u32 %v3082, 7
        %v3084 = vsub.s32 %v2910, %v3083
        %v3085 = vrot.slane %v2633, %v3084
        %v3086 = vsel %vm2915, %v3085, %v3081
        %v3087 = vlaneseq
        %v3088 = vshrl.u32 %v3087, 7
        %v3089 = vsub.s32 %v2917, %v3088
        %v3090 = vrot.slane %v2634, %v3089
        %v3091 = vsel %vm2922, %v3090, %v3086
        %v3092 = vlaneseq
        %v3093 = vshrl.u32 %v3092, 7
        %v3094 = vsub.s32 %v2924, %v3093
        %v3095 = vrot.slane %v2635, %v3094
        %v3096 = vsel %vm2929, %v3095, %v3091
        %v3097 = vlaneseq
        %v3098 = vshrl.u32 %v3097, 7
        %v3099 = vsub.s32 %v2931, %v3098
        %v3100 = vrot.slane %v2636, %v3099
        %v3101 = vsel %vm2936, %v3100, %v3096
        %v3102 = vlaneseq
        %v3103 = vshrl.u32 %v3102, 7
        %v3104 = vsub.s32 %v2938, %v3103
        %v3105 = vrot.slane %v2637, %v3104
        %v3106 = vsel %vm2943, %v3105, %v3101
        %v3107 = vlaneseq
        %v3108 = vshrl.u32 %v3107, 7
        %v3109 = vsub.s32 %v2945, %v3108
        %v3110 = vrot.slane %v2638, %v3109
        %v3111 = vsel %vm2950, %v3110, %v3106
        %v3112 = vlaneseq
        %v3113 = vshrl.u32 %v3112, 7
        %v3114 = vsub.s32 %v2952, %v3113
        %v3115 = vrot.slane %v2639, %v3114
        %v3116 = vsel %vm2957, %v3115, %v3111
        %v3117 = vlaneseq
        %v3118 = vshrl.u32 %v3117, 7
        %v3119 = vsub.s32 %v2849, %v3118
        %v3120 = vrot.slane %v2640, %v3119
        %v3121 = vlaneseq
        %v3122 = vshrl.u32 %v3121, 7
        %v3123 = vsub.s32 %v2854, %v3122
        %v3124 = vrot.slane %v2641, %v3123
        %v3125 = vsel %vm2859, %v3124, %v3120
        %v3126 = vlaneseq
        %v3127 = vshrl.u32 %v3126, 7
        %v3128 = vsub.s32 %v2861, %v3127
        %v3129 = vrot.slane %v2642, %v3128
        %v3130 = vsel %vm2866, %v3129, %v3125
        %v3131 = vlaneseq
        %v3132 = vshrl.u32 %v3131, 7
        %v3133 = vsub.s32 %v2868, %v3132
        %v3134 = vrot.slane %v2643, %v3133
        %v3135 = vsel %vm2873, %v3134, %v3130
        %v3136 = vlaneseq
        %v3137 = vshrl.u32 %v3136, 7
        %v3138 = vsub.s32 %v2875, %v3137
        %v3139 = vrot.slane %v2644, %v3138
        %v3140 = vsel %vm2880, %v3139, %v3135
        %v3141 = vlaneseq
        %v3142 = vshrl.u32 %v3141, 7
        %v3143 = vsub.s32 %v2882, %v3142
        %v3144 = vrot.slane %v2645, %v3143
        %v3145 = vsel %vm2887, %v3144, %v3140
        %v3146 = vlaneseq
        %v3147 = vshrl.u32 %v3146, 7
        %v3148 = vsub.s32 %v2889, %v3147
        %v3149 = vrot.slane %v2646, %v3148
        %v3150 = vsel %vm2894, %v3149, %v3145
        %v3151 = vlaneseq
        %v3152 = vshrl.u32 %v3151, 7
        %v3153 = vsub.s32 %v2896, %v3152
        %v3154 = vrot.slane %v2647, %v3153
        %v3155 = vsel %vm2901, %v3154, %v3150
        %v3156 = vlaneseq
        %v3157 = vshrl.u32 %v3156, 7
        %v3158 = vsub.s32 %v2903, %v3157
        %v3159 = vrot.slane %v2648, %v3158
        %v3160 = vsel %vm2908, %v3159, %v3155
        %v3161 = vlaneseq
        %v3162 = vshrl.u32 %v3161, 7
        %v3163 = vsub.s32 %v2910, %v3162
        %v3164 = vrot.slane %v2649, %v3163
        %v3165 = vsel %vm2915, %v3164, %v3160
        %v3166 = vlaneseq
        %v3167 = vshrl.u32 %v3166, 7
        %v3168 = vsub.s32 %v2917, %v3167
        %v3169 = vrot.slane %v2650, %v3168
        %v3170 = vsel %vm2922, %v3169, %v3165
        %v3171 = vlaneseq
        %v3172 = vshrl.u32 %v3171, 7
        %v3173 = vsub.s32 %v2924, %v3172
        %v3174 = vrot.slane %v2651, %v3173
        %v3175 = vsel %vm2929, %v3174, %v3170
        %v3176 = vlaneseq
        %v3177 = vshrl.u32 %v3176, 7
        %v3178 = vsub.s32 %v2931, %v3177
        %v3179 = vrot.slane %v2652, %v3178
        %v3180 = vsel %vm2936, %v3179, %v3175
        %v3181 = vlaneseq
        %v3182 = vshrl.u32 %v3181, 7
        %v3183 = vsub.s32 %v2938, %v3182
        %v3184 = vrot.slane %v2653, %v3183
        %v3185 = vsel %vm2943, %v3184, %v3180
        %v3186 = vlaneseq
        %v3187 = vshrl.u32 %v3186, 7
        %v3188 = vsub.s32 %v2945, %v3187
        %v3189 = vrot.slane %v2654, %v3188
        %v3190 = vsel %vm2950, %v3189, %v3185
        %v3191 = vlaneseq
        %v3192 = vshrl.u32 %v3191, 7
        %v3193 = vsub.s32 %v2952, %v3192
        %v3194 = vrot.slane %v2655, %v3193
        %v3195 = vsel %vm2957, %v3194, %v3190
        %v3196 = vlaneseq
        %v3197 = vshrl.u32 %v3196, 7
        %v3198 = vsub.s32 %v2849, %v3197
        %v3199 = vrot.slane %v2656, %v3198
        %v3200 = vlaneseq
        %v3201 = vshrl.u32 %v3200, 7
        %v3202 = vsub.s32 %v2854, %v3201
        %v3203 = vrot.slane %v2657, %v3202
        %v3204 = vsel %vm2859, %v3203, %v3199
        %v3205 = vlaneseq
        %v3206 = vshrl.u32 %v3205, 7
        %v3207 = vsub.s32 %v2861, %v3206
        %v3208 = vrot.slane %v2658, %v3207
        %v3209 = vsel %vm2866, %v3208, %v3204
        %v3210 = vlaneseq
        %v3211 = vshrl.u32 %v3210, 7
        %v3212 = vsub.s32 %v2868, %v3211
        %v3213 = vrot.slane %v2659, %v3212
        %v3214 = vsel %vm2873, %v3213, %v3209
        %v3215 = vlaneseq
        %v3216 = vshrl.u32 %v3215, 7
        %v3217 = vsub.s32 %v2875, %v3216
        %v3218 = vrot.slane %v2660, %v3217
        %v3219 = vsel %vm2880, %v3218, %v3214
        %v3220 = vlaneseq
        %v3221 = vshrl.u32 %v3220, 7
        %v3222 = vsub.s32 %v2882, %v3221
        %v3223 = vrot.slane %v2661, %v3222
        %v3224 = vsel %vm2887, %v3223, %v3219
        %v3225 = vlaneseq
        %v3226 = vshrl.u32 %v3225, 7
        %v3227 = vsub.s32 %v2889, %v3226
        %v3228 = vrot.slane %v2662, %v3227
        %v3229 = vsel %vm2894, %v3228, %v3224
        %v3230 = vlaneseq
        %v3231 = vshrl.u32 %v3230, 7
        %v3232 = vsub.s32 %v2896, %v3231
        %v3233 = vrot.slane %v2663, %v3232
        %v3234 = vsel %vm2901, %v3233, %v3229
        %v3235 = vlaneseq
        %v3236 = vshrl.u32 %v3235, 7
        %v3237 = vsub.s32 %v2903, %v3236
        %v3238 = vrot.slane %v2664, %v3237
        %v3239 = vsel %vm2908, %v3238, %v3234
        %v3240 = vlaneseq
        %v3241 = vshrl.u32 %v3240, 7
        %v3242 = vsub.s32 %v2910, %v3241
        %v3243 = vrot.slane %v2665, %v3242
        %v3244 = vsel %vm2915, %v3243, %v3239
        %v3245 = vlaneseq
        %v3246 = vshrl.u32 %v3245, 7
        %v3247 = vsub.s32 %v2917, %v3246
        %v3248 = vrot.slane %v2666, %v3247
        %v3249 = vsel %vm2922, %v3248, %v3244
        %v3250 = vlaneseq
        %v3251 = vshrl.u32 %v3250, 7
        %v3252 = vsub.s32 %v2924, %v3251
        %v3253 = vrot.slane %v2667, %v3252
        %v3254 = vsel %vm2929, %v3253, %v3249
        %v3255 = vlaneseq
        %v3256 = vshrl.u32 %v3255, 7
        %v3257 = vsub.s32 %v2931, %v3256
        %v3258 = vrot.slane %v2668, %v3257
        %v3259 = vsel %vm2936, %v3258, %v3254
        %v3260 = vlaneseq
        %v3261 = vshrl.u32 %v3260, 7
        %v3262 = vsub.s32 %v2938, %v3261
        %v3263 = vrot.slane %v2669, %v3262
        %v3264 = vsel %vm2943, %v3263, %v3259
        %v3265 = vlaneseq
        %v3266 = vshrl.u32 %v3265, 7
        %v3267 = vsub.s32 %v2945, %v3266
        %v3268 = vrot.slane %v2670, %v3267
        %v3269 = vsel %vm2950, %v3268, %v3264
        %v3270 = vlaneseq
        %v3271 = vshrl.u32 %v3270, 7
        %v3272 = vsub.s32 %v2952, %v3271
        %v3273 = vrot.slane %v2671, %v3272
        %v3274 = vsel %vm2957, %v3273, %v3269
        %v3275 = vlaneseq
        %v3276 = vshrl.u32 %v3275, 7
        %v3277 = vsub.s32 %v2849, %v3276
        %v3278 = vrot.slane %v2672, %v3277
        %v3279 = vlaneseq
        %v3280 = vshrl.u32 %v3279, 7
        %v3281 = vsub.s32 %v2854, %v3280
        %v3282 = vrot.slane %v2673, %v3281
        %v3283 = vsel %vm2859, %v3282, %v3278
        %v3284 = vlaneseq
        %v3285 = vshrl.u32 %v3284, 7
        %v3286 = vsub.s32 %v2861, %v3285
        %v3287 = vrot.slane %v2674, %v3286
        %v3288 = vsel %vm2866, %v3287, %v3283
        %v3289 = vlaneseq
        %v3290 = vshrl.u32 %v3289, 7
        %v3291 = vsub.s32 %v2868, %v3290
        %v3292 = vrot.slane %v2675, %v3291
        %v3293 = vsel %vm2873, %v3292, %v3288
        %v3294 = vlaneseq
        %v3295 = vshrl.u32 %v3294, 7
        %v3296 = vsub.s32 %v2875, %v3295
        %v3297 = vrot.slane %v2676, %v3296
        %v3298 = vsel %vm2880, %v3297, %v3293
        %v3299 = vlaneseq
        %v3300 = vshrl.u32 %v3299, 7
        %v3301 = vsub.s32 %v2882, %v3300
        %v3302 = vrot.slane %v2677, %v3301
        %v3303 = vsel %vm2887, %v3302, %v3298
        %v3304 = vlaneseq
        %v3305 = vshrl.u32 %v3304, 7
        %v3306 = vsub.s32 %v2889, %v3305
        %v3307 = vrot.slane %v2678, %v3306
        %v3308 = vsel %vm2894, %v3307, %v3303
        %v3309 = vlaneseq
        %v3310 = vshrl.u32 %v3309, 7
        %v3311 = vsub.s32 %v2896, %v3310
        %v3312 = vrot.slane %v2679, %v3311
        %v3313 = vsel %vm2901, %v3312, %v3308
        %v3314 = vlaneseq
        %v3315 = vshrl.u32 %v3314, 7
        %v3316 = vsub.s32 %v2903, %v3315
        %v3317 = vrot.slane %v2680, %v3316
        %v3318 = vsel %vm2908, %v3317, %v3313
        %v3319 = vlaneseq
        %v3320 = vshrl.u32 %v3319, 7
        %v3321 = vsub.s32 %v2910, %v3320
        %v3322 = vrot.slane %v2681, %v3321
        %v3323 = vsel %vm2915, %v3322, %v3318
        %v3324 = vlaneseq
        %v3325 = vshrl.u32 %v3324, 7
        %v3326 = vsub.s32 %v2917, %v3325
        %v3327 = vrot.slane %v2682, %v3326
        %v3328 = vsel %vm2922, %v3327, %v3323
        %v3329 = vlaneseq
        %v3330 = vshrl.u32 %v3329, 7
        %v3331 = vsub.s32 %v2924, %v3330
        %v3332 = vrot.slane %v2683, %v3331
        %v3333 = vsel %vm2929, %v3332, %v3328
        %v3334 = vlaneseq
        %v3335 = vshrl.u32 %v3334, 7
        %v3336 = vsub.s32 %v2931, %v3335
        %v3337 = vrot.slane %v2684, %v3336
        %v3338 = vsel %vm2936, %v3337, %v3333
        %v3339 = vlaneseq
        %v3340 = vshrl.u32 %v3339, 7
        %v3341 = vsub.s32 %v2938, %v3340
        %v3342 = vrot.slane %v2685, %v3341
        %v3343 = vsel %vm2943, %v3342, %v3338
        %v3344 = vlaneseq
        %v3345 = vshrl.u32 %v3344, 7
        %v3346 = vsub.s32 %v2945, %v3345
        %v3347 = vrot.slane %v2686, %v3346
        %v3348 = vsel %vm2950, %v3347, %v3343
        %v3349 = vlaneseq
        %v3350 = vshrl.u32 %v3349, 7
        %v3351 = vsub.s32 %v2952, %v3350
        %v3352 = vrot.slane %v2687, %v3351
        %v3353 = vsel %vm2957, %v3352, %v3348
        %v3354 = vlaneseq
        %v3355 = vshrl.u32 %v3354, 7
        %v3356 = vsub.s32 %v2849, %v3355
        %v3357 = vrot.slane %v2688, %v3356
        %v3358 = vlaneseq
        %v3359 = vshrl.u32 %v3358, 7
        %v3360 = vsub.s32 %v2854, %v3359
        %v3361 = vrot.slane %v2689, %v3360
        %v3362 = vsel %vm2859, %v3361, %v3357
        %v3363 = vlaneseq
        %v3364 = vshrl.u32 %v3363, 7
        %v3365 = vsub.s32 %v2861, %v3364
        %v3366 = vrot.slane %v2690, %v3365
        %v3367 = vsel %vm2866, %v3366, %v3362
        %v3368 = vlaneseq
        %v3369 = vshrl.u32 %v3368, 7
        %v3370 = vsub.s32 %v2868, %v3369
        %v3371 = vrot.slane %v2691, %v3370
        %v3372 = vsel %vm2873, %v3371, %v3367
        %v3373 = vlaneseq
        %v3374 = vshrl.u32 %v3373, 7
        %v3375 = vsub.s32 %v2875, %v3374
        %v3376 = vrot.slane %v2692, %v3375
        %v3377 = vsel %vm2880, %v3376, %v3372
        %v3378 = vlaneseq
        %v3379 = vshrl.u32 %v3378, 7
        %v3380 = vsub.s32 %v2882, %v3379
        %v3381 = vrot.slane %v2693, %v3380
        %v3382 = vsel %vm2887, %v3381, %v3377
        %v3383 = vlaneseq
        %v3384 = vshrl.u32 %v3383, 7
        %v3385 = vsub.s32 %v2889, %v3384
        %v3386 = vrot.slane %v2694, %v3385
        %v3387 = vsel %vm2894, %v3386, %v3382
        %v3388 = vlaneseq
        %v3389 = vshrl.u32 %v3388, 7
        %v3390 = vsub.s32 %v2896, %v3389
        %v3391 = vrot.slane %v2695, %v3390
        %v3392 = vsel %vm2901, %v3391, %v3387
        %v3393 = vlaneseq
        %v3394 = vshrl.u32 %v3393, 7
        %v3395 = vsub.s32 %v2903, %v3394
        %v3396 = vrot.slane %v2696, %v3395
        %v3397 = vsel %vm2908, %v3396, %v3392
        %v3398 = vlaneseq
        %v3399 = vshrl.u32 %v3398, 7
        %v3400 = vsub.s32 %v2910, %v3399
        %v3401 = vrot.slane %v2697, %v3400
        %v3402 = vsel %vm2915, %v3401, %v3397
        %v3403 = vlaneseq
        %v3404 = vshrl.u32 %v3403, 7
        %v3405 = vsub.s32 %v2917, %v3404
        %v3406 = vrot.slane %v2698, %v3405
        %v3407 = vsel %vm2922, %v3406, %v3402
        %v3408 = vlaneseq
        %v3409 = vshrl.u32 %v3408, 7
        %v3410 = vsub.s32 %v2924, %v3409
        %v3411 = vrot.slane %v2699, %v3410
        %v3412 = vsel %vm2929, %v3411, %v3407
        %v3413 = vlaneseq
        %v3414 = vshrl.u32 %v3413, 7
        %v3415 = vsub.s32 %v2931, %v3414
        %v3416 = vrot.slane %v2700, %v3415
        %v3417 = vsel %vm2936, %v3416, %v3412
        %v3418 = vlaneseq
        %v3419 = vshrl.u32 %v3418, 7
        %v3420 = vsub.s32 %v2938, %v3419
        %v3421 = vrot.slane %v2701, %v3420
        %v3422 = vsel %vm2943, %v3421, %v3417
        %v3423 = vlaneseq
        %v3424 = vshrl.u32 %v3423, 7
        %v3425 = vsub.s32 %v2945, %v3424
        %v3426 = vrot.slane %v2702, %v3425
        %v3427 = vsel %vm2950, %v3426, %v3422
        %v3428 = vlaneseq
        %v3429 = vshrl.u32 %v3428, 7
        %v3430 = vsub.s32 %v2952, %v3429
        %v3431 = vrot.slane %v2703, %v3430
        %v3432 = vsel %vm2957, %v3431, %v3427
        %v3433 = vlaneseq
        %v3434 = vshrl.u32 %v3433, 7
        %v3435 = vsub.s32 %v2849, %v3434
        %v3436 = vrot.slane %v2704, %v3435
        %v3437 = vlaneseq
        %v3438 = vshrl.u32 %v3437, 7
        %v3439 = vsub.s32 %v2854, %v3438
        %v3440 = vrot.slane %v2705, %v3439
        %v3441 = vsel %vm2859, %v3440, %v3436
        %v3442 = vlaneseq
        %v3443 = vshrl.u32 %v3442, 7
        %v3444 = vsub.s32 %v2861, %v3443
        %v3445 = vrot.slane %v2706, %v3444
        %v3446 = vsel %vm2866, %v3445, %v3441
        %v3447 = vlaneseq
        %v3448 = vshrl.u32 %v3447, 7
        %v3449 = vsub.s32 %v2868, %v3448
        %v3450 = vrot.slane %v2707, %v3449
        %v3451 = vsel %vm2873, %v3450, %v3446
        %v3452 = vlaneseq
        %v3453 = vshrl.u32 %v3452, 7
        %v3454 = vsub.s32 %v2875, %v3453
        %v3455 = vrot.slane %v2708, %v3454
        %v3456 = vsel %vm2880, %v3455, %v3451
        %v3457 = vlaneseq
        %v3458 = vshrl.u32 %v3457, 7
        %v3459 = vsub.s32 %v2882, %v3458
        %v3460 = vrot.slane %v2709, %v3459
        %v3461 = vsel %vm2887, %v3460, %v3456
        %v3462 = vlaneseq
        %v3463 = vshrl.u32 %v3462, 7
        %v3464 = vsub.s32 %v2889, %v3463
        %v3465 = vrot.slane %v2710, %v3464
        %v3466 = vsel %vm2894, %v3465, %v3461
        %v3467 = vlaneseq
        %v3468 = vshrl.u32 %v3467, 7
        %v3469 = vsub.s32 %v2896, %v3468
        %v3470 = vrot.slane %v2711, %v3469
        %v3471 = vsel %vm2901, %v3470, %v3466
        %v3472 = vlaneseq
        %v3473 = vshrl.u32 %v3472, 7
        %v3474 = vsub.s32 %v2903, %v3473
        %v3475 = vrot.slane %v2712, %v3474
        %v3476 = vsel %vm2908, %v3475, %v3471
        %v3477 = vlaneseq
        %v3478 = vshrl.u32 %v3477, 7
        %v3479 = vsub.s32 %v2910, %v3478
        %v3480 = vrot.slane %v2713, %v3479
        %v3481 = vsel %vm2915, %v3480, %v3476
        %v3482 = vlaneseq
        %v3483 = vshrl.u32 %v3482, 7
        %v3484 = vsub.s32 %v2917, %v3483
        %v3485 = vrot.slane %v2714, %v3484
        %v3486 = vsel %vm2922, %v3485, %v3481
        %v3487 = vlaneseq
        %v3488 = vshrl.u32 %v3487, 7
        %v3489 = vsub.s32 %v2924, %v3488
        %v3490 = vrot.slane %v2715, %v3489
        %v3491 = vsel %vm2929, %v3490, %v3486
        %v3492 = vlaneseq
        %v3493 = vshrl.u32 %v3492, 7
        %v3494 = vsub.s32 %v2931, %v3493
        %v3495 = vrot.slane %v2716, %v3494
        %v3496 = vsel %vm2936, %v3495, %v3491
        %v3497 = vlaneseq
        %v3498 = vshrl.u32 %v3497, 7
        %v3499 = vsub.s32 %v2938, %v3498
        %v3500 = vrot.slane %v2717, %v3499
        %v3501 = vsel %vm2943, %v3500, %v3496
        %v3502 = vlaneseq
        %v3503 = vshrl.u32 %v3502, 7
        %v3504 = vsub.s32 %v2945, %v3503
        %v3505 = vrot.slane %v2718, %v3504
        %v3506 = vsel %vm2950, %v3505, %v3501
        %v3507 = vlaneseq
        %v3508 = vshrl.u32 %v3507, 7
        %v3509 = vsub.s32 %v2952, %v3508
        %v3510 = vrot.slane %v2719, %v3509
        %v3511 = vsel %vm2957, %v3510, %v3506
        %vm3512 = vcmask 1041409
        %v3513 = vsel %vm3512, %v3037, %v2958
        %vm3514 = vcmask 1042434
        %v3515 = vsel %vm3514, %v3116, %v3513
        %vm3516 = vcmask 1043459
        %v3517 = vsel %vm3516, %v3195, %v3515
        %vm3518 = vcmask 1044484
        %v3519 = vsel %vm3518, %v3274, %v3517
        %vm3520 = vcmask 1045509
        %v3521 = vsel %vm3520, %v3353, %v3519
        %vm3522 = vcmask 1046534
        %v3523 = vsel %vm3522, %v3432, %v3521
        %vm3524 = vcmask 1047559
        %v3525 = vsel %vm3524, %v3511, %v3523
        %3527 = vst [vmem:[%s286] sm:$0xff] %v3525
        %s3528 = sand.u32 %s183, 1
        %s3529 = scalar_lea.sflag [#allocation4], %s3528
        %s3530 = sand.u32 %s183, 1
        %s3531 = smul.addr %s3530, 8
        %s3532 = scalar_lea.vmem [#allocation3], %s3531
        // Predicated region
        $region49: #{tpu_custom_call.1} parent=47 // pred_check
          %p3533 = pneg %p193
        $region50: #{tpu_custom_call.1} parent=47 // pred_check_branch
          %3535 = sbr.rel (%p3533) target = $region52
        $region51: #{tpu_custom_call.1} parent=47 // pred_region
          %s3537 = ssub.s32 128, 128
          %3538 = vsyncadd %s3529, %s3537
          %s3539 = smul.addr %s23, 128
          %s3540 = scalar_lea.hbm %s7, %s3539
          %s3542 = sshll.u32 %s3532, 4
          %s3543 = int_to_ptr.vmem [resolvable:$true] %s3542
          %3545 = dma.vmem_to_hbm [thread:$0]  %s3543, 128, %s3540, %s3529
        $region52: #{tpu_custom_call.1} parent=47 // pred_fallthru
          _
      $region48: #{tpu_custom_call.1} parent=5 // pred_fallthru
        _
      %p3546 = scmp.le.s32.totalorder 2, %s18
      // Predicated region
      $region53: #{tpu_custom_call.1} parent=5 // pred_check
        %p3547 = pneg %p3546
      $region54: #{tpu_custom_call.1} parent=5 // pred_check_branch
        %3549 = sbr.rel (%p3547) target = $region56
      $region55: #{tpu_custom_call.1} parent=5 // pred_region
        %s3550 = ssub.s32 %s18, 2
        // Predicated region
        $region57: #{tpu_custom_call.1} parent=55 // pred_check
          %p3551 = pneg %p199
        $region58: #{tpu_custom_call.1} parent=55 // pred_check_branch
          %3553 = sbr.rel (%p3551) target = $region60
        $region59: #{tpu_custom_call.1} parent=55 // pred_region
          %s3554 = sand.u32 %s184, 1
          %s3555 = scalar_lea.sflag [#allocation4], %s3554
          %s3556 = sand.u32 %s184, 1
          %s3557 = smul.addr %s3556, 8
          %s3558 = scalar_lea.vmem [#allocation3], %s3557
          %3559 = dma.done %s3555, 128
        $region60: #{tpu_custom_call.1} parent=55 // pred_fallthru
          _
      $region56: #{tpu_custom_call.1} parent=5 // pred_fallthru
        _
    $region6: #{tpu_custom_call.1} parent=1 // loop_footer
      %s22 = sadd.s32 1, %s18
    $region7: #{tpu_custom_call.1} parent=1 // loop_footer_branch
      %17 = sbr.rel target = $region3
    $region8: #{tpu_custom_call.1} parent=1 // loop_exit
      _
    %3560 = vsyncpa [#allocation4], 1
    %s3561 = scalar_lea.sflag [#allocation4], 1
    %3562 = vsyncpa %s3561, 1

</llo_original>
